<compile_context>
chip_gen: v7x
topology: tpu7x:2x2x1
jax: 0.10.0
libtpu: 0.0.40
codegen_flags: <defaults>
</compile_context>

<pallas_src>
import jax
import jax.numpy as jnp
from jax.experimental import pallas as pl
from jax.experimental.pallas import tpu as pltpu


# ----------------------------- tiling helper -----------------------------

def _row_tile(M):
    """Pick a big row tile (256-1024) but keep >= 2 grid steps when possible so
    both v7x TensorCores are used (grid axis is marked 'parallel')."""
    if M < 16:
        return M                       # single block == full dims (no (8,128) issue)
    for tm in (1024, 512, 256, 128, 64, 32, 16, 8):
        if M >= 2 * tm:
            return tm
    return 8


# ----------------------------- Pallas kernels -----------------------------

def _bn_relu_conv1x1_kernel(x_ref, ss_ref, w_ref, o_ref):
    # x_ref: (tm, Cin)   ss_ref: (2, Cin) f32 [scale; shift]   w_ref: (Cin, Cout) bf16
    x = x_ref[...].astype(jnp.float32)
    ss = ss_ref[...]
    xn = jnp.maximum(x * ss[0:1, :] + ss[1:2, :], 0.0)          # BN(eval)+ReLU in f32
    o_ref[...] = jnp.dot(xn.astype(jnp.bfloat16), w_ref[...],
                         preferred_element_type=jnp.float32).astype(o_ref.dtype)


def _level_conv_kernel(x_ref, ss_ref, w_ref, o_ref):
    # One SPP level per grid step (all levels fused into one pallas_call).
    # x_ref: (1, Mp, C0)  ss_ref: (1, 2, C0)  w_ref: (1, C0, Cl)  o_ref: (1, Mp, Cl)
    x = x_ref[0].astype(jnp.float32)
    ss = ss_ref[0]
    xn = jnp.maximum(x * ss[0:1, :] + ss[1:2, :], 0.0)
    o_ref[0, :, :] = jnp.dot(xn.astype(jnp.bfloat16), w_ref[0],
                             preferred_element_type=jnp.float32).astype(o_ref.dtype)


def _make_fuse_kernel(num_levels):
    # spp_fuse without materializing the channel concat: per channel group
    # relu(bn(group)) @ W_group, accumulated in f32.
    def kernel(x0_ref, lv_ref, ss0_ref, ssl_ref, w0_ref, wl_ref, o_ref):
        x0 = x0_ref[...].astype(jnp.float32)
        ss0 = ss0_ref[...]
        a0 = jnp.maximum(x0 * ss0[0:1, :] + ss0[1:2, :], 0.0)
        acc = jnp.dot(a0.astype(jnp.bfloat16), w0_ref[...],
                      preferred_element_type=jnp.float32)
        for l in range(num_levels):                            # static unroll, small L
            xl = lv_ref[l].astype(jnp.float32)
            ssl = ssl_ref[l]
            al = jnp.maximum(xl * ssl[0:1, :] + ssl[1:2, :], 0.0)
            acc = acc + jnp.dot(al.astype(jnp.bfloat16), wl_ref[l],
                                preferred_element_type=jnp.float32)
        # TODO(synk): Cout < 128 lanes -> masked vst stores; a lane-dense output
        # repack (XLU relayout) was not applied -- measure before adding it.
        o_ref[...] = acc.astype(o_ref.dtype)
    return kernel


# ----------------------------- Pallas wrappers -----------------------------

def bn_relu_conv1x1_flat(x_flat, ss, w, *, out_dtype=jnp.bfloat16):
    """relu(x*scale + shift) @ w on flat (M, Cin) rows. ss: (2, Cin) f32, w: (Cin, Cout) bf16."""
    M, Cin = x_flat.shape
    Cout = w.shape[1]
    tm = _row_tile(M)
    grid = (pl.cdiv(M, tm),)                                   # ragged last block OK
    cost = pl.CostEstimate(
        flops=2 * M * Cin * Cout + 2 * M * Cin,
        transcendentals=0,
        bytes_accessed=(M * Cin * jnp.dtype(x_flat.dtype).itemsize
                        + M * Cout * jnp.dtype(out_dtype).itemsize
                        + 2 * Cin * 4 + Cin * Cout * 2))
    return pl.pallas_call(
        _bn_relu_conv1x1_kernel,
        out_shape=jax.ShapeDtypeStruct((M, Cout), out_dtype),
        grid_spec=pltpu.PrefetchScalarGridSpec(
            num_scalar_prefetch=0,
            grid=grid,
            in_specs=[
                pl.BlockSpec((tm, Cin), lambda i: (i, 0)),     # activation row tile
                pl.BlockSpec((2, Cin), lambda i: (0, 0)),      # folded BN scale/shift
                pl.BlockSpec((Cin, Cout), lambda i: (0, 0)),   # 1x1 conv weight (bf16)
            ],
            out_specs=pl.BlockSpec((tm, Cout), lambda i: (i, 0)),
        ),
        compiler_params=pltpu.CompilerParams(dimension_semantics=("parallel",)),
        cost_estimate=cost,
    )(x_flat, ss, w)


def level_convs(pooled_stack, ss_lvl, w_lvl, *, out_dtype=jnp.bfloat16):
    """All pyramid-level BN+ReLU+1x1 convs in one pallas_call (grid over levels)."""
    L, Mp, C0 = pooled_stack.shape
    Cl = w_lvl.shape[-1]
    return pl.pallas_call(
        _level_conv_kernel,
        out_shape=jax.ShapeDtypeStruct((L, Mp, Cl), out_dtype),
        grid_spec=pltpu.PrefetchScalarGridSpec(
            num_scalar_prefetch=0,
            grid=(L,),
            in_specs=[
                pl.BlockSpec((1, Mp, C0), lambda l: (l, 0, 0)),
                pl.BlockSpec((1, 2, C0), lambda l: (l, 0, 0)),
                pl.BlockSpec((1, C0, Cl), lambda l: (l, 0, 0)),
            ],
            out_specs=pl.BlockSpec((1, Mp, Cl), lambda l: (l, 0, 0)),
        ),
        compiler_params=pltpu.CompilerParams(dimension_semantics=("parallel",)),
    )(pooled_stack, ss_lvl, w_lvl)


def spp_fuse_grouped(x0, levels_up, ss0, ssl, w0, wl, *, out_dtype=jnp.float32):
    """spp_fuse with per-group accumulation (no channel concat in HBM)."""
    M, C0 = x0.shape
    L, _, Cl = levels_up.shape
    Cout = w0.shape[1]
    tm = _row_tile(M)
    grid = (pl.cdiv(M, tm),)
    cost = pl.CostEstimate(
        flops=2 * M * (C0 + L * Cl) * Cout,
        transcendentals=0,
        bytes_accessed=(M * C0 * jnp.dtype(x0.dtype).itemsize
                        + L * M * Cl * jnp.dtype(levels_up.dtype).itemsize
                        + M * Cout * jnp.dtype(out_dtype).itemsize))
    return pl.pallas_call(
        _make_fuse_kernel(L),
        out_shape=jax.ShapeDtypeStruct((M, Cout), out_dtype),
        grid_spec=pltpu.PrefetchScalarGridSpec(
            num_scalar_prefetch=0,
            grid=grid,
            in_specs=[
                pl.BlockSpec((tm, C0), lambda i: (i, 0)),      # spp_bn output rows
                pl.BlockSpec((L, tm, Cl), lambda i: (0, i, 0)),  # upsampled levels
                pl.BlockSpec((2, C0), lambda i: (0, 0)),
                pl.BlockSpec((L, 2, Cl), lambda i: (0, 0, 0)),
                pl.BlockSpec((C0, Cout), lambda i: (0, 0)),
                pl.BlockSpec((L, Cl, Cout), lambda i: (0, 0, 0)),
            ],
            out_specs=pl.BlockSpec((tm, Cout), lambda i: (i, 0)),
        ),
        compiler_params=pltpu.CompilerParams(dimension_semantics=("parallel",)),
        cost_estimate=cost,
    )(x0, levels_up, ss0, ssl, w0, wl)


# ----------------------------- param folding & JAX glue -----------------------------

def _fold_bn_conv(p, eps=1e-5):
    """Fold eval-mode BN into (2, Cin) scale/shift (f32) and (Cin, Cout) bf16 weight."""
    scale = p["gamma"] * jax.lax.rsqrt(p["var"] + eps)
    shift = p["beta"] - p["mean"] * scale
    ss = jnp.stack([scale, shift]).astype(jnp.float32)
    cout, cin = p["w"].shape[0], p["w"].shape[1]
    w = p["w"].reshape(cout, cin).T.astype(jnp.bfloat16)
    return ss, w


def adaptive_avg_pool_matrix(in_size, out_size):
    """Row i averages input bins [floor(i*in/out), ceil((i+1)*in/out)) (PyTorch semantics)."""
    i = jnp.arange(out_size)
    starts = (i * in_size) // out_size
    ends = ((i + 1) * in_size + out_size - 1) // out_size
    idx = jnp.arange(in_size)
    mask = (idx[None, :] >= starts[:, None]) & (idx[None, :] < ends[:, None])
    return mask.astype(jnp.float32) / (ends - starts)[:, None].astype(jnp.float32)


def bilinear_upsample_matrix(in_size, out_size):
    """F.interpolate(mode='bilinear', align_corners=False) along one axis as (out, in) matrix."""
    o = jnp.arange(out_size, dtype=jnp.float32)
    src = (o + 0.5) * (in_size / out_size) - 0.5
    src = jnp.maximum(src, 0.0)
    lo = jnp.minimum(jnp.floor(src).astype(jnp.int32), in_size - 1)
    hi = jnp.minimum(lo + 1, in_size - 1)
    frac = src - lo.astype(jnp.float32)
    m = jnp.zeros((out_size, in_size), jnp.float32)
    m = m.at[jnp.arange(out_size), lo].add(1.0 - frac)
    m = m.at[jnp.arange(out_size), hi].add(frac)
    return m


# ----------------------------- SPP forward -----------------------------

def spatial_pyramid_pooling(x_nchw, params, grids, square_grid=False, eps=1e-5):
    N, Cin, H, W = x_nchw.shape
    ar = W / H
    M = N * H * W
    L = len(grids)

    # -- single NCHW -> flat NHWC relayout for the whole SPP --
    x_flat = jnp.transpose(x_nchw, (0, 2, 3, 1)).reshape(M, Cin)

    # -- spp_bn: fused BN+ReLU+1x1conv (Pallas), bf16 intermediate --
    ss_bn, w_bn = _fold_bn_conv(params["spp_bn"], eps)
    x0 = bn_relu_conv1x1_flat(x_flat, ss_bn, w_bn, out_dtype=jnp.bfloat16)   # (M, C0)
    C0 = x0.shape[1]
    x0_nhwc = x0.reshape(N, H, W, C0)

    # -- adaptive avg-pool per level: tiny separable linear maps --
    # TODO(synk): adaptive pool / bilinear upsample stay as tiny XLA einsums
    # (a few dozen output rows); the heavy per-row work stays in Pallas.
    pooled_list, lvl_shapes = [], []
    for g in grids:
        gh, gw = (g, g) if square_grid else (g, max(1, round(ar * g)))
        Ph = adaptive_avg_pool_matrix(H, gh)
        Pw = adaptive_avg_pool_matrix(W, gw)
        pooled = jnp.einsum("ih,jw,nhwc->nijc", Ph, Pw, x0_nhwc.astype(jnp.float32))
        pooled_list.append(pooled.reshape(N * gh * gw, C0))
        lvl_shapes.append((gh, gw))
    Mp_lvl = max(r.shape[0] for r in pooled_list)
    Mp_lvl = max(8, ((Mp_lvl + 7) // 8) * 8)
    pooled_stack = jnp.stack(
        [jnp.pad(r, ((0, Mp_lvl - r.shape[0]), (0, 0))) for r in pooled_list])   # (L, Mp, C0)

    # -- all L per-level BN+ReLU+1x1 convs in ONE pallas_call --
    ss_l, w_l = zip(*[_fold_bn_conv(params[f"spp{i}"], eps) for i in range(L)])
    ss_lvl = jnp.stack(ss_l)                                   # (L, 2, C0) f32
    w_lvl = jnp.stack(w_l)                                     # (L, C0, Cl) bf16
    lvl_conv = level_convs(pooled_stack, ss_lvl, w_lvl)        # (L, Mp, Cl) bf16
    Cl = lvl_conv.shape[-1]

    # -- bilinear upsample each level back to full resolution (tiny linear maps) --
    levels_up = []
    for l, (gh, gw) in enumerate(lvl_shapes):
        Uh = bilinear_upsample_matrix(gh, H)
        Uw = bilinear_upsample_matrix(gw, W)
        lvl = lvl_conv[l, :N * gh * gw].reshape(N, gh, gw, Cl).astype(jnp.float32)
        up = jnp.einsum("hi,wj,nijc->nhwc", Uh, Uw, lvl)       # (N, H, W, Cl)
        levels_up.append(up.reshape(M, Cl).astype(jnp.bfloat16))
    levels_up = jnp.stack(levels_up)                           # (L, M, Cl)

    # -- spp_fuse: grouped accumulation, no HBM channel concat --
    ss_f, w_f = _fold_bn_conv(params["spp_fuse"], eps)         # (2, final), (final, Cout)
    ss_f0 = ss_f[:, :C0]
    ss_fl = jnp.stack([ss_f[:, C0 + l * Cl: C0 + (l + 1) * Cl] for l in range(L)])
    w_f0 = w_f[:C0]
    w_fl = jnp.stack([w_f[C0 + l * Cl: C0 + (l + 1) * Cl] for l in range(L)])
    out_flat = spp_fuse_grouped(x0, levels_up, ss_f0, ss_fl, w_f0, w_fl,
                                out_dtype=jnp.float32)         # (M, Cout)

    # -- single flat NHWC -> NCHW relayout at exit --
    Cout = out_flat.shape[1]
    return jnp.transpose(out_flat.reshape(N, H, W, Cout), (0, 3, 1, 2))


# ----------------------------- deterministic params -----------------------------

def init_bnreluconv(key, cin, cout):
    k1, k2, k3, k4, k5 = jax.random.split(key, 5)
    return dict(
        gamma=jax.random.uniform(k1, (cin,), jnp.float32, 0.5, 1.5),
        beta=jax.random.uniform(k2, (cin,), jnp.float32, -0.1, 0.1),
        mean=jax.random.uniform(k3, (cin,), jnp.float32, -0.1, 0.1),
        var=jax.random.uniform(k4, (cin,), jnp.float32, 0.5, 1.5),
        w=(jax.random.normal(k5, (cout, cin, 1, 1), jnp.float32) * 0.1),
    )


if __name__ == "__main__":
    key = jax.random.PRNGKey(0)
    kx, k_bn, k0, k1, k2, k3, k_fuse = jax.random.split(key, 7)

    # small config consistent with the module (num_levels = len(grids))
    num_maps_in, bt_size, level_size, out_size = 4, 32, 16, 16
    grids = (6, 3, 2, 1)
    num_levels = len(grids)

    params = {"spp_bn": init_bnreluconv(k_bn, num_maps_in, bt_size)}
    for i, ki in enumerate([k0, k1, k2, k3]):
        params[f"spp{i}"] = init_bnreluconv(ki, bt_size, level_size)
    final_size = bt_size + num_levels * level_size
    params["spp_fuse"] = init_bnreluconv(k_fuse, final_size, out_size)

    x = jax.random.normal(kx, (2, num_maps_in, 16, 16), jnp.float32)

    spp = jax.jit(spatial_pyramid_pooling, static_argnames=("grids", "square_grid"))
    out = spp(x, params, grids=grids)
    out = jax.block_until_ready(out)
    assert out.shape == (2, out_size, 16, 16), out.shape
    assert bool(jnp.all(jnp.isfinite(out)))
    print("KERNEL_OK")
</pallas_src>

<mosaic_0001>
module attributes {stable_mosaic.version = 11 : i64} {
  func.func private @main(%arg0: i32) attributes {dimension_semantics = [#tpu.dimension_semantics<core_parallel>], iteration_bounds = array<i64: 2>, tpu.core_type = #tpu.core_type<sc_scalar_subcore>, window_params = []} {
    return
  }
}

module attributes {stable_mosaic.version = 11 : i64} {
  func.func private @main(%arg0: i32) attributes {dimension_semantics = [#tpu.dimension_semantics<core_parallel>], iteration_bounds = array<i64: 2>, tpu.core_type = #tpu.core_type<sc_scalar_subcore>, window_params = []} {
    return
  }
}

module attributes {stable_mosaic.version = 11 : i64} {
  func.func @_bn_relu_conv1x1_kernel(%arg0: i32, %arg1: memref<256x4xf32, #tpu.memory_space<vmem>>, %arg2: memref<2x4xf32, #tpu.memory_space<vmem>>, %arg3: memref<4x32xbf16, #tpu.memory_space<vmem>>, %arg4: memref<256x32xbf16, #tpu.memory_space<vmem>>) attributes {dimension_semantics = [#tpu.dimension_semantics<parallel>], iteration_bounds = array<i64: 2>, scalar_prefetch = 0 : i64, scratch_operands = 0 : i64, tpu.core_type = #tpu.core_type<tc>, window_params = [{transform_indices = @transform_0, window_bounds = array<i64: 256, 4>}, {pipeline_mode = #tpu.pipeline_mode<synchronous>, transform_indices = @transform_1, window_bounds = array<i64: 2, 4>}, {pipeline_mode = #tpu.pipeline_mode<synchronous>, transform_indices = @transform_2, window_bounds = array<i64: 4, 32>}, {transform_indices = @transform_3, window_bounds = array<i64: 256, 32>}]} {
    %c0 = arith.constant 0 : index
    %c0_0 = arith.constant 0 : index
    %0 = vector.load %arg1[%c0, %c0_0] : memref<256x4xf32, #tpu.memory_space<vmem>>, vector<256x4xf32>
    %c0_1 = arith.constant 0 : index
    %c0_2 = arith.constant 0 : index
    %1 = vector.load %arg2[%c0_1, %c0_2] : memref<2x4xf32, #tpu.memory_space<vmem>>, vector<2x4xf32>
    %2 = vector.extract_strided_slice %1 {offsets = [0, 0], sizes = [1, 4], strides = [1, 1]} : vector<2x4xf32> to vector<1x4xf32>
    %3 = vector.broadcast %2 : vector<1x4xf32> to vector<256x4xf32>
    %4 = arith.mulf %0, %3 : vector<256x4xf32>
    %5 = vector.extract_strided_slice %1 {offsets = [1, 0], sizes = [1, 4], strides = [1, 1]} : vector<2x4xf32> to vector<1x4xf32>
    %6 = vector.broadcast %5 : vector<1x4xf32> to vector<256x4xf32>
    %7 = arith.addf %4, %6 : vector<256x4xf32>
    %cst = arith.constant 0.000000e+00 : f32
    %8 = vector.broadcast %cst : f32 to vector<256x4xf32>
    %9 = arith.maximumf %7, %8 : vector<256x4xf32>
    %10 = arith.truncf %9 : vector<256x4xf32> to vector<256x4xbf16>
    %c0_3 = arith.constant 0 : index
    %c0_4 = arith.constant 0 : index
    %11 = vector.load %arg3[%c0_3, %c0_4] : memref<4x32xbf16, #tpu.memory_space<vmem>>, vector<4x32xbf16>
    %cst_5 = arith.constant dense<0.000000e+00> : vector<256x32xf32>
    %12 = tpu.matmul %10, %11, %cst_5 {dimension_numbers = #tpu.dot_dimension_numbers<[1], [0], [0], [1], [0, 0, 1, 1], [], []>} : vector<256x4xbf16>, vector<4x32xbf16>, vector<256x32xf32> -> vector<256x32xf32>
    %13 = arith.truncf %12 : vector<256x32xf32> to vector<256x32xbf16>
    %c0_6 = arith.constant 0 : index
    %c0_7 = arith.constant 0 : index
    %14 = vector.load %arg4[%c0_6, %c0_7] : memref<256x32xbf16, #tpu.memory_space<vmem>>, vector<256x32xbf16>
    tpu.vector_store %arg4[%c0_6, %c0_7], %13 {strides = array<i32>} : memref<256x32xbf16, #tpu.memory_space<vmem>>, vector<256x32xbf16>,
    return
  }
  func.func @transform_0(%arg0: i32) -> (i32, i32) {
    %c0_i32 = arith.constant 0 : i32
    %c0_i32_0 = arith.constant 0 : i32
    return %arg0, %c0_i32 : i32, i32
  }
  func.func @transform_1(%arg0: i32) -> (i32, i32) {
    %c0_i32 = arith.constant 0 : i32
    %c0_i32_0 = arith.constant 0 : i32
    %c0_i32_1 = arith.constant 0 : i32
    return %c0_i32, %c0_i32_0 : i32, i32
  }
  func.func @transform_2(%arg0: i32) -> (i32, i32) {
    %c0_i32 = arith.constant 0 : i32
    %c0_i32_0 = arith.constant 0 : i32
    %c0_i32_1 = arith.constant 0 : i32
    return %c0_i32, %c0_i32_0 : i32, i32
  }
  func.func @transform_3(%arg0: i32) -> (i32, i32) {
    %c0_i32 = arith.constant 0 : i32
    %c0_i32_0 = arith.constant 0 : i32
    return %arg0, %c0_i32 : i32, i32
  }
}

module attributes {stable_mosaic.version = 11 : i64} {
  func.func @_level_conv_kernel(%arg0: i32, %arg1: memref<1x72x32xf32, #tpu.memory_space<vmem>>, %arg2: memref<1x2x32xf32, #tpu.memory_space<vmem>>, %arg3: memref<1x32x16xbf16, #tpu.memory_space<vmem>>, %arg4: memref<1x72x16xbf16, #tpu.memory_space<vmem>>) attributes {dimension_semantics = [#tpu.dimension_semantics<parallel>], iteration_bounds = array<i64: 4>, scalar_prefetch = 0 : i64, scratch_operands = 0 : i64, tpu.core_type = #tpu.core_type<tc>, window_params = [{transform_indices = @transform_0, window_bounds = array<i64: 1, 72, 32>}, {transform_indices = @transform_1, window_bounds = array<i64: 1, 2, 32>}, {transform_indices = @transform_2, window_bounds = array<i64: 1, 32, 16>}, {transform_indices = @transform_3, window_bounds = array<i64: 1, 72, 16>}]} {
    %c0 = arith.constant 0 : index
    %c0_0 = arith.constant 0 : index
    %c0_1 = arith.constant 0 : index
    %0 = vector.load %arg1[%c0, %c0_0, %c0_1] : memref<1x72x32xf32, #tpu.memory_space<vmem>>, vector<1x72x32xf32>
    %1 = vector.shape_cast %0 : vector<1x72x32xf32> to vector<72x32xf32>
    %c0_2 = arith.constant 0 : index
    %c0_3 = arith.constant 0 : index
    %c0_4 = arith.constant 0 : index
    %2 = vector.load %arg2[%c0_2, %c0_3, %c0_4] : memref<1x2x32xf32, #tpu.memory_space<vmem>>, vector<1x2x32xf32>
    %3 = vector.shape_cast %2 : vector<1x2x32xf32> to vector<2x32xf32>
    %4 = vector.extract_strided_slice %3 {offsets = [0, 0], sizes = [1, 32], strides = [1, 1]} : vector<2x32xf32> to vector<1x32xf32>
    %5 = vector.broadcast %4 : vector<1x32xf32> to vector<72x32xf32>
    %6 = arith.mulf %1, %5 : vector<72x32xf32>
    %7 = vector.extract_strided_slice %3 {offsets = [1, 0], sizes = [1, 32], strides = [1, 1]} : vector<2x32xf32> to vector<1x32xf32>
    %8 = vector.broadcast %7 : vector<1x32xf32> to vector<72x32xf32>
    %9 = arith.addf %6, %8 : vector<72x32xf32>
    %cst = arith.constant 0.000000e+00 : f32
    %10 = vector.broadcast %cst : f32 to vector<72x32xf32>
    %11 = arith.maximumf %9, %10 : vector<72x32xf32>
    %12 = arith.truncf %11 : vector<72x32xf32> to vector<72x32xbf16>
    %c0_5 = arith.constant 0 : index
    %c0_6 = arith.constant 0 : index
    %c0_7 = arith.constant 0 : index
    %13 = vector.load %arg3[%c0_5, %c0_6, %c0_7] : memref<1x32x16xbf16, #tpu.memory_space<vmem>>, vector<1x32x16xbf16>
    %14 = vector.shape_cast %13 : vector<1x32x16xbf16> to vector<32x16xbf16>
    %cst_8 = arith.constant dense<0.000000e+00> : vector<72x16xf32>
    %15 = tpu.matmul %12, %14, %cst_8 {dimension_numbers = #tpu.dot_dimension_numbers<[1], [0], [0], [1], [0, 0, 1, 1], [], []>} : vector<72x32xbf16>, vector<32x16xbf16>, vector<72x16xf32> -> vector<72x16xf32>
    %16 = arith.truncf %15 : vector<72x16xf32> to vector<72x16xbf16>
    %c0_9 = arith.constant 0 : index
    %c0_10 = arith.constant 0 : index
    %c0_11 = arith.constant 0 : index
    %17 = vector.load %arg4[%c0_9, %c0_10, %c0_11] : memref<1x72x16xbf16, #tpu.memory_space<vmem>>, vector<1x72x16xbf16>
    %18 = vector.shape_cast %17 : vector<1x72x16xbf16> to vector<72x16xbf16>
    %19 = vector.shape_cast %16 : vector<72x16xbf16> to vector<1x72x16xbf16>
    tpu.vector_store %arg4[%c0_9, %c0_10, %c0_11], %19 {strides = array<i32>} : memref<1x72x16xbf16, #tpu.memory_space<vmem>>, vector<1x72x16xbf16>,
    return
  }
  func.func @transform_0(%arg0: i32) -> (i32, i32, i32) {
    %c0_i32 = arith.constant 0 : i32
    %c0_i32_0 = arith.constant 0 : i32
    %c0_i32_1 = arith.constant 0 : i32
    return %arg0, %c0_i32, %c0_i32_0 : i32, i32, i32
  }
  func.func @transform_1(%arg0: i32) -> (i32, i32, i32) {
    %c0_i32 = arith.constant 0 : i32
    %c0_i32_0 = arith.constant 0 : i32
    %c0_i32_1 = arith.constant 0 : i32
    return %arg0, %c0_i32, %c0_i32_0 : i32, i32, i32
  }
  func.func @transform_2(%arg0: i32) -> (i32, i32, i32) {
    %c0_i32 = arith.constant 0 : i32
    %c0_i32_0 = arith.constant 0 : i32
    %c0_i32_1 = arith.constant 0 : i32
    return %arg0, %c0_i32, %c0_i32_0 : i32, i32, i32
  }
  func.func @transform_3(%arg0: i32) -> (i32, i32, i32) {
    %c0_i32 = arith.constant 0 : i32
    %c0_i32_0 = arith.constant 0 : i32
    %c0_i32_1 = arith.constant 0 : i32
    return %arg0, %c0_i32, %c0_i32_0 : i32, i32, i32
  }
}

module attributes {stable_mosaic.version = 11 : i64} {
  func.func @kernel(%arg0: i32, %arg1: memref<256x32xbf16, #tpu.memory_space<vmem>>, %arg2: memref<4x256x16xbf16, #tpu.memory_space<vmem>>, %arg3: memref<2x32xf32, #tpu.memory_space<vmem>>, %arg4: memref<4x2x16xf32, #tpu.memory_space<vmem>>, %arg5: memref<32x16xbf16, #tpu.memory_space<vmem>>, %arg6: memref<4x16x16xbf16, #tpu.memory_space<vmem>>, %arg7: memref<256x16xf32, #tpu.memory_space<vmem>>) attributes {dimension_semantics = [#tpu.dimension_semantics<parallel>], iteration_bounds = array<i64: 2>, scalar_prefetch = 0 : i64, scratch_operands = 0 : i64, tpu.core_type = #tpu.core_type<tc>, window_params = [{transform_indices = @transform_0, window_bounds = array<i64: 256, 32>}, {transform_indices = @transform_1, window_bounds = array<i64: 4, 256, 16>}, {pipeline_mode = #tpu.pipeline_mode<synchronous>, transform_indices = @transform_2, window_bounds = array<i64: 2, 32>}, {pipeline_mode = #tpu.pipeline_mode<synchronous>, transform_indices = @transform_3, window_bounds = array<i64: 4, 2, 16>}, {pipeline_mode = #tpu.pipeline_mode<synchronous>, transform_indices = @transform_4, window_bounds = array<i64: 32, 16>}, {pipeline_mode = #tpu.pipeline_mode<synchronous>, transform_indices = @transform_5, window_bounds = array<i64: 4, 16, 16>}, {transform_indices = @transform_6, window_bounds = array<i64: 256, 16>}]} {
    %c0 = arith.constant 0 : index
    %c0_0 = arith.constant 0 : index
    %0 = vector.load %arg1[%c0, %c0_0] : memref<256x32xbf16, #tpu.memory_space<vmem>>, vector<256x32xbf16>
    %1 = arith.extf %0 : vector<256x32xbf16> to vector<256x32xf32>
    %c0_1 = arith.constant 0 : index
    %c0_2 = arith.constant 0 : index
    %2 = vector.load %arg3[%c0_1, %c0_2] : memref<2x32xf32, #tpu.memory_space<vmem>>, vector<2x32xf32>
    %3 = vector.extract_strided_slice %2 {offsets = [0, 0], sizes = [1, 32], strides = [1, 1]} : vector<2x32xf32> to vector<1x32xf32>
    %4 = vector.broadcast %3 : vector<1x32xf32> to vector<256x32xf32>
    %5 = arith.mulf %1, %4 : vector<256x32xf32>
    %6 = vector.extract_strided_slice %2 {offsets = [1, 0], sizes = [1, 32], strides = [1, 1]} : vector<2x32xf32> to vector<1x32xf32>
    %7 = vector.broadcast %6 : vector<1x32xf32> to vector<256x32xf32>
    %8 = arith.addf %5, %7 : vector<256x32xf32>
    %cst = arith.constant 0.000000e+00 : f32
    %9 = vector.broadcast %cst : f32 to vector<256x32xf32>
    %10 = arith.maximumf %8, %9 : vector<256x32xf32>
    %11 = arith.truncf %10 : vector<256x32xf32> to vector<256x32xbf16>
    %c0_3 = arith.constant 0 : index
    %c0_4 = arith.constant 0 : index
    %12 = vector.load %arg5[%c0_3, %c0_4] : memref<32x16xbf16, #tpu.memory_space<vmem>>, vector<32x16xbf16>
    %cst_5 = arith.constant dense<0.000000e+00> : vector<256x16xf32>
    %13 = tpu.matmul %11, %12, %cst_5 {dimension_numbers = #tpu.dot_dimension_numbers<[1], [0], [0], [1], [0, 0, 1, 1], [], []>} : vector<256x32xbf16>, vector<32x16xbf16>, vector<256x16xf32> -> vector<256x16xf32>
    %c0_6 = arith.constant 0 : index
    %c0_7 = arith.constant 0 : index
    %c0_8 = arith.constant 0 : index
    %14 = vector.load %arg2[%c0_6, %c0_7, %c0_8] : memref<4x256x16xbf16, #tpu.memory_space<vmem>>, vector<1x256x16xbf16>
    %15 = vector.shape_cast %14 : vector<1x256x16xbf16> to vector<256x16xbf16>
    %16 = arith.extf %15 : vector<256x16xbf16> to vector<256x16xf32>
    %c0_9 = arith.constant 0 : index
    %c0_10 = arith.constant 0 : index
    %c0_11 = arith.constant 0 : index
    %17 = vector.load %arg4[%c0_9, %c0_10, %c0_11] : memref<4x2x16xf32, #tpu.memory_space<vmem>>, vector<1x2x16xf32>
    %18 = vector.shape_cast %17 : vector<1x2x16xf32> to vector<2x16xf32>
    %19 = vector.extract_strided_slice %18 {offsets = [0, 0], sizes = [1, 16], strides = [1, 1]} : vector<2x16xf32> to vector<1x16xf32>
    %20 = vector.broadcast %19 : vector<1x16xf32> to vector<256x16xf32>
    %21 = arith.mulf %16, %20 : vector<256x16xf32>
    %22 = vector.extract_strided_slice %18 {offsets = [1, 0], sizes = [1, 16], strides = [1, 1]} : vector<2x16xf32> to vector<1x16xf32>
    %23 = vector.broadcast %22 : vector<1x16xf32> to vector<256x16xf32>
    %24 = arith.addf %21, %23 : vector<256x16xf32>
    %cst_12 = arith.constant 0.000000e+00 : f32
    %25 = vector.broadcast %cst_12 : f32 to vector<256x16xf32>
    %26 = arith.maximumf %24, %25 : vector<256x16xf32>
    %27 = arith.truncf %26 : vector<256x16xf32> to vector<256x16xbf16>
    %c0_13 = arith.constant 0 : index
    %c0_14 = arith.constant 0 : index
    %c0_15 = arith.constant 0 : index
    %28 = vector.load %arg6[%c0_13, %c0_14, %c0_15] : memref<4x16x16xbf16, #tpu.memory_space<vmem>>, vector<1x16x16xbf16>
    %29 = vector.shape_cast %28 : vector<1x16x16xbf16> to vector<16x16xbf16>
    %cst_16 = arith.constant dense<0.000000e+00> : vector<256x16xf32>
    %30 = tpu.matmul %27, %29, %cst_16 {dimension_numbers = #tpu.dot_dimension_numbers<[1], [0], [0], [1], [0, 0, 1, 1], [], []>} : vector<256x16xbf16>, vector<16x16xbf16>, vector<256x16xf32> -> vector<256x16xf32>
    %31 = arith.addf %13, %30 : vector<256x16xf32>
    %c1 = arith.constant 1 : index
    %c0_17 = arith.constant 0 : index
    %c0_18 = arith.constant 0 : index
    %32 = vector.load %arg2[%c1, %c0_17, %c0_18] : memref<4x256x16xbf16, #tpu.memory_space<vmem>>, vector<1x256x16xbf16>
    %33 = vector.shape_cast %32 : vector<1x256x16xbf16> to vector<256x16xbf16>
    %34 = arith.extf %33 : vector<256x16xbf16> to vector<256x16xf32>
    %c1_19 = arith.constant 1 : index
    %c0_20 = arith.constant 0 : index
    %c0_21 = arith.constant 0 : index
    %35 = vector.load %arg4[%c1_19, %c0_20, %c0_21] : memref<4x2x16xf32, #tpu.memory_space<vmem>>, vector<1x2x16xf32>
    %36 = vector.shape_cast %35 : vector<1x2x16xf32> to vector<2x16xf32>
    %37 = vector.extract_strided_slice %36 {offsets = [0, 0], sizes = [1, 16], strides = [1, 1]} : vector<2x16xf32> to vector<1x16xf32>
    %38 = vector.broadcast %37 : vector<1x16xf32> to vector<256x16xf32>
    %39 = arith.mulf %34, %38 : vector<256x16xf32>
    %40 = vector.extract_strided_slice %36 {offsets = [1, 0], sizes = [1, 16], strides = [1, 1]} : vector<2x16xf32> to vector<1x16xf32>
    %41 = vector.broadcast %40 : vector<1x16xf32> to vector<256x16xf32>
    %42 = arith.addf %39, %41 : vector<256x16xf32>
    %cst_22 = arith.constant 0.000000e+00 : f32
    %43 = vector.broadcast %cst_22 : f32 to vector<256x16xf32>
    %44 = arith.maximumf %42, %43 : vector<256x16xf32>
    %45 = arith.truncf %44 : vector<256x16xf32> to vector<256x16xbf16>
    %c1_23 = arith.constant 1 : index
    %c0_24 = arith.constant 0 : index
    %c0_25 = arith.constant 0 : index
    %46 = vector.load %arg6[%c1_23, %c0_24, %c0_25] : memref<4x16x16xbf16, #tpu.memory_space<vmem>>, vector<1x16x16xbf16>
    %47 = vector.shape_cast %46 : vector<1x16x16xbf16> to vector<16x16xbf16>
    %cst_26 = arith.constant dense<0.000000e+00> : vector<256x16xf32>
    %48 = tpu.matmul %45, %47, %cst_26 {dimension_numbers = #tpu.dot_dimension_numbers<[1], [0], [0], [1], [0, 0, 1, 1], [], []>} : vector<256x16xbf16>, vector<16x16xbf16>, vector<256x16xf32> -> vector<256x16xf32>
    %49 = arith.addf %31, %48 : vector<256x16xf32>
    %c2 = arith.constant 2 : index
    %c0_27 = arith.constant 0 : index
    %c0_28 = arith.constant 0 : index
    %50 = vector.load %arg2[%c2, %c0_27, %c0_28] : memref<4x256x16xbf16, #tpu.memory_space<vmem>>, vector<1x256x16xbf16>
    %51 = vector.shape_cast %50 : vector<1x256x16xbf16> to vector<256x16xbf16>
    %52 = arith.extf %51 : vector<256x16xbf16> to vector<256x16xf32>
    %c2_29 = arith.constant 2 : index
    %c0_30 = arith.constant 0 : index
    %c0_31 = arith.constant 0 : index
    %53 = vector.load %arg4[%c2_29, %c0_30, %c0_31] : memref<4x2x16xf32, #tpu.memory_space<vmem>>, vector<1x2x16xf32>
    %54 = vector.shape_cast %53 : vector<1x2x16xf32> to vector<2x16xf32>
    %55 = vector.extract_strided_slice %54 {offsets = [0, 0], sizes = [1, 16], strides = [1, 1]} : vector<2x16xf32> to vector<1x16xf32>
    %56 = vector.broadcast %55 : vector<1x16xf32> to vector<256x16xf32>
    %57 = arith.mulf %52, %56 : vector<256x16xf32>
    %58 = vector.extract_strided_slice %54 {offsets = [1, 0], sizes = [1, 16], strides = [1, 1]} : vector<2x16xf32> to vector<1x16xf32>
    %59 = vector.broadcast %58 : vector<1x16xf32> to vector<256x16xf32>
    %60 = arith.addf %57, %59 : vector<256x16xf32>
    %cst_32 = arith.constant 0.000000e+00 : f32
    %61 = vector.broadcast %cst_32 : f32 to vector<256x16xf32>
    %62 = arith.maximumf %60, %61 : vector<256x16xf32>
    %63 = arith.truncf %62 : vector<256x16xf32> to vector<256x16xbf16>
    %c2_33 = arith.constant 2 : index
    %c0_34 = arith.constant 0 : index
    %c0_35 = arith.constant 0 : index
    %64 = vector.load %arg6[%c2_33, %c0_34, %c0_35] : memref<4x16x16xbf16, #tpu.memory_space<vmem>>, vector<1x16x16xbf16>
    %65 = vector.shape_cast %64 : vector<1x16x16xbf16> to vector<16x16xbf16>
    %cst_36 = arith.constant dense<0.000000e+00> : vector<256x16xf32>
    %66 = tpu.matmul %63, %65, %cst_36 {dimension_numbers = #tpu.dot_dimension_numbers<[1], [0], [0], [1], [0, 0, 1, 1], [], []>} : vector<256x16xbf16>, vector<16x16xbf16>, vector<256x16xf32> -> vector<256x16xf32>
    %67 = arith.addf %49, %66 : vector<256x16xf32>
    %c3 = arith.constant 3 : index
    %c0_37 = arith.constant 0 : index
    %c0_38 = arith.constant 0 : index
    %68 = vector.load %arg2[%c3, %c0_37, %c0_38] : memref<4x256x16xbf16, #tpu.memory_space<vmem>>, vector<1x256x16xbf16>
    %69 = vector.shape_cast %68 : vector<1x256x16xbf16> to vector<256x16xbf16>
    %70 = arith.extf %69 : vector<256x16xbf16> to vector<256x16xf32>
    %c3_39 = arith.constant 3 : index
    %c0_40 = arith.constant 0 : index
    %c0_41 = arith.constant 0 : index
    %71 = vector.load %arg4[%c3_39, %c0_40, %c0_41] : memref<4x2x16xf32, #tpu.memory_space<vmem>>, vector<1x2x16xf32>
    %72 = vector.shape_cast %71 : vector<1x2x16xf32> to vector<2x16xf32>
    %73 = vector.extract_strided_slice %72 {offsets = [0, 0], sizes = [1, 16], strides = [1, 1]} : vector<2x16xf32> to vector<1x16xf32>
    %74 = vector.broadcast %73 : vector<1x16xf32> to vector<256x16xf32>
    %75 = arith.mulf %70, %74 : vector<256x16xf32>
    %76 = vector.extract_strided_slice %72 {offsets = [1, 0], sizes = [1, 16], strides = [1, 1]} : vector<2x16xf32> to vector<1x16xf32>
    %77 = vector.broadcast %76 : vector<1x16xf32> to vector<256x16xf32>
    %78 = arith.addf %75, %77 : vector<256x16xf32>
    %cst_42 = arith.constant 0.000000e+00 : f32
    %79 = vector.broadcast %cst_42 : f32 to vector<256x16xf32>
    %80 = arith.maximumf %78, %79 : vector<256x16xf32>
    %81 = arith.truncf %80 : vector<256x16xf32> to vector<256x16xbf16>
    %c3_43 = arith.constant 3 : index
    %c0_44 = arith.constant 0 : index
    %c0_45 = arith.constant 0 : index
    %82 = vector.load %arg6[%c3_43, %c0_44, %c0_45] : memref<4x16x16xbf16, #tpu.memory_space<vmem>>, vector<1x16x16xbf16>
    %83 = vector.shape_cast %82 : vector<1x16x16xbf16> to vector<16x16xbf16>
    %cst_46 = arith.constant dense<0.000000e+00> : vector<256x16xf32>
    %84 = tpu.matmul %81, %83, %cst_46 {dimension_numbers = #tpu.dot_dimension_numbers<[1], [0], [0], [1], [0, 0, 1, 1], [], []>} : vector<256x16xbf16>, vector<16x16xbf16>, vector<256x16xf32> -> vector<256x16xf32>
    %85 = arith.addf %67, %84 : vector<256x16xf32>
    %c0_47 = arith.constant 0 : index
    %c0_48 = arith.constant 0 : index
    %86 = vector.load %arg7[%c0_47, %c0_48] : memref<256x16xf32, #tpu.memory_space<vmem>>, vector<256x16xf32>
    tpu.vector_store %arg7[%c0_47, %c0_48], %85 {strides = array<i32>} : memref<256x16xf32, #tpu.memory_space<vmem>>, vector<256x16xf32>,
    return
  }
  func.func @transform_0(%arg0: i32) -> (i32, i32) {
    %c0_i32 = arith.constant 0 : i32
    %c0_i32_0 = arith.constant 0 : i32
    return %arg0, %c0_i32 : i32, i32
  }
  func.func @transform_1(%arg0: i32) -> (i32, i32, i32) {
    %c0_i32 = arith.constant 0 : i32
    %c0_i32_0 = arith.constant 0 : i32
    %c0_i32_1 = arith.constant 0 : i32
    return %c0_i32, %arg0, %c0_i32_0 : i32, i32, i32
  }
  func.func @transform_2(%arg0: i32) -> (i32, i32) {
    %c0_i32 = arith.constant 0 : i32
    %c0_i32_0 = arith.constant 0 : i32
    %c0_i32_1 = arith.constant 0 : i32
    return %c0_i32, %c0_i32_0 : i32, i32
  }
  func.func @transform_3(%arg0: i32) -> (i32, i32, i32) {
    %c0_i32 = arith.constant 0 : i32
    %c0_i32_0 = arith.constant 0 : i32
    %c0_i32_1 = arith.constant 0 : i32
    %c0_i32_2 = arith.constant 0 : i32
    return %c0_i32, %c0_i32_0, %c0_i32_1 : i32, i32, i32
  }
  func.func @transform_4(%arg0: i32) -> (i32, i32) {
    %c0_i32 = arith.constant 0 : i32
    %c0_i32_0 = arith.constant 0 : i32
    %c0_i32_1 = arith.constant 0 : i32
    return %c0_i32, %c0_i32_0 : i32, i32
  }
  func.func @transform_5(%arg0: i32) -> (i32, i32, i32) {
    %c0_i32 = arith.constant 0 : i32
    %c0_i32_0 = arith.constant 0 : i32
    %c0_i32_1 = arith.constant 0 : i32
    %c0_i32_2 = arith.constant 0 : i32
    return %c0_i32, %c0_i32_0, %c0_i32_1 : i32, i32, i32
  }
  func.func @transform_6(%arg0: i32) -> (i32, i32) {
    %c0_i32 = arith.constant 0 : i32
    %c0_i32_0 = arith.constant 0 : i32
    return %arg0, %c0_i32 : i32, i32
  }
}

</mosaic_0001>

<llo_original>
// kernel: spatial_pyramid_pooling.3
$region0: #{spatial_pyramid_pooling.3}
  #allocation0 [shape = 'u32[]', space=smem, size = 0x4, offset = 0x4, fixed_abs, tag = 'smem constant byte address 0x4 - core index']
  #allocation1 [shape = 'u32[144,128]{1,0:T(1,128)}', space=vmem, size = 0x12000, scoped, tag = 'internal scratch']
  %s0 = inlined_call_operand.vmem [shape: f32[512,4], index: 0, kind: input, shape index: {}]
  %s1 = inlined_call_operand.vmem [shape: f32[2,4], index: 1, kind: input, shape index: {}]
  %s2 = inlined_call_operand.vmem [shape: bf16[4,32], index: 2, kind: input, shape index: {}]
  %s3 = inlined_call_operand.vmem [shape: bf16[512,32], index: 3, kind: output, shape index: {}]
  %s4 = sld [smem:[#allocation0]]
  $region45: #{spatial_pyramid_pooling.3} parent=0
    _
  %s6 = ssub.s32 1, %s4
  %s7 = scalar_select 0, %s6, %s4
  loop: start=0, step=1, limit=4
  $region2: #{spatial_pyramid_pooling.3} parent=0 // loop_pre_header
    _
  $region3: #{spatial_pyramid_pooling.3} parent=0 // loop_header
    %s9 = sphi 0, %s13
    %p10 = scmp.ge.s32.totalorder %s9, 4
    %s19 = sphi 0, %s21
    %s22 = sphi 0, %s19
    %s23 = sphi 0, %s22
    %s39 = sphi 0, %s23
    %s43 = sphi 0, %s43
    %s45 = sphi 0, %s43
    %s46 = sphi 0, %s45
    %s60 = sphi 0, %s46
    %s64 = sphi 0, %s64
    %s66 = sphi 0, %s64
    %s67 = sphi 0, %s66
    %s81 = sphi 0, %s67
    %s87 = sphi 0, %s89
    %s90 = sphi 0, %s87
    %s91 = sphi 0, %s90
    %s107 = sphi 0, %s91
  $region4: #{spatial_pyramid_pooling.3} parent=0 // loop_header_branch
    %12 = sbr.rel (%p10) target = $region8
  $region5: #{spatial_pyramid_pooling.3} parent=0 // loop_body
    %s14 = ssub.s32 %s9, 1
    %s15 = ssub.s32 %s9, 2
    %s16 = sadd.s32 %s9, 1
    %s17 = ssub.s32 %s9, %s16
    %p18 = scmp.eq.s32.totalorder %s17, 0
    %s20 = sadd.s32 %s19, 1
    %s21 = scalar_select %p18, %s19, %s20
    %p24 = pneg %p18
    %p25 = scmp.eq.s32.totalorder %s9, 1
    %p26 = por %p24, %p25
    %p27 = scmp.ne.s32.totalorder %s19, %s22
    %p28 = scmp.eq.s32.totalorder %s9, 0
    %p29 = por %p27, %p28
    %p30 = scmp.ne.s32.totalorder %s19, %s22
    %p31 = scmp.eq.s32.totalorder %s14, 1
    %p32 = por %p30, %p31
    %p33 = scmp.ne.s32.totalorder %s22, %s23
    %p34 = scmp.eq.s32.totalorder %s14, 0
    %p35 = por %p33, %p34
    %p36 = scmp.ne.s32.totalorder %s22, %s23
    %p37 = scmp.eq.s32.totalorder %s15, 1
    %p38 = por %p36, %p37
    %p40 = scmp.ne.s32.totalorder %s23, %s39
    %p41 = scmp.eq.s32.totalorder %s15, 0
    %p42 = por %p40, %p41
    %s44 = sadd.s32 %s43, 1
    %p47 = scmp.eq.s32.totalorder %s9, 1
    %p48 = scmp.ne.s32.totalorder %s43, %s45
    %p49 = scmp.eq.s32.totalorder %s9, 0
    %p50 = por %p48, %p49
    %p51 = scmp.ne.s32.totalorder %s43, %s45
    %p52 = scmp.eq.s32.totalorder %s14, 1
    %p53 = por %p51, %p52
    %p54 = scmp.ne.s32.totalorder %s45, %s46
    %p55 = scmp.eq.s32.totalorder %s14, 0
    %p56 = por %p54, %p55
    %p57 = scmp.ne.s32.totalorder %s45, %s46
    %p58 = scmp.eq.s32.totalorder %s15, 1
    %p59 = por %p57, %p58
    %p61 = scmp.ne.s32.totalorder %s46, %s60
    %p62 = scmp.eq.s32.totalorder %s15, 0
    %p63 = por %p61, %p62
    %s65 = sadd.s32 %s64, 1
    %p68 = scmp.eq.s32.totalorder %s9, 1
    %p69 = scmp.ne.s32.totalorder %s64, %s66
    %p70 = scmp.eq.s32.totalorder %s9, 0
    %p71 = por %p69, %p70
    %p72 = scmp.ne.s32.totalorder %s64, %s66
    %p73 = scmp.eq.s32.totalorder %s14, 1
    %p74 = por %p72, %p73
    %p75 = scmp.ne.s32.totalorder %s66, %s67
    %p76 = scmp.eq.s32.totalorder %s14, 0
    %p77 = por %p75, %p76
    %p78 = scmp.ne.s32.totalorder %s66, %s67
    %p79 = scmp.eq.s32.totalorder %s15, 1
    %p80 = por %p78, %p79
    %p82 = scmp.ne.s32.totalorder %s67, %s81
    %p83 = scmp.eq.s32.totalorder %s15, 0
    %p84 = por %p82, %p83
    %s85 = ssub.s32 %s9, %s16
    %p86 = scmp.eq.s32.totalorder %s85, 0
    %s88 = sadd.s32 %s87, 1
    %s89 = scalar_select %p86, %s87, %s88
    %p92 = pneg %p86
    %p93 = scmp.eq.s32.totalorder %s9, 1
    %p94 = por %p92, %p93
    %p95 = scmp.ne.s32.totalorder %s87, %s90
    %p96 = scmp.eq.s32.totalorder %s9, 0
    %p97 = por %p95, %p96
    %p98 = scmp.ne.s32.totalorder %s87, %s90
    %p99 = scmp.eq.s32.totalorder %s14, 1
    %p100 = por %p98, %p99
    %p101 = scmp.ne.s32.totalorder %s90, %s91
    %p102 = scmp.eq.s32.totalorder %s14, 0
    %p103 = por %p101, %p102
    %p104 = scmp.ne.s32.totalorder %s90, %s91
    %p105 = scmp.eq.s32.totalorder %s15, 1
    %p106 = por %p104, %p105
    %p108 = scmp.ne.s32.totalorder %s91, %s107
    %p109 = scmp.eq.s32.totalorder %s15, 0
    %p110 = por %p108, %p109
    %p111 = scmp.le.s32.totalorder 1, %s9
    %p112 = scmp.lt.s32.totalorder %s9, 3
    %p113 = pnand %p111, %p112
    %p114 = pneg %p113
    // Predicated region
    $region9: #{spatial_pyramid_pooling.3} parent=5 // pred_check
      _
    $region10: #{spatial_pyramid_pooling.3} parent=5 // pred_check_branch
      %116 = sbr.rel (%p113) target = $region12
    $region11: #{spatial_pyramid_pooling.3} parent=5 // pred_region
      %s117 = ssub.s32 %s9, 1
      // Predicated region
      $region13: #{spatial_pyramid_pooling.3} parent=11 // pred_check
        %p118 = pneg %p56
      $region14: #{spatial_pyramid_pooling.3} parent=11 // pred_check_branch
        %120 = sbr.rel (%p118) target = $region16
      $region15: #{spatial_pyramid_pooling.3} parent=11 // pred_region
        _
      $region16: #{spatial_pyramid_pooling.3} parent=11 // pred_fallthru
        _
      // Predicated region
      $region17: #{spatial_pyramid_pooling.3} parent=11 // pred_check
        %p121 = pneg %p77
      $region18: #{spatial_pyramid_pooling.3} parent=11 // pred_check_branch
        %123 = sbr.rel (%p121) target = $region20
      $region19: #{spatial_pyramid_pooling.3} parent=11 // pred_region
        _
      $region20: #{spatial_pyramid_pooling.3} parent=11 // pred_fallthru
        _
    $region12: #{spatial_pyramid_pooling.3} parent=5 // pred_fallthru
      _
    %p124 = scmp.lt.s32.totalorder %s9, 2
    // Predicated region
    $region21: #{spatial_pyramid_pooling.3} parent=5 // pred_check
      %p125 = pneg %p124
    $region22: #{spatial_pyramid_pooling.3} parent=5 // pred_check_branch
      %127 = sbr.rel (%p125) target = $region24
    $region23: #{spatial_pyramid_pooling.3} parent=5 // pred_region
      // Predicated region
      $region25: #{spatial_pyramid_pooling.3} parent=23 // pred_check
        %p128 = pneg %p29
      $region26: #{spatial_pyramid_pooling.3} parent=23 // pred_check_branch
        %130 = sbr.rel (%p128) target = $region28
      $region27: #{spatial_pyramid_pooling.3} parent=23 // pred_region
        %s131 = smul.u32 32, %s9
        %p132 = scmp.lt.s32.totalorder %s131, 63
        %s133 = scalar_select %p132, %s131, 63
        %s134 = smul.addr %s133, 8
        %s135 = scalar_lea.vmem %s0, %s134
        %s136 = smul.u32 32, %s9
      $region28: #{spatial_pyramid_pooling.3} parent=23 // pred_fallthru
        _
    $region24: #{spatial_pyramid_pooling.3} parent=5 // pred_fallthru
      _
    %p137 = scmp.le.s32.totalorder 1, %s9
    %p138 = scmp.lt.s32.totalorder %s9, 3
    %p139 = pnand %p137, %p138
    %p140 = pneg %p139
    // Predicated region
    $region29: #{spatial_pyramid_pooling.3} parent=5 // pred_check
      _
    $region30: #{spatial_pyramid_pooling.3} parent=5 // pred_check_branch
      %142 = sbr.rel (%p139) target = $region32
    $region31: #{spatial_pyramid_pooling.3} parent=5 // pred_region
      %s143 = ssub.s32 %s9, 1
      %s144 = smul.u32 32, %s14
      %p145 = scmp.lt.s32.totalorder %s144, 63
      %s146 = scalar_select %p145, %s144, 63
      %s147 = smul.addr %s146, 8
      %s148 = scalar_lea.vmem %s0, %s147
      %p149 = pneg %p35
      %p150 = pneg %p32
      %p151 = pneg %p56
      %p152 = pneg %p53
      %p153 = pneg %p77
      %p154 = pneg %p74
      %p155 = pneg %p103
      %p156 = pneg %p100
      %s157 = smul.u32 32, %s14
      %p158 = scmp.lt.s32.totalorder %s157, 63
      %s159 = scalar_select %p158, %s157, 63
      %s160 = smul.addr %s159, 4
      %s161 = scalar_lea.vmem %s3, %s160
      %s162 = smul.u32 32, %s14
      %p163 = scmp.lt.s32.totalorder %s162, 63
      %s164 = scalar_select %p163, %s162, 63
      %s165 = smul.addr %s164, 8
      %s166 = scalar_lea.vmem %s0, %s165
      %s167 = smul.u32 32, %s14
      %s168 = smul.u32 32, %s14
      %p169 = scmp.lt.s32.totalorder %s168, 63
      %s170 = scalar_select %p169, %s168, 63
      %s171 = smul.addr %s170, 4
      %s172 = scalar_lea.vmem %s3, %s171
      %s173 = smul.u32 32, %s14
      %v175 = vld [vmem:[%s166] sm:$0xff]
      %v176 = vld [vmem:[%s166 + $0x8] sm:$0xff]
      %v177 = vld [vmem:[%s166 + $0x10] sm:$0xff]
      %v178 = vld [vmem:[%s166 + $0x18] sm:$0xff]
      %v179 = vld [vmem:[%s166 + $0x20] sm:$0xff]
      %v180 = vld [vmem:[%s166 + $0x28] sm:$0xff]
      %v181 = vld [vmem:[%s166 + $0x30] sm:$0xff]
      %v182 = vld [vmem:[%s166 + $0x38] sm:$0xff]
      %v183 = vld [vmem:[%s166 + $0x40] sm:$0xff]
      %v184 = vld [vmem:[%s166 + $0x48] sm:$0xff]
      %v185 = vld [vmem:[%s166 + $0x50] sm:$0xff]
      %v186 = vld [vmem:[%s166 + $0x58] sm:$0xff]
      %v187 = vld [vmem:[%s166 + $0x60] sm:$0xff]
      %v188 = vld [vmem:[%s166 + $0x68] sm:$0xff]
      %v189 = vld [vmem:[%s166 + $0x70] sm:$0xff]
      %v190 = vld [vmem:[%s166 + $0x78] sm:$0xff]
      %v191 = vld [vmem:[%s166 + $0x80] sm:$0xff]
      %v192 = vld [vmem:[%s166 + $0x88] sm:$0xff]
      %v193 = vld [vmem:[%s166 + $0x90] sm:$0xff]
      %v194 = vld [vmem:[%s166 + $0x98] sm:$0xff]
      %v195 = vld [vmem:[%s166 + $0xa0] sm:$0xff]
      %v196 = vld [vmem:[%s166 + $0xa8] sm:$0xff]
      %v197 = vld [vmem:[%s166 + $0xb0] sm:$0xff]
      %v198 = vld [vmem:[%s166 + $0xb8] sm:$0xff]
      %v199 = vld [vmem:[%s166 + $0xc0] sm:$0xff]
      %v200 = vld [vmem:[%s166 + $0xc8] sm:$0xff]
      %v201 = vld [vmem:[%s166 + $0xd0] sm:$0xff]
      %v202 = vld [vmem:[%s166 + $0xd8] sm:$0xff]
      %v203 = vld [vmem:[%s166 + $0xe0] sm:$0xff]
      %v204 = vld [vmem:[%s166 + $0xe8] sm:$0xff]
      %v205 = vld [vmem:[%s166 + $0xf0] sm:$0xff]
      %v206 = vld [vmem:[%s166 + $0xf8] sm:$0xff]
      %v207 = vld [vmem:[%s1] sm:$0x3]
      %v208 = vlaneseq
      %v209 = vshrl.u32 %v208, 7
      %v210 = vsub.s32 0, %v209
      %v211 = vrot.slane %v207, %v210
      %v212 = vmul.f32 %v175, %v211
      %v213 = vmul.f32 %v176, %v211
      %v214 = vmul.f32 %v177, %v211
      %v215 = vmul.f32 %v178, %v211
      %v216 = vmul.f32 %v179, %v211
      %v217 = vmul.f32 %v180, %v211
      %v218 = vmul.f32 %v181, %v211
      %v219 = vmul.f32 %v182, %v211
      %v220 = vmul.f32 %v183, %v211
      %v221 = vmul.f32 %v184, %v211
      %v222 = vmul.f32 %v185, %v211
      %v223 = vmul.f32 %v186, %v211
      %v224 = vmul.f32 %v187, %v211
      %v225 = vmul.f32 %v188, %v211
      %v226 = vmul.f32 %v189, %v211
      %v227 = vmul.f32 %v190, %v211
      %v228 = vmul.f32 %v191, %v211
      %v229 = vmul.f32 %v192, %v211
      %v230 = vmul.f32 %v193, %v211
      %v231 = vmul.f32 %v194, %v211
      %v232 = vmul.f32 %v195, %v211
      %v233 = vmul.f32 %v196, %v211
      %v234 = vmul.f32 %v197, %v211
      %v235 = vmul.f32 %v198, %v211
      %v236 = vmul.f32 %v199, %v211
      %v237 = vmul.f32 %v200, %v211
      %v238 = vmul.f32 %v201, %v211
      %v239 = vmul.f32 %v202, %v211
      %v240 = vmul.f32 %v203, %v211
      %v241 = vmul.f32 %v204, %v211
      %v242 = vmul.f32 %v205, %v211
      %v243 = vmul.f32 %v206, %v211
      %v244 = vlaneseq
      %v245 = vshrl.u32 %v244, 7
      %v246 = vsub.s32 1, %v245
      %v247 = vrot.slane %v207, %v246
      %v248 = vadd.f32 %v212, %v247
      %v249 = vadd.f32 %v213, %v247
      %v250 = vadd.f32 %v214, %v247
      %v251 = vadd.f32 %v215, %v247
      %v252 = vadd.f32 %v216, %v247
      %v253 = vadd.f32 %v217, %v247
      %v254 = vadd.f32 %v218, %v247
      %v255 = vadd.f32 %v219, %v247
      %v256 = vadd.f32 %v220, %v247
      %v257 = vadd.f32 %v221, %v247
      %v258 = vadd.f32 %v222, %v247
      %v259 = vadd.f32 %v223, %v247
      %v260 = vadd.f32 %v224, %v247
      %v261 = vadd.f32 %v225, %v247
      %v262 = vadd.f32 %v226, %v247
      %v263 = vadd.f32 %v227, %v247
      %v264 = vadd.f32 %v228, %v247
      %v265 = vadd.f32 %v229, %v247
      %v266 = vadd.f32 %v230, %v247
      %v267 = vadd.f32 %v231, %v247
      %v268 = vadd.f32 %v232, %v247
      %v269 = vadd.f32 %v233, %v247
      %v270 = vadd.f32 %v234, %v247
      %v271 = vadd.f32 %v235, %v247
      %v272 = vadd.f32 %v236, %v247
      %v273 = vadd.f32 %v237, %v247
      %v274 = vadd.f32 %v238, %v247
      %v275 = vadd.f32 %v239, %v247
      %v276 = vadd.f32 %v240, %v247
      %v277 = vadd.f32 %v241, %v247
      %v278 = vadd.f32 %v242, %v247
      %v279 = vadd.f32 %v243, %v247
      %v280 = vmax.f32 %v248, 0.0
      %v281 = vmax.f32 %v249, 0.0
      %v282 = vmax.f32 %v250, 0.0
      %v283 = vmax.f32 %v251, 0.0
      %v284 = vmax.f32 %v252, 0.0
      %v285 = vmax.f32 %v253, 0.0
      %v286 = vmax.f32 %v254, 0.0
      %v287 = vmax.f32 %v255, 0.0
      %v288 = vmax.f32 %v256, 0.0
      %v289 = vmax.f32 %v257, 0.0
      %v290 = vmax.f32 %v258, 0.0
      %v291 = vmax.f32 %v259, 0.0
      %v292 = vmax.f32 %v260, 0.0
      %v293 = vmax.f32 %v261, 0.0
      %v294 = vmax.f32 %v262, 0.0
      %v295 = vmax.f32 %v263, 0.0
      %v296 = vmax.f32 %v264, 0.0
      %v297 = vmax.f32 %v265, 0.0
      %v298 = vmax.f32 %v266, 0.0
      %v299 = vmax.f32 %v267, 0.0
      %v300 = vmax.f32 %v268, 0.0
      %v301 = vmax.f32 %v269, 0.0
      %v302 = vmax.f32 %v270, 0.0
      %v303 = vmax.f32 %v271, 0.0
      %v304 = vmax.f32 %v272, 0.0
      %v305 = vmax.f32 %v273, 0.0
      %v306 = vmax.f32 %v274, 0.0
      %v307 = vmax.f32 %v275, 0.0
      %v308 = vmax.f32 %v276, 0.0
      %v309 = vmax.f32 %v277, 0.0
      %v310 = vmax.f32 %v278, 0.0
      %v311 = vmax.f32 %v279, 0.0
      %v312 = vpack.c.bf16 %v281, %v280
      %v313 = vpack.c.bf16 %v283, %v282
      %v314 = vpack.c.bf16 %v285, %v284
      %v315 = vpack.c.bf16 %v287, %v286
      %v316 = vpack.c.bf16 %v289, %v288
      %v317 = vpack.c.bf16 %v291, %v290
      %v318 = vpack.c.bf16 %v293, %v292
      %v319 = vpack.c.bf16 %v295, %v294
      %v320 = vpack.c.bf16 %v297, %v296
      %v321 = vpack.c.bf16 %v299, %v298
      %v322 = vpack.c.bf16 %v301, %v300
      %v323 = vpack.c.bf16 %v303, %v302
      %v324 = vpack.c.bf16 %v305, %v304
      %v325 = vpack.c.bf16 %v307, %v306
      %v326 = vpack.c.bf16 %v309, %v308
      %v327 = vpack.c.bf16 %v311, %v310
      %v328 = vld [vmem:[%s2] sm:$0x3]
      %vm329 = vcmask 31744
      %v331 = vsel %vm329, %v312, 0
      %v334 = vsel %vm329, %v313, 0
      %v337 = vsel %vm329, %v314, 0
      %v340 = vsel %vm329, %v315, 0
      %v343 = vsel %vm329, %v316, 0
      %v346 = vsel %vm329, %v317, 0
      %v349 = vsel %vm329, %v318, 0
      %v352 = vsel %vm329, %v319, 0
      %v355 = vsel %vm329, %v320, 0
      %v358 = vsel %vm329, %v321, 0
      %v361 = vsel %vm329, %v322, 0
      %v364 = vsel %vm329, %v323, 0
      %v367 = vsel %vm329, %v324, 0
      %v370 = vsel %vm329, %v325, 0
      %v373 = vsel %vm329, %v326, 0
      %v376 = vsel %vm329, %v327, 0
      %vm378 = vcmask 1041408
      %v380 = vsel %vm378, %v328, 0
      %382 = vmatprep.subr.bf16.mxu0 0
      %383 = vmatpush1.bf16.msra.mxu0 %v380
      %384 = vmatprep.subr.bf16.mxu0 0
      %385 = vmatpush1.bf16.msra.mxu0 0
      %386 = vmatprep.subr.bf16.mxu0 0
      %387 = vmatpush1.bf16.msra.mxu0 0
      %388 = vmatprep.subr.bf16.mxu0 0
      %389 = vmatpush1.bf16.msra.mxu0 0
      %390 = vmatprep.subr.bf16.mxu0 0
      %391 = vmatpush1.bf16.msra.mxu0 0
      %392 = vmatprep.subr.bf16.mxu0 0
      %393 = vmatpush1.bf16.msra.mxu0 0
      %394 = vmatprep.subr.bf16.mxu0 0
      %395 = vmatpush1.bf16.msra.mxu0 0
      %396 = vmatprep.subr.bf16.mxu0 0
      %397 = vmatpush1.bf16.msra.mxu0 0
      %398 = vmatprep.subr.bf16.mxu0 0
      %399 = vmatpush1.bf16.msra.mxu0 0
      %400 = vmatprep.subr.bf16.mxu0 0
      %401 = vmatpush1.bf16.msra.mxu0 0
      %402 = vmatprep.subr.bf16.mxu0 0
      %403 = vmatpush1.bf16.msra.mxu0 0
      %404 = vmatprep.subr.bf16.mxu0 0
      %405 = vmatpush1.bf16.msra.mxu0 0
      %406 = vmatprep.subr.bf16.mxu0 0
      %407 = vmatpush1.bf16.msra.mxu0 0
      %408 = vmatprep.subr.bf16.mxu0 0
      %409 = vmatpush1.bf16.msra.mxu0 0
      %410 = vmatprep.subr.bf16.mxu0 0
      %411 = vmatpush1.bf16.msra.mxu0 0
      %412 = vmatprep.subr.bf16.mxu0 0
      %413 = vmatpush1.bf16.msra.mxu0 0
      %414 = vmatprep.mubr.bf16.mxu0 0
      %415 = vmatmul.mubr.bf16.gmra.mrb[0].mxu0 %v331
      %v416 = vpop.f32.mrb[0].mxu0
      %v417 = vadd.f32 0.0, %v416
      %v418 = vpop.f32.mrb[0].mxu0
      %v419 = vpop.f32.mrb[0].mxu0
      %v420 = vadd.f32 0.0, %v419
      %v421 = vpop.f32.mrb[0].mxu0
      %422 = vmatprep.mubr.bf16.mxu0 0
      %423 = vmatmul.mubr.bf16.gmra.mrb[0].mxu0 %v334
      %v424 = vpop.f32.mrb[0].mxu0
      %v425 = vadd.f32 0.0, %v424
      %v426 = vpop.f32.mrb[0].mxu0
      %v427 = vpop.f32.mrb[0].mxu0
      %v428 = vadd.f32 0.0, %v427
      %v429 = vpop.f32.mrb[0].mxu0
      %430 = vmatprep.mubr.bf16.mxu0 0
      %431 = vmatmul.mubr.bf16.gmra.mrb[0].mxu0 %v337
      %v432 = vpop.f32.mrb[0].mxu0
      %v433 = vadd.f32 0.0, %v432
      %v434 = vpop.f32.mrb[0].mxu0
      %v435 = vpop.f32.mrb[0].mxu0
      %v436 = vadd.f32 0.0, %v435
      %v437 = vpop.f32.mrb[0].mxu0
      %438 = vmatprep.mubr.bf16.mxu0 0
      %439 = vmatmul.mubr.bf16.gmra.mrb[0].mxu0 %v340
      %v440 = vpop.f32.mrb[0].mxu0
      %v441 = vadd.f32 0.0, %v440
      %v442 = vpop.f32.mrb[0].mxu0
      %v443 = vpop.f32.mrb[0].mxu0
      %v444 = vadd.f32 0.0, %v443
      %v445 = vpop.f32.mrb[0].mxu0
      %446 = vmatprep.mubr.bf16.mxu0 0
      %447 = vmatmul.mubr.bf16.gmra.mrb[0].mxu0 %v343
      %v448 = vpop.f32.mrb[0].mxu0
      %v449 = vadd.f32 0.0, %v448
      %v450 = vpop.f32.mrb[0].mxu0
      %v451 = vpop.f32.mrb[0].mxu0
      %v452 = vadd.f32 0.0, %v451
      %v453 = vpop.f32.mrb[0].mxu0
      %454 = vmatprep.mubr.bf16.mxu0 0
      %455 = vmatmul.mubr.bf16.gmra.mrb[0].mxu0 %v346
      %v456 = vpop.f32.mrb[0].mxu0
      %v457 = vadd.f32 0.0, %v456
      %v458 = vpop.f32.mrb[0].mxu0
      %v459 = vpop.f32.mrb[0].mxu0
      %v460 = vadd.f32 0.0, %v459
      %v461 = vpop.f32.mrb[0].mxu0
      %462 = vmatprep.mubr.bf16.mxu0 0
      %463 = vmatmul.mubr.bf16.gmra.mrb[0].mxu0 %v349
      %v464 = vpop.f32.mrb[0].mxu0
      %v465 = vadd.f32 0.0, %v464
      %v466 = vpop.f32.mrb[0].mxu0
      %v467 = vpop.f32.mrb[0].mxu0
      %v468 = vadd.f32 0.0, %v467
      %v469 = vpop.f32.mrb[0].mxu0
      %470 = vmatprep.mubr.bf16.mxu0 0
      %471 = vmatmul.mubr.bf16.gmra.mrb[0].mxu0 %v352
      %v472 = vpop.f32.mrb[0].mxu0
      %v473 = vadd.f32 0.0, %v472
      %v474 = vpop.f32.mrb[0].mxu0
      %v475 = vpop.f32.mrb[0].mxu0
      %v476 = vadd.f32 0.0, %v475
      %v477 = vpop.f32.mrb[0].mxu0
      %478 = vmatprep.mubr.bf16.mxu0 0
      %479 = vmatmul.mubr.bf16.gmra.mrb[0].mxu0 %v355
      %v480 = vpop.f32.mrb[0].mxu0
      %v481 = vadd.f32 0.0, %v480
      %v482 = vpop.f32.mrb[0].mxu0
      %v483 = vpop.f32.mrb[0].mxu0
      %v484 = vadd.f32 0.0, %v483
      %v485 = vpop.f32.mrb[0].mxu0
      %486 = vmatprep.mubr.bf16.mxu0 0
      %487 = vmatmul.mubr.bf16.gmra.mrb[0].mxu0 %v358
      %v488 = vpop.f32.mrb[0].mxu0
      %v489 = vadd.f32 0.0, %v488
      %v490 = vpop.f32.mrb[0].mxu0
      %v491 = vpop.f32.mrb[0].mxu0
      %v492 = vadd.f32 0.0, %v491
      %v493 = vpop.f32.mrb[0].mxu0
      %494 = vmatprep.mubr.bf16.mxu0 0
      %495 = vmatmul.mubr.bf16.gmra.mrb[0].mxu0 %v361
      %v496 = vpop.f32.mrb[0].mxu0
      %v497 = vadd.f32 0.0, %v496
      %v498 = vpop.f32.mrb[0].mxu0
      %v499 = vpop.f32.mrb[0].mxu0
      %v500 = vadd.f32 0.0, %v499
      %v501 = vpop.f32.mrb[0].mxu0
      %502 = vmatprep.mubr.bf16.mxu0 0
      %503 = vmatmul.mubr.bf16.gmra.mrb[0].mxu0 %v364
      %v504 = vpop.f32.mrb[0].mxu0
      %v505 = vadd.f32 0.0, %v504
      %v506 = vpop.f32.mrb[0].mxu0
      %v507 = vpop.f32.mrb[0].mxu0
      %v508 = vadd.f32 0.0, %v507
      %v509 = vpop.f32.mrb[0].mxu0
      %510 = vmatprep.mubr.bf16.mxu0 0
      %511 = vmatmul.mubr.bf16.gmra.mrb[0].mxu0 %v367
      %v512 = vpop.f32.mrb[0].mxu0
      %v513 = vadd.f32 0.0, %v512
      %v514 = vpop.f32.mrb[0].mxu0
      %v515 = vpop.f32.mrb[0].mxu0
      %v516 = vadd.f32 0.0, %v515
      %v517 = vpop.f32.mrb[0].mxu0
      %518 = vmatprep.mubr.bf16.mxu0 0
      %519 = vmatmul.mubr.bf16.gmra.mrb[0].mxu0 %v370
      %v520 = vpop.f32.mrb[0].mxu0
      %v521 = vadd.f32 0.0, %v520
      %v522 = vpop.f32.mrb[0].mxu0
      %v523 = vpop.f32.mrb[0].mxu0
      %v524 = vadd.f32 0.0, %v523
      %v525 = vpop.f32.mrb[0].mxu0
      %526 = vmatprep.mubr.bf16.mxu0 0
      %527 = vmatmul.mubr.bf16.gmra.mrb[0].mxu0 %v373
      %v528 = vpop.f32.mrb[0].mxu0
      %v529 = vadd.f32 0.0, %v528
      %v530 = vpop.f32.mrb[0].mxu0
      %v531 = vpop.f32.mrb[0].mxu0
      %v532 = vadd.f32 0.0, %v531
      %v533 = vpop.f32.mrb[0].mxu0
      %534 = vmatprep.mubr.bf16.mxu0 0
      %535 = vmatmul.mubr.bf16.gmra.mrb[0].mxu0 %v376
      %v536 = vpop.f32.mrb[0].mxu0
      %v537 = vadd.f32 0.0, %v536
      %v538 = vpop.f32.mrb[0].mxu0
      %v539 = vpop.f32.mrb[0].mxu0
      %v540 = vadd.f32 0.0, %v539
      %v541 = vpop.f32.mrb[0].mxu0
      %542 = vdwg.mxu0
      %v543 = vpack.c.bf16 %v420, %v417
      %v544 = vpack.c.bf16 %v428, %v425
      %v545 = vpack.c.bf16 %v436, %v433
      %v546 = vpack.c.bf16 %v444, %v441
      %v547 = vpack.c.bf16 %v452, %v449
      %v548 = vpack.c.bf16 %v460, %v457
      %v549 = vpack.c.bf16 %v468, %v465
      %v550 = vpack.c.bf16 %v476, %v473
      %v551 = vpack.c.bf16 %v484, %v481
      %v552 = vpack.c.bf16 %v492, %v489
      %v553 = vpack.c.bf16 %v500, %v497
      %v554 = vpack.c.bf16 %v508, %v505
      %v555 = vpack.c.bf16 %v516, %v513
      %v556 = vpack.c.bf16 %v524, %v521
      %v557 = vpack.c.bf16 %v532, %v529
      %v558 = vpack.c.bf16 %v540, %v537
      %v575 = vunpack.c.l.b16 %v543
      %v576 = vunpack.c.h.b16 %v543
      %v577 = vunpack.c.l.b16 %v544
      %v578 = vunpack.c.h.b16 %v544
      %v579 = vunpack.c.l.b16 %v545
      %v580 = vunpack.c.h.b16 %v545
      %v581 = vunpack.c.l.b16 %v546
      %v582 = vunpack.c.h.b16 %v546
      %v583 = vunpack.c.l.b16 %v547
      %v584 = vunpack.c.h.b16 %v547
      %v585 = vunpack.c.l.b16 %v548
      %v586 = vunpack.c.h.b16 %v548
      %v587 = vunpack.c.l.b16 %v549
      %v588 = vunpack.c.h.b16 %v549
      %v589 = vunpack.c.l.b16 %v550
      %v590 = vunpack.c.h.b16 %v550
      %v591 = vunpack.c.l.b16 %v551
      %v592 = vunpack.c.h.b16 %v551
      %v593 = vunpack.c.l.b16 %v552
      %v594 = vunpack.c.h.b16 %v552
      %v595 = vunpack.c.l.b16 %v553
      %v596 = vunpack.c.h.b16 %v553
      %v597 = vunpack.c.l.b16 %v554
      %v598 = vunpack.c.h.b16 %v554
      %v599 = vunpack.c.l.b16 %v555
      %v600 = vunpack.c.h.b16 %v555
      %v601 = vunpack.c.l.b16 %v556
      %v602 = vunpack.c.h.b16 %v556
      %v603 = vunpack.c.l.b16 %v557
      %v604 = vunpack.c.h.b16 %v557
      %v605 = vunpack.c.l.b16 %v558
      %v606 = vunpack.c.h.b16 %v558
      %v607 = vpack.c.b16 %v575, %v575
      %v608 = vpack.c.b16 %v576, %v576
      %v609 = vpack.c.b16 %v577, %v577
      %v610 = vpack.c.b16 %v578, %v578
      %v611 = vpack.c.b16 %v579, %v579
      %v612 = vpack.c.b16 %v580, %v580
      %v613 = vpack.c.b16 %v581, %v581
      %v614 = vpack.c.b16 %v582, %v582
      %v615 = vpack.c.b16 %v583, %v583
      %v616 = vpack.c.b16 %v584, %v584
      %v617 = vpack.c.b16 %v585, %v585
      %v618 = vpack.c.b16 %v586, %v586
      %v619 = vpack.c.b16 %v587, %v587
      %v620 = vpack.c.b16 %v588, %v588
      %v621 = vpack.c.b16 %v589, %v589
      %v622 = vpack.c.b16 %v590, %v590
      %v623 = vpack.c.b16 %v591, %v591
      %v624 = vpack.c.b16 %v592, %v592
      %v625 = vpack.c.b16 %v593, %v593
      %v626 = vpack.c.b16 %v594, %v594
      %v627 = vpack.c.b16 %v595, %v595
      %v628 = vpack.c.b16 %v596, %v596
      %v629 = vpack.c.b16 %v597, %v597
      %v630 = vpack.c.b16 %v598, %v598
      %v631 = vpack.c.b16 %v599, %v599
      %v632 = vpack.c.b16 %v600, %v600
      %v633 = vpack.c.b16 %v601, %v601
      %v634 = vpack.c.b16 %v602, %v602
      %v635 = vpack.c.b16 %v603, %v603
      %v636 = vpack.c.b16 %v604, %v604
      %v637 = vpack.c.b16 %v605, %v605
      %v638 = vpack.c.b16 %v606, %v606
      %vm671 = vcmask 257024
      %672 = vst.msk [vmem:[%s172] sm:$0xf] %vm671, %v607
      %673 = vst.msk [vmem:[%s172 + $0x4] sm:$0xf] %vm671, %v608
      %674 = vst.msk [vmem:[%s172 + $0x8] sm:$0xf] %vm671, %v609
      %675 = vst.msk [vmem:[%s172 + $0xc] sm:$0xf] %vm671, %v610
      %676 = vst.msk [vmem:[%s172 + $0x10] sm:$0xf] %vm671, %v611
      %677 = vst.msk [vmem:[%s172 + $0x14] sm:$0xf] %vm671, %v612
      %678 = vst.msk [vmem:[%s172 + $0x18] sm:$0xf] %vm671, %v613
      %679 = vst.msk [vmem:[%s172 + $0x1c] sm:$0xf] %vm671, %v614
      %680 = vst.msk [vmem:[%s172 + $0x20] sm:$0xf] %vm671, %v615
      %681 = vst.msk [vmem:[%s172 + $0x24] sm:$0xf] %vm671, %v616
      %682 = vst.msk [vmem:[%s172 + $0x28] sm:$0xf] %vm671, %v617
      %683 = vst.msk [vmem:[%s172 + $0x2c] sm:$0xf] %vm671, %v618
      %684 = vst.msk [vmem:[%s172 + $0x30] sm:$0xf] %vm671, %v619
      %685 = vst.msk [vmem:[%s172 + $0x34] sm:$0xf] %vm671, %v620
      %686 = vst.msk [vmem:[%s172 + $0x38] sm:$0xf] %vm671, %v621
      %687 = vst.msk [vmem:[%s172 + $0x3c] sm:$0xf] %vm671, %v622
      %688 = vst.msk [vmem:[%s172 + $0x40] sm:$0xf] %vm671, %v623
      %689 = vst.msk [vmem:[%s172 + $0x44] sm:$0xf] %vm671, %v624
      %690 = vst.msk [vmem:[%s172 + $0x48] sm:$0xf] %vm671, %v625
      %691 = vst.msk [vmem:[%s172 + $0x4c] sm:$0xf] %vm671, %v626
      %692 = vst.msk [vmem:[%s172 + $0x50] sm:$0xf] %vm671, %v627
      %693 = vst.msk [vmem:[%s172 + $0x54] sm:$0xf] %vm671, %v628
      %694 = vst.msk [vmem:[%s172 + $0x58] sm:$0xf] %vm671, %v629
      %695 = vst.msk [vmem:[%s172 + $0x5c] sm:$0xf] %vm671, %v630
      %696 = vst.msk [vmem:[%s172 + $0x60] sm:$0xf] %vm671, %v631
      %697 = vst.msk [vmem:[%s172 + $0x64] sm:$0xf] %vm671, %v632
      %698 = vst.msk [vmem:[%s172 + $0x68] sm:$0xf] %vm671, %v633
      %699 = vst.msk [vmem:[%s172 + $0x6c] sm:$0xf] %vm671, %v634
      %700 = vst.msk [vmem:[%s172 + $0x70] sm:$0xf] %vm671, %v635
      %701 = vst.msk [vmem:[%s172 + $0x74] sm:$0xf] %vm671, %v636
      %702 = vst.msk [vmem:[%s172 + $0x78] sm:$0xf] %vm671, %v637
      %703 = vst.msk [vmem:[%s172 + $0x7c] sm:$0xf] %vm671, %v638
      %s704 = smul.u32 32, %s14
      %p705 = scmp.lt.s32.totalorder %s704, 63
      %s706 = scalar_select %p705, %s704, 63
      %s707 = smul.addr %s706, 4
      %s708 = scalar_lea.vmem %s3, %s707
      // Predicated region
      $region33: #{spatial_pyramid_pooling.3} parent=31 // pred_check
        %p709 = pneg %p100
      $region34: #{spatial_pyramid_pooling.3} parent=31 // pred_check_branch
        %711 = sbr.rel (%p709) target = $region36
      $region35: #{spatial_pyramid_pooling.3} parent=31 // pred_region
        %s712 = smul.u32 32, %s14
      $region36: #{spatial_pyramid_pooling.3} parent=31 // pred_fallthru
        _
    $region32: #{spatial_pyramid_pooling.3} parent=5 // pred_fallthru
      _
    %p713 = scmp.le.s32.totalorder 2, %s9
    // Predicated region
    $region37: #{spatial_pyramid_pooling.3} parent=5 // pred_check
      %p714 = pneg %p713
    $region38: #{spatial_pyramid_pooling.3} parent=5 // pred_check_branch
      %716 = sbr.rel (%p714) target = $region40
    $region39: #{spatial_pyramid_pooling.3} parent=5 // pred_region
      %s717 = ssub.s32 %s9, 2
      // Predicated region
      $region41: #{spatial_pyramid_pooling.3} parent=39 // pred_check
        %p718 = pneg %p106
      $region42: #{spatial_pyramid_pooling.3} parent=39 // pred_check_branch
        %720 = sbr.rel (%p718) target = $region44
      $region43: #{spatial_pyramid_pooling.3} parent=39 // pred_region
        %s721 = smul.u32 32, %s15
        %p722 = scmp.lt.s32.totalorder %s721, 63
        %s723 = scalar_select %p722, %s721, 63
        %s724 = smul.addr %s723, 4
        %s725 = scalar_lea.vmem %s3, %s724
      $region44: #{spatial_pyramid_pooling.3} parent=39 // pred_fallthru
        _
    $region40: #{spatial_pyramid_pooling.3} parent=5 // pred_fallthru
      _
  $region6: #{spatial_pyramid_pooling.3} parent=0 // loop_footer
    %s13 = sadd.s32 1, %s9
  $region7: #{spatial_pyramid_pooling.3} parent=0 // loop_footer_branch
    %8 = sbr.rel target = $region3
  $region8: #{spatial_pyramid_pooling.3} parent=0 // loop_exit
    _

// kernel: squeeze.5
$region0: #{squeeze.5}
  %s0 = inlined_call_operand.vmem [shape: bf16[1,18,16], index: 0, kind: input, shape index: {}]
  %s1 = inlined_call_operand.vmem [shape: bf16[2,3,3,16], index: 1, kind: output, shape index: {}]
  $region1: #{squeeze.5} parent=0
    #allocation0 [shape = 'u8[24576]{0}', space=vmem, size = 0x6000, scoped, tag = 'scoped mem for output reshape']
    #allocation1 [shape = 'u8[12288]{0}', space=vmem, size = 0x3000, scoped, tag = 'scoped mem for input reshape']
    %s3 = smul.u32 4, 2
    %s4 = sshllo.u32 0, %s3
    %s5 = smul.addr 4, 2
    %s6 = scalar_lea.vmem %s0, %s5
    %s7 = sshrl.u32 %s4, 1
    %s8 = sor.u32 %s4, %s7
    %s9 = sand.u32 %s8, 85
    %s10 = sshrl.u32 %s9, 1
    %s11 = sor.u32 %s9, %s10
    %s12 = sand.u32 51, %s11
    %s13 = sshrl.u32 %s12, 2
    %s14 = sor.u32 %s12, %s13
    %s15 = sand.u32 15, %s14
    %v16 = vld [vmem:[%s6] sm:%s15]
    %v17 = vunpack.c.l.bf16 %v16
    %v18 = vunpack.c.h.bf16 %v16
    %s19 = scalar_lea.vmem [#allocation1], 16
    %20 = vst [vmem:[%s19] sm:%s4] %v17
    %s21 = scalar_lea.vmem %s0, 4
    %s22 = sshrl.u32 %s4, 1
    %s23 = sor.u32 %s4, %s22
    %s24 = sand.u32 %s23, 85
    %s25 = sshrl.u32 %s24, 1
    %s26 = sor.u32 %s24, %s25
    %s27 = sand.u32 51, %s26
    %s28 = sshrl.u32 %s27, 2
    %s29 = sor.u32 %s27, %s28
    %s30 = sand.u32 15, %s29
    %v31 = vld [vmem:[%s21] sm:%s30]
    %v32 = vunpack.c.l.bf16 %v31
    %v33 = vunpack.c.h.bf16 %v31
    %s34 = scalar_lea.vmem [#allocation1], 8
    %35 = vst [vmem:[%s34] sm:%s4] %v32
    %s36 = sshrl.u32 %s4, 1
    %s37 = sor.u32 %s4, %s36
    %s38 = sand.u32 %s37, 85
    %s39 = sshrl.u32 %s38, 1
    %s40 = sor.u32 %s38, %s39
    %s41 = sand.u32 51, %s40
    %s42 = sshrl.u32 %s41, 2
    %s43 = sor.u32 %s41, %s42
    %s44 = sand.u32 15, %s43
    %v45 = vld [vmem:[%s0] sm:%s44]
    %v46 = vunpack.c.l.bf16 %v45
    %v47 = vunpack.c.h.bf16 %v45
    %48 = vst [vmem:[#allocation1] sm:%s4] %v46
    %v49 = vld [vmem:[#allocation1] sm:$0xff]
    %vm50 = vcmask 130048
    %51 = vst.msk [vmem:[#allocation0] sm:$0x7] %vm50, %v49
    %s52 = scalar_lea.vmem [#allocation0], 5
    %53 = vst.msk [vmem:[%s52] sm:$0x38] %vm50, %v49
    %s54 = scalar_lea.vmem [#allocation0], 10
    %55 = vst.msk [vmem:[%s54] sm:$0xc0] %vm50, %v49
    %s56 = scalar_lea.vmem [#allocation1], 8
    %v57 = vld [vmem:[%s56] sm:$0xff]
    %vm58 = vcmask 130048
    %s59 = scalar_lea.vmem [#allocation0], 18
    %60 = vst.msk [vmem:[%s59] ss:$6 sm:$0x3] %vm58, %v57
    %s61 = scalar_lea.vmem [#allocation0], 23
    %62 = vst.msk [vmem:[%s61] sm:$0xc] %vm58, %v57
    %s63 = scalar_lea.vmem [#allocation0], 28
    %64 = vst.msk [vmem:[%s63] sm:$0x70] %vm58, %v57
    %s65 = scalar_lea.vmem [#allocation0], 33
    %66 = vst.msk [vmem:[%s65] sm:$0x80] %vm58, %v57
    %s67 = scalar_lea.vmem [#allocation1], 16
    %v68 = vld [vmem:[%s67] sm:$0x3]
    %vm69 = vcmask 130048
    %s70 = scalar_lea.vmem [#allocation0], 41
    %71 = vst.msk [vmem:[%s70] sm:$0x3] %vm69, %v68
    %s73 = smul.u32 2, 2
    %s74 = sshllo.u32 0, %s73
    %s75 = sshrl.u32 %s73, 1
    %v76 = vld [vmem:[#allocation0] sm:%s74]
    %v77 = vpack.c.bf16 0.0, %v76
    %s78 = sshllo.u32 0, %s75
    %79 = vst [vmem:[%s1] sm:%s78] %v77
    %s80 = scalar_lea.vmem [#allocation0], 8
    %v81 = vld [vmem:[%s80] sm:%s74]
    %v82 = vpack.c.bf16 0.0, %v81
    %s83 = sshllo.u32 0, %s75
    %s84 = scalar_lea.vmem %s1, 2
    %85 = vst [vmem:[%s84] sm:%s83] %v82
    %s86 = scalar_lea.vmem [#allocation0], 16
    %v87 = vld [vmem:[%s86] sm:%s74]
    %v88 = vpack.c.bf16 0.0, %v87
    %s89 = sshllo.u32 0, %s75
    %s90 = smul.addr 2, 2
    %s91 = scalar_lea.vmem %s1, %s90
    %92 = vst [vmem:[%s91] sm:%s89] %v88
    %s93 = scalar_lea.vmem [#allocation0], 24
    %v94 = vld [vmem:[%s93] sm:%s74]
    %v95 = vpack.c.bf16 0.0, %v94
    %s96 = sshllo.u32 0, %s75
    %s97 = smul.addr 2, 3
    %s98 = scalar_lea.vmem %s1, %s97
    %99 = vst [vmem:[%s98] sm:%s96] %v95
    %s100 = scalar_lea.vmem [#allocation0], 32
    %v101 = vld [vmem:[%s100] sm:%s74]
    %v102 = vpack.c.bf16 0.0, %v101
    %s103 = sshllo.u32 0, %s75
    %s104 = smul.addr 2, 4
    %s105 = scalar_lea.vmem %s1, %s104
    %106 = vst [vmem:[%s105] sm:%s103] %v102
    %s107 = scalar_lea.vmem [#allocation0], 40
    %v108 = vld [vmem:[%s107] sm:%s74]
    %v109 = vpack.c.bf16 0.0, %v108
    %s110 = sshllo.u32 0, %s75
    %s111 = smul.addr 2, 5
    %s112 = scalar_lea.vmem %s1, %s111
    %113 = vst [vmem:[%s112] sm:%s110] %v109

// kernel: squeeze.4
$region0: #{squeeze.4}
  %s0 = inlined_call_operand.vmem [shape: bf16[1,72,16], index: 0, kind: input, shape index: {}]
  %s1 = inlined_call_operand.vmem [shape: bf16[2,6,6,16], index: 1, kind: output, shape index: {}]
  $region1: #{squeeze.4} parent=0
    #allocation0 [shape = 'u8[49152]{0}', space=vmem, size = 0xc000, scoped, tag = 'scoped mem for output reshape']
    #allocation1 [shape = 'u8[36864]{0}', space=vmem, size = 0x9000, scoped, tag = 'scoped mem for input reshape']
    %s3 = smul.u32 4, 2
    %s4 = sshllo.u32 0, %s3
    %s5 = smul.addr 4, 8
    %s6 = scalar_lea.vmem %s0, %s5
    %s7 = sshrl.u32 %s4, 1
    %s8 = sor.u32 %s4, %s7
    %s9 = sand.u32 %s8, 85
    %s10 = sshrl.u32 %s9, 1
    %s11 = sor.u32 %s9, %s10
    %s12 = sand.u32 51, %s11
    %s13 = sshrl.u32 %s12, 2
    %s14 = sor.u32 %s12, %s13
    %s15 = sand.u32 15, %s14
    %v16 = vld [vmem:[%s6] sm:%s15]
    %v17 = vunpack.c.l.bf16 %v16
    %v18 = vunpack.c.h.bf16 %v16
    %s19 = scalar_lea.vmem [#allocation1], 64
    %20 = vst [vmem:[%s19] sm:%s4] %v17
    %s21 = smul.addr 4, 7
    %s22 = scalar_lea.vmem %s0, %s21
    %s23 = sshrl.u32 %s4, 1
    %s24 = sor.u32 %s4, %s23
    %s25 = sand.u32 %s24, 85
    %s26 = sshrl.u32 %s25, 1
    %s27 = sor.u32 %s25, %s26
    %s28 = sand.u32 51, %s27
    %s29 = sshrl.u32 %s28, 2
    %s30 = sor.u32 %s28, %s29
    %s31 = sand.u32 15, %s30
    %v32 = vld [vmem:[%s22] sm:%s31]
    %v33 = vunpack.c.l.bf16 %v32
    %v34 = vunpack.c.h.bf16 %v32
    %s35 = scalar_lea.vmem [#allocation1], 56
    %36 = vst [vmem:[%s35] sm:%s4] %v33
    %s37 = smul.addr 4, 6
    %s38 = scalar_lea.vmem %s0, %s37
    %s39 = sshrl.u32 %s4, 1
    %s40 = sor.u32 %s4, %s39
    %s41 = sand.u32 %s40, 85
    %s42 = sshrl.u32 %s41, 1
    %s43 = sor.u32 %s41, %s42
    %s44 = sand.u32 51, %s43
    %s45 = sshrl.u32 %s44, 2
    %s46 = sor.u32 %s44, %s45
    %s47 = sand.u32 15, %s46
    %v48 = vld [vmem:[%s38] sm:%s47]
    %v49 = vunpack.c.l.bf16 %v48
    %v50 = vunpack.c.h.bf16 %v48
    %s51 = scalar_lea.vmem [#allocation1], 48
    %52 = vst [vmem:[%s51] sm:%s4] %v49
    %s53 = smul.addr 4, 5
    %s54 = scalar_lea.vmem %s0, %s53
    %s55 = sshrl.u32 %s4, 1
    %s56 = sor.u32 %s4, %s55
    %s57 = sand.u32 %s56, 85
    %s58 = sshrl.u32 %s57, 1
    %s59 = sor.u32 %s57, %s58
    %s60 = sand.u32 51, %s59
    %s61 = sshrl.u32 %s60, 2
    %s62 = sor.u32 %s60, %s61
    %s63 = sand.u32 15, %s62
    %v64 = vld [vmem:[%s54] sm:%s63]
    %v65 = vunpack.c.l.bf16 %v64
    %v66 = vunpack.c.h.bf16 %v64
    %s67 = scalar_lea.vmem [#allocation1], 40
    %68 = vst [vmem:[%s67] sm:%s4] %v65
    %s69 = smul.addr 4, 4
    %s70 = scalar_lea.vmem %s0, %s69
    %s71 = sshrl.u32 %s4, 1
    %s72 = sor.u32 %s4, %s71
    %s73 = sand.u32 %s72, 85
    %s74 = sshrl.u32 %s73, 1
    %s75 = sor.u32 %s73, %s74
    %s76 = sand.u32 51, %s75
    %s77 = sshrl.u32 %s76, 2
    %s78 = sor.u32 %s76, %s77
    %s79 = sand.u32 15, %s78
    %v80 = vld [vmem:[%s70] sm:%s79]
    %v81 = vunpack.c.l.bf16 %v80
    %v82 = vunpack.c.h.bf16 %v80
    %s83 = scalar_lea.vmem [#allocation1], 32
    %84 = vst [vmem:[%s83] sm:%s4] %v81
    %s85 = smul.addr 4, 3
    %s86 = scalar_lea.vmem %s0, %s85
    %s87 = sshrl.u32 %s4, 1
    %s88 = sor.u32 %s4, %s87
    %s89 = sand.u32 %s88, 85
    %s90 = sshrl.u32 %s89, 1
    %s91 = sor.u32 %s89, %s90
    %s92 = sand.u32 51, %s91
    %s93 = sshrl.u32 %s92, 2
    %s94 = sor.u32 %s92, %s93
    %s95 = sand.u32 15, %s94
    %v96 = vld [vmem:[%s86] sm:%s95]
    %v97 = vunpack.c.l.bf16 %v96
    %v98 = vunpack.c.h.bf16 %v96
    %s99 = scalar_lea.vmem [#allocation1], 24
    %100 = vst [vmem:[%s99] sm:%s4] %v97
    %s101 = smul.addr 4, 2
    %s102 = scalar_lea.vmem %s0, %s101
    %s103 = sshrl.u32 %s4, 1
    %s104 = sor.u32 %s4, %s103
    %s105 = sand.u32 %s104, 85
    %s106 = sshrl.u32 %s105, 1
    %s107 = sor.u32 %s105, %s106
    %s108 = sand.u32 51, %s107
    %s109 = sshrl.u32 %s108, 2
    %s110 = sor.u32 %s108, %s109
    %s111 = sand.u32 15, %s110
    %v112 = vld [vmem:[%s102] sm:%s111]
    %v113 = vunpack.c.l.bf16 %v112
    %v114 = vunpack.c.h.bf16 %v112
    %s115 = scalar_lea.vmem [#allocation1], 16
    %116 = vst [vmem:[%s115] sm:%s4] %v113
    %s117 = scalar_lea.vmem %s0, 4
    %s118 = sshrl.u32 %s4, 1
    %s119 = sor.u32 %s4, %s118
    %s120 = sand.u32 %s119, 85
    %s121 = sshrl.u32 %s120, 1
    %s122 = sor.u32 %s120, %s121
    %s123 = sand.u32 51, %s122
    %s124 = sshrl.u32 %s123, 2
    %s125 = sor.u32 %s123, %s124
    %s126 = sand.u32 15, %s125
    %v127 = vld [vmem:[%s117] sm:%s126]
    %v128 = vunpack.c.l.bf16 %v127
    %v129 = vunpack.c.h.bf16 %v127
    %s130 = scalar_lea.vmem [#allocation1], 8
    %131 = vst [vmem:[%s130] sm:%s4] %v128
    %s132 = sshrl.u32 %s4, 1
    %s133 = sor.u32 %s4, %s132
    %s134 = sand.u32 %s133, 85
    %s135 = sshrl.u32 %s134, 1
    %s136 = sor.u32 %s134, %s135
    %s137 = sand.u32 51, %s136
    %s138 = sshrl.u32 %s137, 2
    %s139 = sor.u32 %s137, %s138
    %s140 = sand.u32 15, %s139
    %v141 = vld [vmem:[%s0] sm:%s140]
    %v142 = vunpack.c.l.bf16 %v141
    %v143 = vunpack.c.h.bf16 %v141
    %144 = vst [vmem:[#allocation1] sm:%s4] %v142
    %v145 = vld [vmem:[#allocation1] sm:$0xff]
    %vm146 = vcmask 130048
    %147 = vst.msk [vmem:[#allocation0] sm:$0x3f] %vm146, %v145
    %s148 = scalar_lea.vmem [#allocation0], 2
    %149 = vst.msk [vmem:[%s148] sm:$0xc0] %vm146, %v145
    %s150 = scalar_lea.vmem [#allocation1], 8
    %v151 = vld [vmem:[%s150] sm:$0xff]
    %vm152 = vcmask 130048
    %s153 = scalar_lea.vmem [#allocation0], 10
    %154 = vst.msk [vmem:[%s153] sm:$0xf] %vm152, %v151
    %s155 = scalar_lea.vmem [#allocation0], 12
    %156 = vst.msk [vmem:[%s155] sm:$0xf0] %vm152, %v151
    %s157 = scalar_lea.vmem [#allocation1], 16
    %v158 = vld [vmem:[%s157] sm:$0xff]
    %vm159 = vcmask 130048
    %s160 = scalar_lea.vmem [#allocation0], 20
    %161 = vst.msk [vmem:[%s160] sm:$0x3] %vm159, %v158
    %s162 = scalar_lea.vmem [#allocation0], 22
    %163 = vst.msk [vmem:[%s162] sm:$0xfc] %vm159, %v158
    %s164 = scalar_lea.vmem [#allocation1], 24
    %v165 = vld [vmem:[%s164] sm:$0xff]
    %vm166 = vcmask 130048
    %s167 = scalar_lea.vmem [#allocation0], 32
    %168 = vst.msk [vmem:[%s167] sm:$0x3f] %vm166, %v165
    %s169 = scalar_lea.vmem [#allocation0], 34
    %170 = vst.msk [vmem:[%s169] sm:$0xc0] %vm166, %v165
    %s171 = scalar_lea.vmem [#allocation1], 32
    %v172 = vld [vmem:[%s171] sm:$0xff]
    %vm173 = vcmask 130048
    %s174 = scalar_lea.vmem [#allocation0], 42
    %175 = vst.msk [vmem:[%s174] sm:$0xf] %vm173, %v172
    %s176 = scalar_lea.vmem [#allocation0], 44
    %177 = vst.msk [vmem:[%s176] sm:$0xf0] %vm173, %v172
    %s178 = scalar_lea.vmem [#allocation1], 40
    %v179 = vld [vmem:[%s178] sm:$0xff]
    %vm180 = vcmask 130048
    %s181 = scalar_lea.vmem [#allocation0], 52
    %182 = vst.msk [vmem:[%s181] sm:$0x3] %vm180, %v179
    %s183 = scalar_lea.vmem [#allocation0], 54
    %184 = vst.msk [vmem:[%s183] sm:$0xfc] %vm180, %v179
    %s185 = scalar_lea.vmem [#allocation1], 48
    %v186 = vld [vmem:[%s185] sm:$0xff]
    %vm187 = vcmask 130048
    %s188 = scalar_lea.vmem [#allocation0], 64
    %189 = vst.msk [vmem:[%s188] sm:$0x3f] %vm187, %v186
    %s190 = scalar_lea.vmem [#allocation0], 66
    %191 = vst.msk [vmem:[%s190] sm:$0xc0] %vm187, %v186
    %s192 = scalar_lea.vmem [#allocation1], 56
    %v193 = vld [vmem:[%s192] sm:$0xff]
    %vm194 = vcmask 130048
    %s195 = scalar_lea.vmem [#allocation0], 74
    %196 = vst.msk [vmem:[%s195] sm:$0xf] %vm194, %v193
    %s197 = scalar_lea.vmem [#allocation0], 76
    %198 = vst.msk [vmem:[%s197] sm:$0xf0] %vm194, %v193
    %s199 = scalar_lea.vmem [#allocation1], 64
    %v200 = vld [vmem:[%s199] sm:$0xff]
    %vm201 = vcmask 130048
    %s202 = scalar_lea.vmem [#allocation0], 84
    %203 = vst.msk [vmem:[%s202] sm:$0x3] %vm201, %v200
    %s204 = scalar_lea.vmem [#allocation0], 86
    %205 = vst.msk [vmem:[%s204] sm:$0xfc] %vm201, %v200
    %s207 = smul.u32 4, 2
    %s208 = sshllo.u32 0, %s207
    %s209 = sshrl.u32 %s207, 1
    %v210 = vld [vmem:[#allocation0] sm:%s208]
    %v211 = vpack.c.bf16 0.0, %v210
    %s212 = sshllo.u32 0, %s209
    %213 = vst [vmem:[%s1] sm:%s212] %v211
    %s214 = scalar_lea.vmem [#allocation0], 8
    %v215 = vld [vmem:[%s214] sm:%s208]
    %v216 = vpack.c.bf16 0.0, %v215
    %s217 = sshllo.u32 0, %s209
    %s218 = scalar_lea.vmem %s1, 4
    %219 = vst [vmem:[%s218] sm:%s217] %v216
    %s220 = scalar_lea.vmem [#allocation0], 16
    %v221 = vld [vmem:[%s220] sm:%s208]
    %v222 = vpack.c.bf16 0.0, %v221
    %s223 = sshllo.u32 0, %s209
    %s224 = smul.addr 4, 2
    %s225 = scalar_lea.vmem %s1, %s224
    %226 = vst [vmem:[%s225] sm:%s223] %v222
    %s227 = scalar_lea.vmem [#allocation0], 24
    %v228 = vld [vmem:[%s227] sm:%s208]
    %v229 = vpack.c.bf16 0.0, %v228
    %s230 = sshllo.u32 0, %s209
    %s231 = smul.addr 4, 3
    %s232 = scalar_lea.vmem %s1, %s231
    %233 = vst [vmem:[%s232] sm:%s230] %v229
    %s234 = scalar_lea.vmem [#allocation0], 32
    %v235 = vld [vmem:[%s234] sm:%s208]
    %v236 = vpack.c.bf16 0.0, %v235
    %s237 = sshllo.u32 0, %s209
    %s238 = smul.addr 4, 4
    %s239 = scalar_lea.vmem %s1, %s238
    %240 = vst [vmem:[%s239] sm:%s237] %v236
    %s241 = scalar_lea.vmem [#allocation0], 40
    %v242 = vld [vmem:[%s241] sm:%s208]
    %v243 = vpack.c.bf16 0.0, %v242
    %s244 = sshllo.u32 0, %s209
    %s245 = smul.addr 4, 5
    %s246 = scalar_lea.vmem %s1, %s245
    %247 = vst [vmem:[%s246] sm:%s244] %v243
    %s248 = scalar_lea.vmem [#allocation0], 48
    %v249 = vld [vmem:[%s248] sm:%s208]
    %v250 = vpack.c.bf16 0.0, %v249
    %s251 = sshllo.u32 0, %s209
    %s252 = smul.addr 4, 6
    %s253 = scalar_lea.vmem %s1, %s252
    %254 = vst [vmem:[%s253] sm:%s251] %v250
    %s255 = scalar_lea.vmem [#allocation0], 56
    %v256 = vld [vmem:[%s255] sm:%s208]
    %v257 = vpack.c.bf16 0.0, %v256
    %s258 = sshllo.u32 0, %s209
    %s259 = smul.addr 4, 7
    %s260 = scalar_lea.vmem %s1, %s259
    %261 = vst [vmem:[%s260] sm:%s258] %v257
    %s262 = scalar_lea.vmem [#allocation0], 64
    %v263 = vld [vmem:[%s262] sm:%s208]
    %v264 = vpack.c.bf16 0.0, %v263
    %s265 = sshllo.u32 0, %s209
    %s266 = smul.addr 4, 8
    %s267 = scalar_lea.vmem %s1, %s266
    %268 = vst [vmem:[%s267] sm:%s265] %v264
    %s269 = scalar_lea.vmem [#allocation0], 72
    %v270 = vld [vmem:[%s269] sm:%s208]
    %v271 = vpack.c.bf16 0.0, %v270
    %s272 = sshllo.u32 0, %s209
    %s273 = smul.addr 4, 9
    %s274 = scalar_lea.vmem %s1, %s273
    %275 = vst [vmem:[%s274] sm:%s272] %v271
    %s276 = scalar_lea.vmem [#allocation0], 80
    %v277 = vld [vmem:[%s276] sm:%s208]
    %v278 = vpack.c.bf16 0.0, %v277
    %s279 = sshllo.u32 0, %s209
    %s280 = smul.addr 4, 10
    %s281 = scalar_lea.vmem %s1, %s280
    %282 = vst [vmem:[%s281] sm:%s279] %v278
    %s283 = scalar_lea.vmem [#allocation0], 88
    %v284 = vld [vmem:[%s283] sm:%s208]
    %v285 = vpack.c.bf16 0.0, %v284
    %s286 = sshllo.u32 0, %s209
    %s287 = smul.addr 4, 11
    %s288 = scalar_lea.vmem %s1, %s287
    %289 = vst [vmem:[%s288] sm:%s286] %v285

// kernel: spatial_pyramid_pooling.4
$region0: #{spatial_pyramid_pooling.4}
  #allocation0 [shape = 'u32[]', space=smem, size = 0x4, offset = 0x4, fixed_abs, tag = 'smem constant byte address 0x4 - core index']
  #allocation1 [shape = 'u32[144,128]{1,0:T(1,128)}', space=vmem, size = 0x12000, scoped, tag = 'internal scratch']
  %s0 = inlined_call_operand.vmem [shape: f32[4,72,32], index: 0, kind: input, shape index: {}]
  %s1 = inlined_call_operand.vmem [shape: f32[4,2,32], index: 1, kind: input, shape index: {}]
  %s2 = inlined_call_operand.vmem [shape: bf16[4,32,16], index: 2, kind: input, shape index: {}]
  %s3 = inlined_call_operand.vmem [shape: bf16[4,72,16], index: 3, kind: output, shape index: {}]
  %s4 = sld [smem:[#allocation0]]
  $region45: #{spatial_pyramid_pooling.4} parent=0
    _
  %s6 = ssub.s32 1, %s4
  %s7 = scalar_select 0, %s6, %s4
  loop: start=0, step=1, limit=6
  $region2: #{spatial_pyramid_pooling.4} parent=0 // loop_pre_header
    _
  $region3: #{spatial_pyramid_pooling.4} parent=0 // loop_header
    %s9 = sphi 0, %s13
    %p10 = scmp.ge.s32.totalorder %s9, 6
    %s19 = sphi 0, %s21
    %s22 = sphi 0, %s19
    %s23 = sphi 0, %s22
    %s39 = sphi 0, %s23
    %s45 = sphi 0, %s47
    %s48 = sphi 0, %s45
    %s49 = sphi 0, %s48
    %s65 = sphi 0, %s49
    %s71 = sphi 0, %s73
    %s74 = sphi 0, %s71
    %s75 = sphi 0, %s74
    %s91 = sphi 0, %s75
    %s97 = sphi 0, %s99
    %s100 = sphi 0, %s97
    %s101 = sphi 0, %s100
    %s117 = sphi 0, %s101
  $region4: #{spatial_pyramid_pooling.4} parent=0 // loop_header_branch
    %12 = sbr.rel (%p10) target = $region8
  $region5: #{spatial_pyramid_pooling.4} parent=0 // loop_body
    %s14 = ssub.s32 %s9, 1
    %s15 = ssub.s32 %s9, 2
    %s16 = sadd.s32 %s9, 1
    %s17 = ssub.s32 %s9, %s16
    %p18 = scmp.eq.s32.totalorder %s17, 0
    %s20 = sadd.s32 %s19, 1
    %s21 = scalar_select %p18, %s19, %s20
    %p24 = pneg %p18
    %p25 = scmp.eq.s32.totalorder %s9, 3
    %p26 = por %p24, %p25
    %p27 = scmp.ne.s32.totalorder %s19, %s22
    %p28 = scmp.eq.s32.totalorder %s9, 0
    %p29 = por %p27, %p28
    %p30 = scmp.ne.s32.totalorder %s19, %s22
    %p31 = scmp.eq.s32.totalorder %s14, 3
    %p32 = por %p30, %p31
    %p33 = scmp.ne.s32.totalorder %s22, %s23
    %p34 = scmp.eq.s32.totalorder %s14, 0
    %p35 = por %p33, %p34
    %p36 = scmp.ne.s32.totalorder %s22, %s23
    %p37 = scmp.eq.s32.totalorder %s15, 3
    %p38 = por %p36, %p37
    %p40 = scmp.ne.s32.totalorder %s23, %s39
    %p41 = scmp.eq.s32.totalorder %s15, 0
    %p42 = por %p40, %p41
    %s43 = ssub.s32 %s9, %s16
    %p44 = scmp.eq.s32.totalorder %s43, 0
    %s46 = sadd.s32 %s45, 1
    %s47 = scalar_select %p44, %s45, %s46
    %p50 = pneg %p44
    %p51 = scmp.eq.s32.totalorder %s9, 3
    %p52 = por %p50, %p51
    %p53 = scmp.ne.s32.totalorder %s45, %s48
    %p54 = scmp.eq.s32.totalorder %s9, 0
    %p55 = por %p53, %p54
    %p56 = scmp.ne.s32.totalorder %s45, %s48
    %p57 = scmp.eq.s32.totalorder %s14, 3
    %p58 = por %p56, %p57
    %p59 = scmp.ne.s32.totalorder %s48, %s49
    %p60 = scmp.eq.s32.totalorder %s14, 0
    %p61 = por %p59, %p60
    %p62 = scmp.ne.s32.totalorder %s48, %s49
    %p63 = scmp.eq.s32.totalorder %s15, 3
    %p64 = por %p62, %p63
    %p66 = scmp.ne.s32.totalorder %s49, %s65
    %p67 = scmp.eq.s32.totalorder %s15, 0
    %p68 = por %p66, %p67
    %s69 = ssub.s32 %s9, %s16
    %p70 = scmp.eq.s32.totalorder %s69, 0
    %s72 = sadd.s32 %s71, 1
    %s73 = scalar_select %p70, %s71, %s72
    %p76 = pneg %p70
    %p77 = scmp.eq.s32.totalorder %s9, 3
    %p78 = por %p76, %p77
    %p79 = scmp.ne.s32.totalorder %s71, %s74
    %p80 = scmp.eq.s32.totalorder %s9, 0
    %p81 = por %p79, %p80
    %p82 = scmp.ne.s32.totalorder %s71, %s74
    %p83 = scmp.eq.s32.totalorder %s14, 3
    %p84 = por %p82, %p83
    %p85 = scmp.ne.s32.totalorder %s74, %s75
    %p86 = scmp.eq.s32.totalorder %s14, 0
    %p87 = por %p85, %p86
    %p88 = scmp.ne.s32.totalorder %s74, %s75
    %p89 = scmp.eq.s32.totalorder %s15, 3
    %p90 = por %p88, %p89
    %p92 = scmp.ne.s32.totalorder %s75, %s91
    %p93 = scmp.eq.s32.totalorder %s15, 0
    %p94 = por %p92, %p93
    %s95 = ssub.s32 %s9, %s16
    %p96 = scmp.eq.s32.totalorder %s95, 0
    %s98 = sadd.s32 %s97, 1
    %s99 = scalar_select %p96, %s97, %s98
    %p102 = pneg %p96
    %p103 = scmp.eq.s32.totalorder %s9, 3
    %p104 = por %p102, %p103
    %p105 = scmp.ne.s32.totalorder %s97, %s100
    %p106 = scmp.eq.s32.totalorder %s9, 0
    %p107 = por %p105, %p106
    %p108 = scmp.ne.s32.totalorder %s97, %s100
    %p109 = scmp.eq.s32.totalorder %s14, 3
    %p110 = por %p108, %p109
    %p111 = scmp.ne.s32.totalorder %s100, %s101
    %p112 = scmp.eq.s32.totalorder %s14, 0
    %p113 = por %p111, %p112
    %p114 = scmp.ne.s32.totalorder %s100, %s101
    %p115 = scmp.eq.s32.totalorder %s15, 3
    %p116 = por %p114, %p115
    %p118 = scmp.ne.s32.totalorder %s101, %s117
    %p119 = scmp.eq.s32.totalorder %s15, 0
    %p120 = por %p118, %p119
    %p121 = scmp.le.s32.totalorder 1, %s9
    %p122 = scmp.lt.s32.totalorder %s9, 5
    %p123 = pnand %p121, %p122
    %p124 = pneg %p123
    // Predicated region
    $region9: #{spatial_pyramid_pooling.4} parent=5 // pred_check
      _
    $region10: #{spatial_pyramid_pooling.4} parent=5 // pred_check_branch
      %126 = sbr.rel (%p123) target = $region12
    $region11: #{spatial_pyramid_pooling.4} parent=5 // pred_region
      %s127 = ssub.s32 %s9, 1
    $region12: #{spatial_pyramid_pooling.4} parent=5 // pred_fallthru
      _
    %p128 = scmp.lt.s32.totalorder %s9, 4
    // Predicated region
    $region13: #{spatial_pyramid_pooling.4} parent=5 // pred_check
      %p129 = pneg %p128
    $region14: #{spatial_pyramid_pooling.4} parent=5 // pred_check_branch
      %131 = sbr.rel (%p129) target = $region16
    $region15: #{spatial_pyramid_pooling.4} parent=5 // pred_region
      // Predicated region
      $region17: #{spatial_pyramid_pooling.4} parent=15 // pred_check
        %p132 = pneg %p29
      $region18: #{spatial_pyramid_pooling.4} parent=15 // pred_check_branch
        %134 = sbr.rel (%p132) target = $region20
      $region19: #{spatial_pyramid_pooling.4} parent=15 // pred_region
        %p135 = scmp.lt.s32.totalorder %s9, 3
        %s136 = scalar_select %p135, %s9, 3
        %s137 = smul.addr %s136, 9
        %s138 = smul.addr %s137, 8
        %s139 = scalar_lea.vmem %s0, %s138
      $region20: #{spatial_pyramid_pooling.4} parent=15 // pred_fallthru
        _
      // Predicated region
      $region21: #{spatial_pyramid_pooling.4} parent=15 // pred_check
        %p140 = pneg %p55
      $region22: #{spatial_pyramid_pooling.4} parent=15 // pred_check_branch
        %142 = sbr.rel (%p140) target = $region24
      $region23: #{spatial_pyramid_pooling.4} parent=15 // pred_region
        %p143 = scmp.lt.s32.totalorder %s9, 3
        %s144 = scalar_select %p143, %s9, 3
        %s145 = smul.addr %s144, 2
        %s146 = scalar_lea.vmem %s1, %s145
      $region24: #{spatial_pyramid_pooling.4} parent=15 // pred_fallthru
        _
      // Predicated region
      $region25: #{spatial_pyramid_pooling.4} parent=15 // pred_check
        %p147 = pneg %p81
      $region26: #{spatial_pyramid_pooling.4} parent=15 // pred_check_branch
        %149 = sbr.rel (%p147) target = $region28
      $region27: #{spatial_pyramid_pooling.4} parent=15 // pred_region
        %p150 = scmp.lt.s32.totalorder %s9, 3
        %s151 = scalar_select %p150, %s9, 3
        %s152 = smul.addr %s151, 4
        %s153 = smul.addr %s152, 4
        %s154 = scalar_lea.vmem %s2, %s153
      $region28: #{spatial_pyramid_pooling.4} parent=15 // pred_fallthru
        _
    $region16: #{spatial_pyramid_pooling.4} parent=5 // pred_fallthru
      _
    %p155 = scmp.le.s32.totalorder 1, %s9
    %p156 = scmp.lt.s32.totalorder %s9, 5
    %p157 = pnand %p155, %p156
    %p158 = pneg %p157
    // Predicated region
    $region29: #{spatial_pyramid_pooling.4} parent=5 // pred_check
      _
    $region30: #{spatial_pyramid_pooling.4} parent=5 // pred_check_branch
      %160 = sbr.rel (%p157) target = $region32
    $region31: #{spatial_pyramid_pooling.4} parent=5 // pred_region
      %s161 = ssub.s32 %s9, 1
      %p162 = scmp.lt.s32.totalorder %s14, 3
      %s163 = scalar_select %p162, %s14, 3
      %s164 = smul.addr %s163, 9
      %s165 = smul.addr %s164, 8
      %s166 = scalar_lea.vmem %s0, %s165
      %p167 = pneg %p35
      %p168 = pneg %p32
      %p169 = scmp.lt.s32.totalorder %s14, 3
      %s170 = scalar_select %p169, %s14, 3
      %s171 = smul.addr %s170, 2
      %s172 = scalar_lea.vmem %s1, %s171
      %p173 = pneg %p61
      %p174 = pneg %p58
      %p175 = scmp.lt.s32.totalorder %s14, 3
      %s176 = scalar_select %p175, %s14, 3
      %s177 = smul.addr %s176, 4
      %s178 = smul.addr %s177, 4
      %s179 = scalar_lea.vmem %s2, %s178
      %p180 = pneg %p87
      %p181 = pneg %p84
      %p182 = pneg %p113
      %p183 = pneg %p110
      %p184 = scmp.lt.s32.totalorder %s14, 3
      %s185 = scalar_select %p184, %s14, 3
      %s186 = smul.addr %s185, 9
      %s187 = smul.addr %s186, 4
      %s188 = scalar_lea.vmem %s3, %s187
      %p189 = scmp.lt.s32.totalorder %s14, 3
      %s190 = scalar_select %p189, %s14, 3
      %s191 = smul.addr %s190, 9
      %s192 = smul.addr %s191, 8
      %s193 = scalar_lea.vmem %s0, %s192
      %p194 = scmp.lt.s32.totalorder %s14, 3
      %s195 = scalar_select %p194, %s14, 3
      %s196 = smul.addr %s195, 2
      %s197 = scalar_lea.vmem %s1, %s196
      %p198 = scmp.lt.s32.totalorder %s14, 3
      %s199 = scalar_select %p198, %s14, 3
      %s200 = smul.addr %s199, 4
      %s201 = smul.addr %s200, 4
      %s202 = scalar_lea.vmem %s2, %s201
      %p203 = scmp.lt.s32.totalorder %s14, 3
      %s204 = scalar_select %p203, %s14, 3
      %s205 = smul.addr %s204, 9
      %s206 = smul.addr %s205, 4
      %s207 = scalar_lea.vmem %s3, %s206
      %v209 = vld [vmem:[%s193] sm:$0xff]
      %v210 = vld [vmem:[%s193 + $0x8] sm:$0xff]
      %v211 = vld [vmem:[%s193 + $0x10] sm:$0xff]
      %v212 = vld [vmem:[%s193 + $0x18] sm:$0xff]
      %v213 = vld [vmem:[%s193 + $0x20] sm:$0xff]
      %v214 = vld [vmem:[%s193 + $0x28] sm:$0xff]
      %v215 = vld [vmem:[%s193 + $0x30] sm:$0xff]
      %v216 = vld [vmem:[%s193 + $0x38] sm:$0xff]
      %v217 = vld [vmem:[%s193 + $0x40] sm:$0xff]
      %v218 = vld [vmem:[%s197] sm:$0x3]
      %v219 = vlaneseq
      %v220 = vshrl.u32 %v219, 7
      %v221 = vsub.s32 0, %v220
      %v222 = vrot.slane %v218, %v221
      %v223 = vmul.f32 %v209, %v222
      %v224 = vmul.f32 %v210, %v222
      %v225 = vmul.f32 %v211, %v222
      %v226 = vmul.f32 %v212, %v222
      %v227 = vmul.f32 %v213, %v222
      %v228 = vmul.f32 %v214, %v222
      %v229 = vmul.f32 %v215, %v222
      %v230 = vmul.f32 %v216, %v222
      %v231 = vmul.f32 %v217, %v222
      %v232 = vlaneseq
      %v233 = vshrl.u32 %v232, 7
      %v234 = vsub.s32 1, %v233
      %v235 = vrot.slane %v218, %v234
      %v236 = vadd.f32 %v223, %v235
      %v237 = vadd.f32 %v224, %v235
      %v238 = vadd.f32 %v225, %v235
      %v239 = vadd.f32 %v226, %v235
      %v240 = vadd.f32 %v227, %v235
      %v241 = vadd.f32 %v228, %v235
      %v242 = vadd.f32 %v229, %v235
      %v243 = vadd.f32 %v230, %v235
      %v244 = vadd.f32 %v231, %v235
      %v245 = vmax.f32 %v236, 0.0
      %v246 = vmax.f32 %v237, 0.0
      %v247 = vmax.f32 %v238, 0.0
      %v248 = vmax.f32 %v239, 0.0
      %v249 = vmax.f32 %v240, 0.0
      %v250 = vmax.f32 %v241, 0.0
      %v251 = vmax.f32 %v242, 0.0
      %v252 = vmax.f32 %v243, 0.0
      %v253 = vmax.f32 %v244, 0.0
      %v254 = vpack.c.bf16 %v246, %v245
      %v255 = vpack.c.bf16 %v248, %v247
      %v256 = vpack.c.bf16 %v250, %v249
      %v257 = vpack.c.bf16 %v252, %v251
      %v258 = vpack.c.bf16 %v253, %v253
      %v259 = vld [vmem:[%s202] sm:$0xf]
      %v260 = vld [vmem:[%s202 + $0x4] sm:$0xf]
      %v261 = vld [vmem:[%s202 + $0x8] sm:$0xf]
      %v262 = vld [vmem:[%s202 + $0xc] sm:$0xf]
      %v267 = vunpack.c.l.b16 %v259
      %v268 = vunpack.c.l.b16 %v260
      %v269 = vunpack.c.l.b16 %v261
      %v270 = vunpack.c.l.b16 %v262
      %v271 = vpack.c.b16 %v268, %v267
      %v272 = vpack.c.b16 %v270, %v269
      %vm275 = vcmask 261120
      %v277 = vsel %vm275, %v254, 0
      %v280 = vsel %vm275, %v255, 0
      %v283 = vsel %vm275, %v256, 0
      %v286 = vsel %vm275, %v257, 0
      %v289 = vsel %vm275, %v258, 0
      %291 = vmatprep.subr.bf16.mxu0 0
      %292 = vmatpush1.bf16.msra.mxu0 %v271
      %293 = vmatprep.subr.bf16.mxu0 0
      %294 = vmatpush1.bf16.msra.mxu0 %v272
      %295 = vmatprep.subr.bf16.mxu0 0
      %296 = vmatpush1.bf16.msra.mxu0 0
      %297 = vmatprep.subr.bf16.mxu0 0
      %298 = vmatpush1.bf16.msra.mxu0 0
      %299 = vmatprep.subr.bf16.mxu0 0
      %300 = vmatpush1.bf16.msra.mxu0 0
      %301 = vmatprep.subr.bf16.mxu0 0
      %302 = vmatpush1.bf16.msra.mxu0 0
      %303 = vmatprep.subr.bf16.mxu0 0
      %304 = vmatpush1.bf16.msra.mxu0 0
      %305 = vmatprep.subr.bf16.mxu0 0
      %306 = vmatpush1.bf16.msra.mxu0 0
      %307 = vmatprep.subr.bf16.mxu0 0
      %308 = vmatpush1.bf16.msra.mxu0 0
      %309 = vmatprep.subr.bf16.mxu0 0
      %310 = vmatpush1.bf16.msra.mxu0 0
      %311 = vmatprep.subr.bf16.mxu0 0
      %312 = vmatpush1.bf16.msra.mxu0 0
      %313 = vmatprep.subr.bf16.mxu0 0
      %314 = vmatpush1.bf16.msra.mxu0 0
      %315 = vmatprep.subr.bf16.mxu0 0
      %316 = vmatpush1.bf16.msra.mxu0 0
      %317 = vmatprep.subr.bf16.mxu0 0
      %318 = vmatpush1.bf16.msra.mxu0 0
      %319 = vmatprep.subr.bf16.mxu0 0
      %320 = vmatpush1.bf16.msra.mxu0 0
      %321 = vmatprep.subr.bf16.mxu0 0
      %322 = vmatpush1.bf16.msra.mxu0 0
      %323 = vmatprep.mubr.bf16.mxu0 0
      %324 = vmatmul.mubr.bf16.gmra.mrb[0].mxu0 %v277
      %v325 = vpop.f32.mrb[0].mxu0
      %v326 = vadd.f32 0.0, %v325
      %v327 = vpop.f32.mrb[0].mxu0
      %v328 = vpop.f32.mrb[0].mxu0
      %v329 = vadd.f32 0.0, %v328
      %v330 = vpop.f32.mrb[0].mxu0
      %331 = vmatprep.mubr.bf16.mxu0 0
      %332 = vmatmul.mubr.bf16.gmra.mrb[0].mxu0 %v280
      %v333 = vpop.f32.mrb[0].mxu0
      %v334 = vadd.f32 0.0, %v333
      %v335 = vpop.f32.mrb[0].mxu0
      %v336 = vpop.f32.mrb[0].mxu0
      %v337 = vadd.f32 0.0, %v336
      %v338 = vpop.f32.mrb[0].mxu0
      %339 = vmatprep.mubr.bf16.mxu0 0
      %340 = vmatmul.mubr.bf16.gmra.mrb[0].mxu0 %v283
      %v341 = vpop.f32.mrb[0].mxu0
      %v342 = vadd.f32 0.0, %v341
      %v343 = vpop.f32.mrb[0].mxu0
      %v344 = vpop.f32.mrb[0].mxu0
      %v345 = vadd.f32 0.0, %v344
      %v346 = vpop.f32.mrb[0].mxu0
      %347 = vmatprep.mubr.bf16.mxu0 0
      %348 = vmatmul.mubr.bf16.gmra.mrb[0].mxu0 %v286
      %v349 = vpop.f32.mrb[0].mxu0
      %v350 = vadd.f32 0.0, %v349
      %v351 = vpop.f32.mrb[0].mxu0
      %v352 = vpop.f32.mrb[0].mxu0
      %v353 = vadd.f32 0.0, %v352
      %v354 = vpop.f32.mrb[0].mxu0
      %355 = vmatprep.mubr.bf16.mxu0 0
      %356 = vmatmul.mubr.bf16.gmra.mrb[0].mxu0 %v289
      %v357 = vpop.f32.mrb[0].mxu0
      %v358 = vadd.f32 0.0, %v357
      %v359 = vpop.f32.mrb[0].mxu0
      %v360 = vpop.f32.mrb[0].mxu0
      %v361 = vpop.f32.mrb[0].mxu0
      %362 = vdwg.mxu0
      %v363 = vpack.c.bf16 %v329, %v326
      %v364 = vpack.c.bf16 %v337, %v334
      %v365 = vpack.c.bf16 %v345, %v342
      %v366 = vpack.c.bf16 %v353, %v350
      %v367 = vpack.c.bf16 %v358, %v358
      %v373 = vunpack.c.l.b16 %v363
      %v374 = vunpack.c.h.b16 %v363
      %v375 = vunpack.c.l.b16 %v364
      %v376 = vunpack.c.h.b16 %v364
      %v377 = vunpack.c.l.b16 %v365
      %v378 = vunpack.c.h.b16 %v365
      %v379 = vunpack.c.l.b16 %v366
      %v380 = vunpack.c.h.b16 %v366
      %v381 = vunpack.c.l.b16 %v367
      %v382 = vpack.c.b16 %v373, %v373
      %v383 = vpack.c.b16 %v374, %v374
      %v384 = vpack.c.b16 %v375, %v375
      %v385 = vpack.c.b16 %v376, %v376
      %v386 = vpack.c.b16 %v377, %v377
      %v387 = vpack.c.b16 %v378, %v378
      %v388 = vpack.c.b16 %v379, %v379
      %v389 = vpack.c.b16 %v380, %v380
      %v390 = vpack.c.b16 %v381, %v381
      %vm400 = vcmask 125952
      %401 = vst.msk [vmem:[%s207] sm:$0xf] %vm400, %v382
      %402 = vst.msk [vmem:[%s207 + $0x4] sm:$0xf] %vm400, %v383
      %403 = vst.msk [vmem:[%s207 + $0x8] sm:$0xf] %vm400, %v384
      %404 = vst.msk [vmem:[%s207 + $0xc] sm:$0xf] %vm400, %v385
      %405 = vst.msk [vmem:[%s207 + $0x10] sm:$0xf] %vm400, %v386
      %406 = vst.msk [vmem:[%s207 + $0x14] sm:$0xf] %vm400, %v387
      %407 = vst.msk [vmem:[%s207 + $0x18] sm:$0xf] %vm400, %v388
      %408 = vst.msk [vmem:[%s207 + $0x1c] sm:$0xf] %vm400, %v389
      %409 = vst.msk [vmem:[%s207 + $0x20] sm:$0xf] %vm400, %v390
      %p410 = scmp.lt.s32.totalorder %s14, 3
      %s411 = scalar_select %p410, %s14, 3
      %s412 = smul.addr %s411, 9
      %s413 = smul.addr %s412, 4
      %s414 = scalar_lea.vmem %s3, %s413
      // Predicated region
      $region33: #{spatial_pyramid_pooling.4} parent=31 // pred_check
        %p415 = pneg %p110
      $region34: #{spatial_pyramid_pooling.4} parent=31 // pred_check_branch
        %417 = sbr.rel (%p415) target = $region36
      $region35: #{spatial_pyramid_pooling.4} parent=31 // pred_region
        _
      $region36: #{spatial_pyramid_pooling.4} parent=31 // pred_fallthru
        _
    $region32: #{spatial_pyramid_pooling.4} parent=5 // pred_fallthru
      _
    %p418 = scmp.le.s32.totalorder 2, %s9
    // Predicated region
    $region37: #{spatial_pyramid_pooling.4} parent=5 // pred_check
      %p419 = pneg %p418
    $region38: #{spatial_pyramid_pooling.4} parent=5 // pred_check_branch
      %421 = sbr.rel (%p419) target = $region40
    $region39: #{spatial_pyramid_pooling.4} parent=5 // pred_region
      %s422 = ssub.s32 %s9, 2
      // Predicated region
      $region41: #{spatial_pyramid_pooling.4} parent=39 // pred_check
        %p423 = pneg %p116
      $region42: #{spatial_pyramid_pooling.4} parent=39 // pred_check_branch
        %425 = sbr.rel (%p423) target = $region44
      $region43: #{spatial_pyramid_pooling.4} parent=39 // pred_region
        %p426 = scmp.lt.s32.totalorder %s15, 3
        %s427 = scalar_select %p426, %s15, 3
        %s428 = smul.addr %s427, 9
        %s429 = smul.addr %s428, 4
        %s430 = scalar_lea.vmem %s3, %s429
      $region44: #{spatial_pyramid_pooling.4} parent=39 // pred_fallthru
        _
    $region40: #{spatial_pyramid_pooling.4} parent=5 // pred_fallthru
      _
  $region6: #{spatial_pyramid_pooling.4} parent=0 // loop_footer
    %s13 = sadd.s32 1, %s9
  $region7: #{spatial_pyramid_pooling.4} parent=0 // loop_footer_branch
    %8 = sbr.rel target = $region3
  $region8: #{spatial_pyramid_pooling.4} parent=0 // loop_exit
    _

// kernel: spatial_pyramid_pooling.5
$region0: #{spatial_pyramid_pooling.5}
  #allocation0 [shape = 'u32[]', space=smem, size = 0x4, offset = 0x4, fixed_abs, tag = 'smem constant byte address 0x4 - core index']
  #allocation1 [shape = 'u32[144,128]{1,0:T(1,128)}', space=vmem, size = 0x12000, scoped, tag = 'internal scratch']
  %s0 = inlined_call_operand.vmem [shape: bf16[512,32], index: 0, kind: input, shape index: {}]
  %s1 = inlined_call_operand.vmem [shape: bf16[4,512,16], index: 1, kind: input, shape index: {}]
  %s2 = inlined_call_operand.vmem [shape: f32[2,32], index: 2, kind: input, shape index: {}]
  %s3 = inlined_call_operand.vmem [shape: f32[4,2,16], index: 3, kind: input, shape index: {}]
  %s4 = inlined_call_operand.vmem [shape: bf16[32,16], index: 4, kind: input, shape index: {}]
  %s5 = inlined_call_operand.vmem [shape: bf16[4,16,16], index: 5, kind: input, shape index: {}]
  %s6 = inlined_call_operand.vmem [shape: f32[512,16], index: 6, kind: output, shape index: {}]
  %s7 = sld [smem:[#allocation0]]
  $region98: #{spatial_pyramid_pooling.5} parent=0
    _
  %s9 = ssub.s32 1, %s7
  %s10 = scalar_select 0, %s9, %s7
  $region1: #{spatial_pyramid_pooling.5} parent=0
    #allocation2 [shape = 'u8[524288]{0}', space=vmem, size = 0x80000, scoped, tag = 'input window, operand 1']
    loop: start=0, step=1, limit=4
    $region2: #{spatial_pyramid_pooling.5} parent=1 // loop_pre_header
      _
    $region3: #{spatial_pyramid_pooling.5} parent=1 // loop_header
      %s12 = sphi 0, %s16
      %p13 = scmp.ge.s32.totalorder %s12, 4
      %s22 = sphi 0, %s24
      %s25 = sphi 0, %s22
      %s26 = sphi 0, %s25
      %s42 = sphi 0, %s26
      %s48 = sphi 0, %s50
      %s51 = sphi 0, %s48
      %s52 = sphi 0, %s51
      %s68 = sphi 0, %s52
      %s72 = sphi 0, %s72
      %s74 = sphi 0, %s72
      %s75 = sphi 0, %s74
      %s89 = sphi 0, %s75
      %s93 = sphi 0, %s93
      %s95 = sphi 0, %s93
      %s96 = sphi 0, %s95
      %s110 = sphi 0, %s96
      %s114 = sphi 0, %s114
      %s116 = sphi 0, %s114
      %s117 = sphi 0, %s116
      %s131 = sphi 0, %s117
      %s135 = sphi 0, %s135
      %s137 = sphi 0, %s135
      %s138 = sphi 0, %s137
      %s152 = sphi 0, %s138
      %s158 = sphi 0, %s160
      %s161 = sphi 0, %s158
      %s162 = sphi 0, %s161
      %s178 = sphi 0, %s162
    $region4: #{spatial_pyramid_pooling.5} parent=1 // loop_header_branch
      %15 = sbr.rel (%p13) target = $region8
    $region5: #{spatial_pyramid_pooling.5} parent=1 // loop_body
      %s17 = ssub.s32 %s12, 1
      %s18 = ssub.s32 %s12, 2
      %s19 = sadd.s32 %s12, 1
      %s20 = ssub.s32 %s12, %s19
      %p21 = scmp.eq.s32.totalorder %s20, 0
      %s23 = sadd.s32 %s22, 1
      %s24 = scalar_select %p21, %s22, %s23
      %p27 = pneg %p21
      %p28 = scmp.eq.s32.totalorder %s12, 1
      %p29 = por %p27, %p28
      %p30 = scmp.ne.s32.totalorder %s22, %s25
      %p31 = scmp.eq.s32.totalorder %s12, 0
      %p32 = por %p30, %p31
      %p33 = scmp.ne.s32.totalorder %s22, %s25
      %p34 = scmp.eq.s32.totalorder %s17, 1
      %p35 = por %p33, %p34
      %p36 = scmp.ne.s32.totalorder %s25, %s26
      %p37 = scmp.eq.s32.totalorder %s17, 0
      %p38 = por %p36, %p37
      %p39 = scmp.ne.s32.totalorder %s25, %s26
      %p40 = scmp.eq.s32.totalorder %s18, 1
      %p41 = por %p39, %p40
      %p43 = scmp.ne.s32.totalorder %s26, %s42
      %p44 = scmp.eq.s32.totalorder %s18, 0
      %p45 = por %p43, %p44
      %s46 = ssub.s32 %s12, %s19
      %p47 = scmp.eq.s32.totalorder %s46, 0
      %s49 = sadd.s32 %s48, 1
      %s50 = scalar_select %p47, %s48, %s49
      %p53 = pneg %p47
      %p54 = scmp.eq.s32.totalorder %s12, 1
      %p55 = por %p53, %p54
      %p56 = scmp.ne.s32.totalorder %s48, %s51
      %p57 = scmp.eq.s32.totalorder %s12, 0
      %p58 = por %p56, %p57
      %p59 = scmp.ne.s32.totalorder %s48, %s51
      %p60 = scmp.eq.s32.totalorder %s17, 1
      %p61 = por %p59, %p60
      %p62 = scmp.ne.s32.totalorder %s51, %s52
      %p63 = scmp.eq.s32.totalorder %s17, 0
      %p64 = por %p62, %p63
      %p65 = scmp.ne.s32.totalorder %s51, %s52
      %p66 = scmp.eq.s32.totalorder %s18, 1
      %p67 = por %p65, %p66
      %p69 = scmp.ne.s32.totalorder %s52, %s68
      %p70 = scmp.eq.s32.totalorder %s18, 0
      %p71 = por %p69, %p70
      %s73 = sadd.s32 %s72, 1
      %p76 = scmp.eq.s32.totalorder %s12, 1
      %p77 = scmp.ne.s32.totalorder %s72, %s74
      %p78 = scmp.eq.s32.totalorder %s12, 0
      %p79 = por %p77, %p78
      %p80 = scmp.ne.s32.totalorder %s72, %s74
      %p81 = scmp.eq.s32.totalorder %s17, 1
      %p82 = por %p80, %p81
      %p83 = scmp.ne.s32.totalorder %s74, %s75
      %p84 = scmp.eq.s32.totalorder %s17, 0
      %p85 = por %p83, %p84
      %p86 = scmp.ne.s32.totalorder %s74, %s75
      %p87 = scmp.eq.s32.totalorder %s18, 1
      %p88 = por %p86, %p87
      %p90 = scmp.ne.s32.totalorder %s75, %s89
      %p91 = scmp.eq.s32.totalorder %s18, 0
      %p92 = por %p90, %p91
      %s94 = sadd.s32 %s93, 1
      %p97 = scmp.eq.s32.totalorder %s12, 1
      %p98 = scmp.ne.s32.totalorder %s93, %s95
      %p99 = scmp.eq.s32.totalorder %s12, 0
      %p100 = por %p98, %p99
      %p101 = scmp.ne.s32.totalorder %s93, %s95
      %p102 = scmp.eq.s32.totalorder %s17, 1
      %p103 = por %p101, %p102
      %p104 = scmp.ne.s32.totalorder %s95, %s96
      %p105 = scmp.eq.s32.totalorder %s17, 0
      %p106 = por %p104, %p105
      %p107 = scmp.ne.s32.totalorder %s95, %s96
      %p108 = scmp.eq.s32.totalorder %s18, 1
      %p109 = por %p107, %p108
      %p111 = scmp.ne.s32.totalorder %s96, %s110
      %p112 = scmp.eq.s32.totalorder %s18, 0
      %p113 = por %p111, %p112
      %s115 = sadd.s32 %s114, 1
      %p118 = scmp.eq.s32.totalorder %s12, 1
      %p119 = scmp.ne.s32.totalorder %s114, %s116
      %p120 = scmp.eq.s32.totalorder %s12, 0
      %p121 = por %p119, %p120
      %p122 = scmp.ne.s32.totalorder %s114, %s116
      %p123 = scmp.eq.s32.totalorder %s17, 1
      %p124 = por %p122, %p123
      %p125 = scmp.ne.s32.totalorder %s116, %s117
      %p126 = scmp.eq.s32.totalorder %s17, 0
      %p127 = por %p125, %p126
      %p128 = scmp.ne.s32.totalorder %s116, %s117
      %p129 = scmp.eq.s32.totalorder %s18, 1
      %p130 = por %p128, %p129
      %p132 = scmp.ne.s32.totalorder %s117, %s131
      %p133 = scmp.eq.s32.totalorder %s18, 0
      %p134 = por %p132, %p133
      %s136 = sadd.s32 %s135, 1
      %p139 = scmp.eq.s32.totalorder %s12, 1
      %p140 = scmp.ne.s32.totalorder %s135, %s137
      %p141 = scmp.eq.s32.totalorder %s12, 0
      %p142 = por %p140, %p141
      %p143 = scmp.ne.s32.totalorder %s135, %s137
      %p144 = scmp.eq.s32.totalorder %s17, 1
      %p145 = por %p143, %p144
      %p146 = scmp.ne.s32.totalorder %s137, %s138
      %p147 = scmp.eq.s32.totalorder %s17, 0
      %p148 = por %p146, %p147
      %p149 = scmp.ne.s32.totalorder %s137, %s138
      %p150 = scmp.eq.s32.totalorder %s18, 1
      %p151 = por %p149, %p150
      %p153 = scmp.ne.s32.totalorder %s138, %s152
      %p154 = scmp.eq.s32.totalorder %s18, 0
      %p155 = por %p153, %p154
      %s156 = ssub.s32 %s12, %s19
      %p157 = scmp.eq.s32.totalorder %s156, 0
      %s159 = sadd.s32 %s158, 1
      %s160 = scalar_select %p157, %s158, %s159
      %p163 = pneg %p157
      %p164 = scmp.eq.s32.totalorder %s12, 1
      %p165 = por %p163, %p164
      %p166 = scmp.ne.s32.totalorder %s158, %s161
      %p167 = scmp.eq.s32.totalorder %s12, 0
      %p168 = por %p166, %p167
      %p169 = scmp.ne.s32.totalorder %s158, %s161
      %p170 = scmp.eq.s32.totalorder %s17, 1
      %p171 = por %p169, %p170
      %p172 = scmp.ne.s32.totalorder %s161, %s162
      %p173 = scmp.eq.s32.totalorder %s17, 0
      %p174 = por %p172, %p173
      %p175 = scmp.ne.s32.totalorder %s161, %s162
      %p176 = scmp.eq.s32.totalorder %s18, 1
      %p177 = por %p175, %p176
      %p179 = scmp.ne.s32.totalorder %s162, %s178
      %p180 = scmp.eq.s32.totalorder %s18, 0
      %p181 = por %p179, %p180
      %p182 = scmp.le.s32.totalorder 1, %s12
      %p183 = scmp.lt.s32.totalorder %s12, 3
      %p184 = pnand %p182, %p183
      %p185 = pneg %p184
      // Predicated region
      $region9: #{spatial_pyramid_pooling.5} parent=5 // pred_check
        _
      $region10: #{spatial_pyramid_pooling.5} parent=5 // pred_check_branch
        %187 = sbr.rel (%p184) target = $region12
      $region11: #{spatial_pyramid_pooling.5} parent=5 // pred_region
        %s188 = ssub.s32 %s12, 1
        // Predicated region
        $region13: #{spatial_pyramid_pooling.5} parent=11 // pred_check
          %p189 = pneg %p85
        $region14: #{spatial_pyramid_pooling.5} parent=11 // pred_check_branch
          %191 = sbr.rel (%p189) target = $region16
        $region15: #{spatial_pyramid_pooling.5} parent=11 // pred_region
          _
        $region16: #{spatial_pyramid_pooling.5} parent=11 // pred_fallthru
          _
        // Predicated region
        $region17: #{spatial_pyramid_pooling.5} parent=11 // pred_check
          %p192 = pneg %p106
        $region18: #{spatial_pyramid_pooling.5} parent=11 // pred_check_branch
          %194 = sbr.rel (%p192) target = $region20
        $region19: #{spatial_pyramid_pooling.5} parent=11 // pred_region
          _
        $region20: #{spatial_pyramid_pooling.5} parent=11 // pred_fallthru
          _
        // Predicated region
        $region21: #{spatial_pyramid_pooling.5} parent=11 // pred_check
          %p195 = pneg %p127
        $region22: #{spatial_pyramid_pooling.5} parent=11 // pred_check_branch
          %197 = sbr.rel (%p195) target = $region24
        $region23: #{spatial_pyramid_pooling.5} parent=11 // pred_region
          _
        $region24: #{spatial_pyramid_pooling.5} parent=11 // pred_fallthru
          _
        // Predicated region
        $region25: #{spatial_pyramid_pooling.5} parent=11 // pred_check
          %p198 = pneg %p148
        $region26: #{spatial_pyramid_pooling.5} parent=11 // pred_check_branch
          %200 = sbr.rel (%p198) target = $region28
        $region27: #{spatial_pyramid_pooling.5} parent=11 // pred_region
          _
        $region28: #{spatial_pyramid_pooling.5} parent=11 // pred_fallthru
          _
      $region12: #{spatial_pyramid_pooling.5} parent=5 // pred_fallthru
        _
      %p201 = scmp.lt.s32.totalorder %s12, 2
      // Predicated region
      $region29: #{spatial_pyramid_pooling.5} parent=5 // pred_check
        %p202 = pneg %p201
      $region30: #{spatial_pyramid_pooling.5} parent=5 // pred_check_branch
        %204 = sbr.rel (%p202) target = $region32
      $region31: #{spatial_pyramid_pooling.5} parent=5 // pred_region
        // Predicated region
        $region33: #{spatial_pyramid_pooling.5} parent=31 // pred_check
          %p205 = pneg %p32
        $region34: #{spatial_pyramid_pooling.5} parent=31 // pred_check_branch
          %207 = sbr.rel (%p205) target = $region36
        $region35: #{spatial_pyramid_pooling.5} parent=31 // pred_region
          %s208 = smul.u32 32, %s12
          %p209 = scmp.lt.s32.totalorder %s208, 63
          %s210 = scalar_select %p209, %s208, 63
          %s211 = smul.addr %s210, 4
          %s212 = scalar_lea.vmem %s0, %s211
          %s213 = smul.u32 32, %s12
        $region36: #{spatial_pyramid_pooling.5} parent=31 // pred_fallthru
          _
        // Predicated region
        $region37: #{spatial_pyramid_pooling.5} parent=31 // pred_check
          %p214 = pneg %p58
        $region38: #{spatial_pyramid_pooling.5} parent=31 // pred_check_branch
          %216 = sbr.rel (%p214) target = $region40
        $region39: #{spatial_pyramid_pooling.5} parent=31 // pred_region
          %s217 = sand.u32 %s48, 1
          %s218 = sand.u32 %s48, 1
          %s219 = smul.addr %s218, 512
          %s220 = scalar_lea.vmem [#allocation2], %s219
          %s221 = smul.u32 32, %s12
          %s222 = smul.addr %s221, 4
          %s223 = scalar_lea.vmem %s1, %s222
          // Predicated region
          $region41: #{spatial_pyramid_pooling.5} parent=39 // pred_check
            _
          $region42: #{spatial_pyramid_pooling.5} parent=39 // pred_check_branch
            %225 = sbr.rel (0) target = $region44
          $region43: #{spatial_pyramid_pooling.5} parent=39 // pred_region
            // Predicated region
            $region45: #{spatial_pyramid_pooling.5} parent=43 // pred_check
              _
            $region46: #{spatial_pyramid_pooling.5} parent=43 // pred_check_branch
              %227 = sbr.rel target = $region48
            $region47: #{spatial_pyramid_pooling.5} parent=43 // pred_region
              // Predicated region
              $region60: #{spatial_pyramid_pooling.5} parent=47 // pred_check
                _
              $region61: #{spatial_pyramid_pooling.5} parent=47 // pred_check_branch
                %496 = sbr.rel (0) target = $region63
              $region62: #{spatial_pyramid_pooling.5} parent=47 // pred_region
                loop: start=0, step=1, limit=1
                $region64: #{spatial_pyramid_pooling.5} parent=62 // loop_pre_header
                  _
                $region65: #{spatial_pyramid_pooling.5} parent=62 // loop_header
                  %s498 = sphi 0, %s502
                  %p499 = scmp.ge.s32.totalorder %s498, 1
                  %s503 = sphi %s223, %s223
                  %s504 = sphi %s220, %s220
                $region66: #{spatial_pyramid_pooling.5} parent=62 // loop_header_branch
                  %501 = sbr.rel (%p499) target = $region70
                $region67: #{spatial_pyramid_pooling.5} parent=62 // loop_body
                  _
                $region68: #{spatial_pyramid_pooling.5} parent=62 // loop_footer
                  %s502 = sadd.s32 1, %s498
                $region69: #{spatial_pyramid_pooling.5} parent=62 // loop_footer_branch
                  %497 = sbr.rel target = $region65
                $region70: #{spatial_pyramid_pooling.5} parent=62 // loop_exit
                  _
                loop: start=0, step=1, limit=1
                $region71: #{spatial_pyramid_pooling.5} parent=62 // loop_pre_header
                  _
                $region72: #{spatial_pyramid_pooling.5} parent=62 // loop_header
                  %s507 = sphi 0, %s511
                  %p508 = scmp.ge.s32.totalorder %s507, 1
                  %s512 = sphi %s223, %s223
                  %s513 = sphi %s220, %s220
                $region73: #{spatial_pyramid_pooling.5} parent=62 // loop_header_branch
                  %510 = sbr.rel (%p508) target = $region77
                $region74: #{spatial_pyramid_pooling.5} parent=62 // loop_body
                  %v514 = vld [vmem:[%s512] sm:$0xf]
                  %515 = vst [vmem:[%s513] sm:$0xf] %v514
                  %v516 = vld [vmem:[%s512 + $0x4] sm:$0xf]
                  %517 = vst [vmem:[%s513 + $0x4] sm:$0xf] %v516
                  %v518 = vld [vmem:[%s512 + $0x8] sm:$0xf]
                  %519 = vst [vmem:[%s513 + $0x8] sm:$0xf] %v518
                  %v520 = vld [vmem:[%s512 + $0xc] sm:$0xf]
                  %521 = vst [vmem:[%s513 + $0xc] sm:$0xf] %v520
                  %v522 = vld [vmem:[%s512 + $0x10] sm:$0xf]
                  %523 = vst [vmem:[%s513 + $0x10] sm:$0xf] %v522
                  %v524 = vld [vmem:[%s512 + $0x14] sm:$0xf]
                  %525 = vst [vmem:[%s513 + $0x14] sm:$0xf] %v524
                  %v526 = vld [vmem:[%s512 + $0x18] sm:$0xf]
                  %527 = vst [vmem:[%s513 + $0x18] sm:$0xf] %v526
                  %v528 = vld [vmem:[%s512 + $0x1c] sm:$0xf]
                  %529 = vst [vmem:[%s513 + $0x1c] sm:$0xf] %v528
                  %v530 = vld [vmem:[%s512 + $0x20] sm:$0xf]
                  %531 = vst [vmem:[%s513 + $0x20] sm:$0xf] %v530
                  %v532 = vld [vmem:[%s512 + $0x24] sm:$0xf]
                  %533 = vst [vmem:[%s513 + $0x24] sm:$0xf] %v532
                  %v534 = vld [vmem:[%s512 + $0x28] sm:$0xf]
                  %535 = vst [vmem:[%s513 + $0x28] sm:$0xf] %v534
                  %v536 = vld [vmem:[%s512 + $0x2c] sm:$0xf]
                  %537 = vst [vmem:[%s513 + $0x2c] sm:$0xf] %v536
                  %v538 = vld [vmem:[%s512 + $0x30] sm:$0xf]
                  %539 = vst [vmem:[%s513 + $0x30] sm:$0xf] %v538
                  %v540 = vld [vmem:[%s512 + $0x34] sm:$0xf]
                  %541 = vst [vmem:[%s513 + $0x34] sm:$0xf] %v540
                  %v542 = vld [vmem:[%s512 + $0x38] sm:$0xf]
                  %543 = vst [vmem:[%s513 + $0x38] sm:$0xf] %v542
                  %v544 = vld [vmem:[%s512 + $0x3c] sm:$0xf]
                  %545 = vst [vmem:[%s513 + $0x3c] sm:$0xf] %v544
                  %v546 = vld [vmem:[%s512 + $0x40] sm:$0xf]
                  %547 = vst [vmem:[%s513 + $0x40] sm:$0xf] %v546
                  %v548 = vld [vmem:[%s512 + $0x44] sm:$0xf]
                  %549 = vst [vmem:[%s513 + $0x44] sm:$0xf] %v548
                  %v550 = vld [vmem:[%s512 + $0x48] sm:$0xf]
                  %551 = vst [vmem:[%s513 + $0x48] sm:$0xf] %v550
                  %v552 = vld [vmem:[%s512 + $0x4c] sm:$0xf]
                  %553 = vst [vmem:[%s513 + $0x4c] sm:$0xf] %v552
                  %v554 = vld [vmem:[%s512 + $0x50] sm:$0xf]
                  %555 = vst [vmem:[%s513 + $0x50] sm:$0xf] %v554
                  %v556 = vld [vmem:[%s512 + $0x54] sm:$0xf]
                  %557 = vst [vmem:[%s513 + $0x54] sm:$0xf] %v556
                  %v558 = vld [vmem:[%s512 + $0x58] sm:$0xf]
                  %559 = vst [vmem:[%s513 + $0x58] sm:$0xf] %v558
                  %v560 = vld [vmem:[%s512 + $0x5c] sm:$0xf]
                  %561 = vst [vmem:[%s513 + $0x5c] sm:$0xf] %v560
                  %v562 = vld [vmem:[%s512 + $0x60] sm:$0xf]
                  %563 = vst [vmem:[%s513 + $0x60] sm:$0xf] %v562
                  %v564 = vld [vmem:[%s512 + $0x64] sm:$0xf]
                  %565 = vst [vmem:[%s513 + $0x64] sm:$0xf] %v564
                  %v566 = vld [vmem:[%s512 + $0x68] sm:$0xf]
                  %567 = vst [vmem:[%s513 + $0x68] sm:$0xf] %v566
                  %v568 = vld [vmem:[%s512 + $0x6c] sm:$0xf]
                  %569 = vst [vmem:[%s513 + $0x6c] sm:$0xf] %v568
                  %v570 = vld [vmem:[%s512 + $0x70] sm:$0xf]
                  %571 = vst [vmem:[%s513 + $0x70] sm:$0xf] %v570
                  %v572 = vld [vmem:[%s512 + $0x74] sm:$0xf]
                  %573 = vst [vmem:[%s513 + $0x74] sm:$0xf] %v572
                  %v574 = vld [vmem:[%s512 + $0x78] sm:$0xf]
                  %575 = vst [vmem:[%s513 + $0x78] sm:$0xf] %v574
                  %v576 = vld [vmem:[%s512 + $0x7c] sm:$0xf]
                  %577 = vst [vmem:[%s513 + $0x7c] sm:$0xf] %v576
                  %v578 = vld [vmem:[%s512 + $0x100] sm:$0xf]
                  %579 = vst [vmem:[%s513 + $0x80] sm:$0xf] %v578
                  %v580 = vld [vmem:[%s512 + $0x104] sm:$0xf]
                  %581 = vst [vmem:[%s513 + $0x84] sm:$0xf] %v580
                  %v582 = vld [vmem:[%s512 + $0x108] sm:$0xf]
                  %583 = vst [vmem:[%s513 + $0x88] sm:$0xf] %v582
                  %v584 = vld [vmem:[%s512 + $0x10c] sm:$0xf]
                  %585 = vst [vmem:[%s513 + $0x8c] sm:$0xf] %v584
                  %v586 = vld [vmem:[%s512 + $0x110] sm:$0xf]
                  %587 = vst [vmem:[%s513 + $0x90] sm:$0xf] %v586
                  %v588 = vld [vmem:[%s512 + $0x114] sm:$0xf]
                  %589 = vst [vmem:[%s513 + $0x94] sm:$0xf] %v588
                  %v590 = vld [vmem:[%s512 + $0x118] sm:$0xf]
                  %591 = vst [vmem:[%s513 + $0x98] sm:$0xf] %v590
                  %v592 = vld [vmem:[%s512 + $0x11c] sm:$0xf]
                  %593 = vst [vmem:[%s513 + $0x9c] sm:$0xf] %v592
                  %v594 = vld [vmem:[%s512 + $0x120] sm:$0xf]
                  %595 = vst [vmem:[%s513 + $0xa0] sm:$0xf] %v594
                  %v596 = vld [vmem:[%s512 + $0x124] sm:$0xf]
                  %597 = vst [vmem:[%s513 + $0xa4] sm:$0xf] %v596
                  %v598 = vld [vmem:[%s512 + $0x128] sm:$0xf]
                  %599 = vst [vmem:[%s513 + $0xa8] sm:$0xf] %v598
                  %v600 = vld [vmem:[%s512 + $0x12c] sm:$0xf]
                  %601 = vst [vmem:[%s513 + $0xac] sm:$0xf] %v600
                  %v602 = vld [vmem:[%s512 + $0x130] sm:$0xf]
                  %603 = vst [vmem:[%s513 + $0xb0] sm:$0xf] %v602
                  %v604 = vld [vmem:[%s512 + $0x134] sm:$0xf]
                  %605 = vst [vmem:[%s513 + $0xb4] sm:$0xf] %v604
                  %v606 = vld [vmem:[%s512 + $0x138] sm:$0xf]
                  %607 = vst [vmem:[%s513 + $0xb8] sm:$0xf] %v606
                  %v608 = vld [vmem:[%s512 + $0x13c] sm:$0xf]
                  %609 = vst [vmem:[%s513 + $0xbc] sm:$0xf] %v608
                  %v610 = vld [vmem:[%s512 + $0x140] sm:$0xf]
                  %611 = vst [vmem:[%s513 + $0xc0] sm:$0xf] %v610
                  %v612 = vld [vmem:[%s512 + $0x144] sm:$0xf]
                  %613 = vst [vmem:[%s513 + $0xc4] sm:$0xf] %v612
                  %v614 = vld [vmem:[%s512 + $0x148] sm:$0xf]
                  %615 = vst [vmem:[%s513 + $0xc8] sm:$0xf] %v614
                  %v616 = vld [vmem:[%s512 + $0x14c] sm:$0xf]
                  %617 = vst [vmem:[%s513 + $0xcc] sm:$0xf] %v616
                  %v618 = vld [vmem:[%s512 + $0x150] sm:$0xf]
                  %619 = vst [vmem:[%s513 + $0xd0] sm:$0xf] %v618
                  %v620 = vld [vmem:[%s512 + $0x154] sm:$0xf]
                  %621 = vst [vmem:[%s513 + $0xd4] sm:$0xf] %v620
                  %v622 = vld [vmem:[%s512 + $0x158] sm:$0xf]
                  %623 = vst [vmem:[%s513 + $0xd8] sm:$0xf] %v622
                  %v624 = vld [vmem:[%s512 + $0x15c] sm:$0xf]
                  %625 = vst [vmem:[%s513 + $0xdc] sm:$0xf] %v624
                  %v626 = vld [vmem:[%s512 + $0x160] sm:$0xf]
                  %627 = vst [vmem:[%s513 + $0xe0] sm:$0xf] %v626
                  %v628 = vld [vmem:[%s512 + $0x164] sm:$0xf]
                  %629 = vst [vmem:[%s513 + $0xe4] sm:$0xf] %v628
                  %v630 = vld [vmem:[%s512 + $0x168] sm:$0xf]
                  %631 = vst [vmem:[%s513 + $0xe8] sm:$0xf] %v630
                  %v632 = vld [vmem:[%s512 + $0x16c] sm:$0xf]
                  %633 = vst [vmem:[%s513 + $0xec] sm:$0xf] %v632
                  %v634 = vld [vmem:[%s512 + $0x170] sm:$0xf]
                  %635 = vst [vmem:[%s513 + $0xf0] sm:$0xf] %v634
                  %v636 = vld [vmem:[%s512 + $0x174] sm:$0xf]
                  %637 = vst [vmem:[%s513 + $0xf4] sm:$0xf] %v636
                  %v638 = vld [vmem:[%s512 + $0x178] sm:$0xf]
                  %639 = vst [vmem:[%s513 + $0xf8] sm:$0xf] %v638
                  %v640 = vld [vmem:[%s512 + $0x17c] sm:$0xf]
                  %641 = vst [vmem:[%s513 + $0xfc] sm:$0xf] %v640
                  %v642 = vld [vmem:[%s512 + $0x200] sm:$0xf]
                  %643 = vst [vmem:[%s513 + $0x100] sm:$0xf] %v642
                  %v644 = vld [vmem:[%s512 + $0x204] sm:$0xf]
                  %645 = vst [vmem:[%s513 + $0x104] sm:$0xf] %v644
                  %v646 = vld [vmem:[%s512 + $0x208] sm:$0xf]
                  %647 = vst [vmem:[%s513 + $0x108] sm:$0xf] %v646
                  %v648 = vld [vmem:[%s512 + $0x20c] sm:$0xf]
                  %649 = vst [vmem:[%s513 + $0x10c] sm:$0xf] %v648
                  %v650 = vld [vmem:[%s512 + $0x210] sm:$0xf]
                  %651 = vst [vmem:[%s513 + $0x110] sm:$0xf] %v650
                  %v652 = vld [vmem:[%s512 + $0x214] sm:$0xf]
                  %653 = vst [vmem:[%s513 + $0x114] sm:$0xf] %v652
                  %v654 = vld [vmem:[%s512 + $0x218] sm:$0xf]
                  %655 = vst [vmem:[%s513 + $0x118] sm:$0xf] %v654
                  %v656 = vld [vmem:[%s512 + $0x21c] sm:$0xf]
                  %657 = vst [vmem:[%s513 + $0x11c] sm:$0xf] %v656
                  %v658 = vld [vmem:[%s512 + $0x220] sm:$0xf]
                  %659 = vst [vmem:[%s513 + $0x120] sm:$0xf] %v658
                  %v660 = vld [vmem:[%s512 + $0x224] sm:$0xf]
                  %661 = vst [vmem:[%s513 + $0x124] sm:$0xf] %v660
                  %v662 = vld [vmem:[%s512 + $0x228] sm:$0xf]
                  %663 = vst [vmem:[%s513 + $0x128] sm:$0xf] %v662
                  %v664 = vld [vmem:[%s512 + $0x22c] sm:$0xf]
                  %665 = vst [vmem:[%s513 + $0x12c] sm:$0xf] %v664
                  %v666 = vld [vmem:[%s512 + $0x230] sm:$0xf]
                  %667 = vst [vmem:[%s513 + $0x130] sm:$0xf] %v666
                  %v668 = vld [vmem:[%s512 + $0x234] sm:$0xf]
                  %669 = vst [vmem:[%s513 + $0x134] sm:$0xf] %v668
                  %v670 = vld [vmem:[%s512 + $0x238] sm:$0xf]
                  %671 = vst [vmem:[%s513 + $0x138] sm:$0xf] %v670
                  %v672 = vld [vmem:[%s512 + $0x23c] sm:$0xf]
                  %673 = vst [vmem:[%s513 + $0x13c] sm:$0xf] %v672
                  %v674 = vld [vmem:[%s512 + $0x240] sm:$0xf]
                  %675 = vst [vmem:[%s513 + $0x140] sm:$0xf] %v674
                  %v676 = vld [vmem:[%s512 + $0x244] sm:$0xf]
                  %677 = vst [vmem:[%s513 + $0x144] sm:$0xf] %v676
                  %v678 = vld [vmem:[%s512 + $0x248] sm:$0xf]
                  %679 = vst [vmem:[%s513 + $0x148] sm:$0xf] %v678
                  %v680 = vld [vmem:[%s512 + $0x24c] sm:$0xf]
                  %681 = vst [vmem:[%s513 + $0x14c] sm:$0xf] %v680
                  %v682 = vld [vmem:[%s512 + $0x250] sm:$0xf]
                  %683 = vst [vmem:[%s513 + $0x150] sm:$0xf] %v682
                  %v684 = vld [vmem:[%s512 + $0x254] sm:$0xf]
                  %685 = vst [vmem:[%s513 + $0x154] sm:$0xf] %v684
                  %v686 = vld [vmem:[%s512 + $0x258] sm:$0xf]
                  %687 = vst [vmem:[%s513 + $0x158] sm:$0xf] %v686
                  %v688 = vld [vmem:[%s512 + $0x25c] sm:$0xf]
                  %689 = vst [vmem:[%s513 + $0x15c] sm:$0xf] %v688
                  %v690 = vld [vmem:[%s512 + $0x260] sm:$0xf]
                  %691 = vst [vmem:[%s513 + $0x160] sm:$0xf] %v690
                  %v692 = vld [vmem:[%s512 + $0x264] sm:$0xf]
                  %693 = vst [vmem:[%s513 + $0x164] sm:$0xf] %v692
                  %v694 = vld [vmem:[%s512 + $0x268] sm:$0xf]
                  %695 = vst [vmem:[%s513 + $0x168] sm:$0xf] %v694
                  %v696 = vld [vmem:[%s512 + $0x26c] sm:$0xf]
                  %697 = vst [vmem:[%s513 + $0x16c] sm:$0xf] %v696
                  %v698 = vld [vmem:[%s512 + $0x270] sm:$0xf]
                  %699 = vst [vmem:[%s513 + $0x170] sm:$0xf] %v698
                  %v700 = vld [vmem:[%s512 + $0x274] sm:$0xf]
                  %701 = vst [vmem:[%s513 + $0x174] sm:$0xf] %v700
                  %v702 = vld [vmem:[%s512 + $0x278] sm:$0xf]
                  %703 = vst [vmem:[%s513 + $0x178] sm:$0xf] %v702
                  %v704 = vld [vmem:[%s512 + $0x27c] sm:$0xf]
                  %705 = vst [vmem:[%s513 + $0x17c] sm:$0xf] %v704
                  %v706 = vld [vmem:[%s512 + $0x300] sm:$0xf]
                  %707 = vst [vmem:[%s513 + $0x180] sm:$0xf] %v706
                  %v708 = vld [vmem:[%s512 + $0x304] sm:$0xf]
                  %709 = vst [vmem:[%s513 + $0x184] sm:$0xf] %v708
                  %v710 = vld [vmem:[%s512 + $0x308] sm:$0xf]
                  %711 = vst [vmem:[%s513 + $0x188] sm:$0xf] %v710
                  %v712 = vld [vmem:[%s512 + $0x30c] sm:$0xf]
                  %713 = vst [vmem:[%s513 + $0x18c] sm:$0xf] %v712
                  %v714 = vld [vmem:[%s512 + $0x310] sm:$0xf]
                  %715 = vst [vmem:[%s513 + $0x190] sm:$0xf] %v714
                  %v716 = vld [vmem:[%s512 + $0x314] sm:$0xf]
                  %717 = vst [vmem:[%s513 + $0x194] sm:$0xf] %v716
                  %v718 = vld [vmem:[%s512 + $0x318] sm:$0xf]
                  %719 = vst [vmem:[%s513 + $0x198] sm:$0xf] %v718
                  %v720 = vld [vmem:[%s512 + $0x31c] sm:$0xf]
                  %721 = vst [vmem:[%s513 + $0x19c] sm:$0xf] %v720
                  %v722 = vld [vmem:[%s512 + $0x320] sm:$0xf]
                  %723 = vst [vmem:[%s513 + $0x1a0] sm:$0xf] %v722
                  %v724 = vld [vmem:[%s512 + $0x324] sm:$0xf]
                  %725 = vst [vmem:[%s513 + $0x1a4] sm:$0xf] %v724
                  %v726 = vld [vmem:[%s512 + $0x328] sm:$0xf]
                  %727 = vst [vmem:[%s513 + $0x1a8] sm:$0xf] %v726
                  %v728 = vld [vmem:[%s512 + $0x32c] sm:$0xf]
                  %729 = vst [vmem:[%s513 + $0x1ac] sm:$0xf] %v728
                  %v730 = vld [vmem:[%s512 + $0x330] sm:$0xf]
                  %731 = vst [vmem:[%s513 + $0x1b0] sm:$0xf] %v730
                  %v732 = vld [vmem:[%s512 + $0x334] sm:$0xf]
                  %733 = vst [vmem:[%s513 + $0x1b4] sm:$0xf] %v732
                  %v734 = vld [vmem:[%s512 + $0x338] sm:$0xf]
                  %735 = vst [vmem:[%s513 + $0x1b8] sm:$0xf] %v734
                  %v736 = vld [vmem:[%s512 + $0x33c] sm:$0xf]
                  %737 = vst [vmem:[%s513 + $0x1bc] sm:$0xf] %v736
                  %v738 = vld [vmem:[%s512 + $0x340] sm:$0xf]
                  %739 = vst [vmem:[%s513 + $0x1c0] sm:$0xf] %v738
                  %v740 = vld [vmem:[%s512 + $0x344] sm:$0xf]
                  %741 = vst [vmem:[%s513 + $0x1c4] sm:$0xf] %v740
                  %v742 = vld [vmem:[%s512 + $0x348] sm:$0xf]
                  %743 = vst [vmem:[%s513 + $0x1c8] sm:$0xf] %v742
                  %v744 = vld [vmem:[%s512 + $0x34c] sm:$0xf]
                  %745 = vst [vmem:[%s513 + $0x1cc] sm:$0xf] %v744
                  %v746 = vld [vmem:[%s512 + $0x350] sm:$0xf]
                  %747 = vst [vmem:[%s513 + $0x1d0] sm:$0xf] %v746
                  %v748 = vld [vmem:[%s512 + $0x354] sm:$0xf]
                  %749 = vst [vmem:[%s513 + $0x1d4] sm:$0xf] %v748
                  %v750 = vld [vmem:[%s512 + $0x358] sm:$0xf]
                  %751 = vst [vmem:[%s513 + $0x1d8] sm:$0xf] %v750
                  %v752 = vld [vmem:[%s512 + $0x35c] sm:$0xf]
                  %753 = vst [vmem:[%s513 + $0x1dc] sm:$0xf] %v752
                  %v754 = vld [vmem:[%s512 + $0x360] sm:$0xf]
                  %755 = vst [vmem:[%s513 + $0x1e0] sm:$0xf] %v754
                  %v756 = vld [vmem:[%s512 + $0x364] sm:$0xf]
                  %757 = vst [vmem:[%s513 + $0x1e4] sm:$0xf] %v756
                  %v758 = vld [vmem:[%s512 + $0x368] sm:$0xf]
                  %759 = vst [vmem:[%s513 + $0x1e8] sm:$0xf] %v758
                  %v760 = vld [vmem:[%s512 + $0x36c] sm:$0xf]
                  %761 = vst [vmem:[%s513 + $0x1ec] sm:$0xf] %v760
                  %v762 = vld [vmem:[%s512 + $0x370] sm:$0xf]
                  %763 = vst [vmem:[%s513 + $0x1f0] sm:$0xf] %v762
                  %v764 = vld [vmem:[%s512 + $0x374] sm:$0xf]
                  %765 = vst [vmem:[%s513 + $0x1f4] sm:$0xf] %v764
                  %v766 = vld [vmem:[%s512 + $0x378] sm:$0xf]
                  %767 = vst [vmem:[%s513 + $0x1f8] sm:$0xf] %v766
                  %v768 = vld [vmem:[%s512 + $0x37c] sm:$0xf]
                  %769 = vst [vmem:[%s513 + $0x1fc] sm:$0xf] %v768
                $region75: #{spatial_pyramid_pooling.5} parent=62 // loop_footer
                  %s511 = sadd.s32 1, %s507
                $region76: #{spatial_pyramid_pooling.5} parent=62 // loop_footer_branch
                  %506 = sbr.rel target = $region72
                $region77: #{spatial_pyramid_pooling.5} parent=62 // loop_exit
                  _
              $region63: #{spatial_pyramid_pooling.5} parent=47 // pred_fallthru
                _
            $region48: #{spatial_pyramid_pooling.5} parent=43 // pred_fallthru
              _
            // Predicated region
            $region49: #{spatial_pyramid_pooling.5} parent=43 // pred_check
              _
            $region50: #{spatial_pyramid_pooling.5} parent=43 // pred_check_branch
              %229 = sbr.rel (0) target = $region52
            $region51: #{spatial_pyramid_pooling.5} parent=43 // pred_region
              loop: start=0, step=1, limit=1
              $region53: #{spatial_pyramid_pooling.5} parent=51 // loop_pre_header
                _
              $region54: #{spatial_pyramid_pooling.5} parent=51 // loop_header
                %s232 = sphi 0, %s236
                %p233 = scmp.ge.s32.totalorder %s232, 1
                %s237 = sphi %s223, %s223
                %s238 = sphi %s220, %s220
              $region55: #{spatial_pyramid_pooling.5} parent=51 // loop_header_branch
                %235 = sbr.rel (%p233) target = $region59
              $region56: #{spatial_pyramid_pooling.5} parent=51 // loop_body
                %v239 = vld [vmem:[%s237] sm:$0xf]
                %240 = vst [vmem:[%s238] sm:$0xf] %v239
                %v241 = vld [vmem:[%s237 + $0x4] sm:$0xf]
                %242 = vst [vmem:[%s238 + $0x4] sm:$0xf] %v241
                %v243 = vld [vmem:[%s237 + $0x8] sm:$0xf]
                %244 = vst [vmem:[%s238 + $0x8] sm:$0xf] %v243
                %v245 = vld [vmem:[%s237 + $0xc] sm:$0xf]
                %246 = vst [vmem:[%s238 + $0xc] sm:$0xf] %v245
                %v247 = vld [vmem:[%s237 + $0x10] sm:$0xf]
                %248 = vst [vmem:[%s238 + $0x10] sm:$0xf] %v247
                %v249 = vld [vmem:[%s237 + $0x14] sm:$0xf]
                %250 = vst [vmem:[%s238 + $0x14] sm:$0xf] %v249
                %v251 = vld [vmem:[%s237 + $0x18] sm:$0xf]
                %252 = vst [vmem:[%s238 + $0x18] sm:$0xf] %v251
                %v253 = vld [vmem:[%s237 + $0x1c] sm:$0xf]
                %254 = vst [vmem:[%s238 + $0x1c] sm:$0xf] %v253
                %v255 = vld [vmem:[%s237 + $0x20] sm:$0xf]
                %256 = vst [vmem:[%s238 + $0x20] sm:$0xf] %v255
                %v257 = vld [vmem:[%s237 + $0x24] sm:$0xf]
                %258 = vst [vmem:[%s238 + $0x24] sm:$0xf] %v257
                %v259 = vld [vmem:[%s237 + $0x28] sm:$0xf]
                %260 = vst [vmem:[%s238 + $0x28] sm:$0xf] %v259
                %v261 = vld [vmem:[%s237 + $0x2c] sm:$0xf]
                %262 = vst [vmem:[%s238 + $0x2c] sm:$0xf] %v261
                %v263 = vld [vmem:[%s237 + $0x30] sm:$0xf]
                %264 = vst [vmem:[%s238 + $0x30] sm:$0xf] %v263
                %v265 = vld [vmem:[%s237 + $0x34] sm:$0xf]
                %266 = vst [vmem:[%s238 + $0x34] sm:$0xf] %v265
                %v267 = vld [vmem:[%s237 + $0x38] sm:$0xf]
                %268 = vst [vmem:[%s238 + $0x38] sm:$0xf] %v267
                %v269 = vld [vmem:[%s237 + $0x3c] sm:$0xf]
                %270 = vst [vmem:[%s238 + $0x3c] sm:$0xf] %v269
                %v271 = vld [vmem:[%s237 + $0x40] sm:$0xf]
                %272 = vst [vmem:[%s238 + $0x40] sm:$0xf] %v271
                %v273 = vld [vmem:[%s237 + $0x44] sm:$0xf]
                %274 = vst [vmem:[%s238 + $0x44] sm:$0xf] %v273
                %v275 = vld [vmem:[%s237 + $0x48] sm:$0xf]
                %276 = vst [vmem:[%s238 + $0x48] sm:$0xf] %v275
                %v277 = vld [vmem:[%s237 + $0x4c] sm:$0xf]
                %278 = vst [vmem:[%s238 + $0x4c] sm:$0xf] %v277
                %v279 = vld [vmem:[%s237 + $0x50] sm:$0xf]
                %280 = vst [vmem:[%s238 + $0x50] sm:$0xf] %v279
                %v281 = vld [vmem:[%s237 + $0x54] sm:$0xf]
                %282 = vst [vmem:[%s238 + $0x54] sm:$0xf] %v281
                %v283 = vld [vmem:[%s237 + $0x58] sm:$0xf]
                %284 = vst [vmem:[%s238 + $0x58] sm:$0xf] %v283
                %v285 = vld [vmem:[%s237 + $0x5c] sm:$0xf]
                %286 = vst [vmem:[%s238 + $0x5c] sm:$0xf] %v285
                %v287 = vld [vmem:[%s237 + $0x60] sm:$0xf]
                %288 = vst [vmem:[%s238 + $0x60] sm:$0xf] %v287
                %v289 = vld [vmem:[%s237 + $0x64] sm:$0xf]
                %290 = vst [vmem:[%s238 + $0x64] sm:$0xf] %v289
                %v291 = vld [vmem:[%s237 + $0x68] sm:$0xf]
                %292 = vst [vmem:[%s238 + $0x68] sm:$0xf] %v291
                %v293 = vld [vmem:[%s237 + $0x6c] sm:$0xf]
                %294 = vst [vmem:[%s238 + $0x6c] sm:$0xf] %v293
                %v295 = vld [vmem:[%s237 + $0x70] sm:$0xf]
                %296 = vst [vmem:[%s238 + $0x70] sm:$0xf] %v295
                %v297 = vld [vmem:[%s237 + $0x74] sm:$0xf]
                %298 = vst [vmem:[%s238 + $0x74] sm:$0xf] %v297
                %v299 = vld [vmem:[%s237 + $0x78] sm:$0xf]
                %300 = vst [vmem:[%s238 + $0x78] sm:$0xf] %v299
                %v301 = vld [vmem:[%s237 + $0x7c] sm:$0xf]
                %302 = vst [vmem:[%s238 + $0x7c] sm:$0xf] %v301
                %v303 = vld [vmem:[%s237 + $0x100] sm:$0xf]
                %304 = vst [vmem:[%s238 + $0x80] sm:$0xf] %v303
                %v305 = vld [vmem:[%s237 + $0x104] sm:$0xf]
                %306 = vst [vmem:[%s238 + $0x84] sm:$0xf] %v305
                %v307 = vld [vmem:[%s237 + $0x108] sm:$0xf]
                %308 = vst [vmem:[%s238 + $0x88] sm:$0xf] %v307
                %v309 = vld [vmem:[%s237 + $0x10c] sm:$0xf]
                %310 = vst [vmem:[%s238 + $0x8c] sm:$0xf] %v309
                %v311 = vld [vmem:[%s237 + $0x110] sm:$0xf]
                %312 = vst [vmem:[%s238 + $0x90] sm:$0xf] %v311
                %v313 = vld [vmem:[%s237 + $0x114] sm:$0xf]
                %314 = vst [vmem:[%s238 + $0x94] sm:$0xf] %v313
                %v315 = vld [vmem:[%s237 + $0x118] sm:$0xf]
                %316 = vst [vmem:[%s238 + $0x98] sm:$0xf] %v315
                %v317 = vld [vmem:[%s237 + $0x11c] sm:$0xf]
                %318 = vst [vmem:[%s238 + $0x9c] sm:$0xf] %v317
                %v319 = vld [vmem:[%s237 + $0x120] sm:$0xf]
                %320 = vst [vmem:[%s238 + $0xa0] sm:$0xf] %v319
                %v321 = vld [vmem:[%s237 + $0x124] sm:$0xf]
                %322 = vst [vmem:[%s238 + $0xa4] sm:$0xf] %v321
                %v323 = vld [vmem:[%s237 + $0x128] sm:$0xf]
                %324 = vst [vmem:[%s238 + $0xa8] sm:$0xf] %v323
                %v325 = vld [vmem:[%s237 + $0x12c] sm:$0xf]
                %326 = vst [vmem:[%s238 + $0xac] sm:$0xf] %v325
                %v327 = vld [vmem:[%s237 + $0x130] sm:$0xf]
                %328 = vst [vmem:[%s238 + $0xb0] sm:$0xf] %v327
                %v329 = vld [vmem:[%s237 + $0x134] sm:$0xf]
                %330 = vst [vmem:[%s238 + $0xb4] sm:$0xf] %v329
                %v331 = vld [vmem:[%s237 + $0x138] sm:$0xf]
                %332 = vst [vmem:[%s238 + $0xb8] sm:$0xf] %v331
                %v333 = vld [vmem:[%s237 + $0x13c] sm:$0xf]
                %334 = vst [vmem:[%s238 + $0xbc] sm:$0xf] %v333
                %v335 = vld [vmem:[%s237 + $0x140] sm:$0xf]
                %336 = vst [vmem:[%s238 + $0xc0] sm:$0xf] %v335
                %v337 = vld [vmem:[%s237 + $0x144] sm:$0xf]
                %338 = vst [vmem:[%s238 + $0xc4] sm:$0xf] %v337
                %v339 = vld [vmem:[%s237 + $0x148] sm:$0xf]
                %340 = vst [vmem:[%s238 + $0xc8] sm:$0xf] %v339
                %v341 = vld [vmem:[%s237 + $0x14c] sm:$0xf]
                %342 = vst [vmem:[%s238 + $0xcc] sm:$0xf] %v341
                %v343 = vld [vmem:[%s237 + $0x150] sm:$0xf]
                %344 = vst [vmem:[%s238 + $0xd0] sm:$0xf] %v343
                %v345 = vld [vmem:[%s237 + $0x154] sm:$0xf]
                %346 = vst [vmem:[%s238 + $0xd4] sm:$0xf] %v345
                %v347 = vld [vmem:[%s237 + $0x158] sm:$0xf]
                %348 = vst [vmem:[%s238 + $0xd8] sm:$0xf] %v347
                %v349 = vld [vmem:[%s237 + $0x15c] sm:$0xf]
                %350 = vst [vmem:[%s238 + $0xdc] sm:$0xf] %v349
                %v351 = vld [vmem:[%s237 + $0x160] sm:$0xf]
                %352 = vst [vmem:[%s238 + $0xe0] sm:$0xf] %v351
                %v353 = vld [vmem:[%s237 + $0x164] sm:$0xf]
                %354 = vst [vmem:[%s238 + $0xe4] sm:$0xf] %v353
                %v355 = vld [vmem:[%s237 + $0x168] sm:$0xf]
                %356 = vst [vmem:[%s238 + $0xe8] sm:$0xf] %v355
                %v357 = vld [vmem:[%s237 + $0x16c] sm:$0xf]
                %358 = vst [vmem:[%s238 + $0xec] sm:$0xf] %v357
                %v359 = vld [vmem:[%s237 + $0x170] sm:$0xf]
                %360 = vst [vmem:[%s238 + $0xf0] sm:$0xf] %v359
                %v361 = vld [vmem:[%s237 + $0x174] sm:$0xf]
                %362 = vst [vmem:[%s238 + $0xf4] sm:$0xf] %v361
                %v363 = vld [vmem:[%s237 + $0x178] sm:$0xf]
                %364 = vst [vmem:[%s238 + $0xf8] sm:$0xf] %v363
                %v365 = vld [vmem:[%s237 + $0x17c] sm:$0xf]
                %366 = vst [vmem:[%s238 + $0xfc] sm:$0xf] %v365
                %v367 = vld [vmem:[%s237 + $0x200] sm:$0xf]
                %368 = vst [vmem:[%s238 + $0x100] sm:$0xf] %v367
                %v369 = vld [vmem:[%s237 + $0x204] sm:$0xf]
                %370 = vst [vmem:[%s238 + $0x104] sm:$0xf] %v369
                %v371 = vld [vmem:[%s237 + $0x208] sm:$0xf]
                %372 = vst [vmem:[%s238 + $0x108] sm:$0xf] %v371
                %v373 = vld [vmem:[%s237 + $0x20c] sm:$0xf]
                %374 = vst [vmem:[%s238 + $0x10c] sm:$0xf] %v373
                %v375 = vld [vmem:[%s237 + $0x210] sm:$0xf]
                %376 = vst [vmem:[%s238 + $0x110] sm:$0xf] %v375
                %v377 = vld [vmem:[%s237 + $0x214] sm:$0xf]
                %378 = vst [vmem:[%s238 + $0x114] sm:$0xf] %v377
                %v379 = vld [vmem:[%s237 + $0x218] sm:$0xf]
                %380 = vst [vmem:[%s238 + $0x118] sm:$0xf] %v379
                %v381 = vld [vmem:[%s237 + $0x21c] sm:$0xf]
                %382 = vst [vmem:[%s238 + $0x11c] sm:$0xf] %v381
                %v383 = vld [vmem:[%s237 + $0x220] sm:$0xf]
                %384 = vst [vmem:[%s238 + $0x120] sm:$0xf] %v383
                %v385 = vld [vmem:[%s237 + $0x224] sm:$0xf]
                %386 = vst [vmem:[%s238 + $0x124] sm:$0xf] %v385
                %v387 = vld [vmem:[%s237 + $0x228] sm:$0xf]
                %388 = vst [vmem:[%s238 + $0x128] sm:$0xf] %v387
                %v389 = vld [vmem:[%s237 + $0x22c] sm:$0xf]
                %390 = vst [vmem:[%s238 + $0x12c] sm:$0xf] %v389
                %v391 = vld [vmem:[%s237 + $0x230] sm:$0xf]
                %392 = vst [vmem:[%s238 + $0x130] sm:$0xf] %v391
                %v393 = vld [vmem:[%s237 + $0x234] sm:$0xf]
                %394 = vst [vmem:[%s238 + $0x134] sm:$0xf] %v393
                %v395 = vld [vmem:[%s237 + $0x238] sm:$0xf]
                %396 = vst [vmem:[%s238 + $0x138] sm:$0xf] %v395
                %v397 = vld [vmem:[%s237 + $0x23c] sm:$0xf]
                %398 = vst [vmem:[%s238 + $0x13c] sm:$0xf] %v397
                %v399 = vld [vmem:[%s237 + $0x240] sm:$0xf]
                %400 = vst [vmem:[%s238 + $0x140] sm:$0xf] %v399
                %v401 = vld [vmem:[%s237 + $0x244] sm:$0xf]
                %402 = vst [vmem:[%s238 + $0x144] sm:$0xf] %v401
                %v403 = vld [vmem:[%s237 + $0x248] sm:$0xf]
                %404 = vst [vmem:[%s238 + $0x148] sm:$0xf] %v403
                %v405 = vld [vmem:[%s237 + $0x24c] sm:$0xf]
                %406 = vst [vmem:[%s238 + $0x14c] sm:$0xf] %v405
                %v407 = vld [vmem:[%s237 + $0x250] sm:$0xf]
                %408 = vst [vmem:[%s238 + $0x150] sm:$0xf] %v407
                %v409 = vld [vmem:[%s237 + $0x254] sm:$0xf]
                %410 = vst [vmem:[%s238 + $0x154] sm:$0xf] %v409
                %v411 = vld [vmem:[%s237 + $0x258] sm:$0xf]
                %412 = vst [vmem:[%s238 + $0x158] sm:$0xf] %v411
                %v413 = vld [vmem:[%s237 + $0x25c] sm:$0xf]
                %414 = vst [vmem:[%s238 + $0x15c] sm:$0xf] %v413
                %v415 = vld [vmem:[%s237 + $0x260] sm:$0xf]
                %416 = vst [vmem:[%s238 + $0x160] sm:$0xf] %v415
                %v417 = vld [vmem:[%s237 + $0x264] sm:$0xf]
                %418 = vst [vmem:[%s238 + $0x164] sm:$0xf] %v417
                %v419 = vld [vmem:[%s237 + $0x268] sm:$0xf]
                %420 = vst [vmem:[%s238 + $0x168] sm:$0xf] %v419
                %v421 = vld [vmem:[%s237 + $0x26c] sm:$0xf]
                %422 = vst [vmem:[%s238 + $0x16c] sm:$0xf] %v421
                %v423 = vld [vmem:[%s237 + $0x270] sm:$0xf]
                %424 = vst [vmem:[%s238 + $0x170] sm:$0xf] %v423
                %v425 = vld [vmem:[%s237 + $0x274] sm:$0xf]
                %426 = vst [vmem:[%s238 + $0x174] sm:$0xf] %v425
                %v427 = vld [vmem:[%s237 + $0x278] sm:$0xf]
                %428 = vst [vmem:[%s238 + $0x178] sm:$0xf] %v427
                %v429 = vld [vmem:[%s237 + $0x27c] sm:$0xf]
                %430 = vst [vmem:[%s238 + $0x17c] sm:$0xf] %v429
                %v431 = vld [vmem:[%s237 + $0x300] sm:$0xf]
                %432 = vst [vmem:[%s238 + $0x180] sm:$0xf] %v431
                %v433 = vld [vmem:[%s237 + $0x304] sm:$0xf]
                %434 = vst [vmem:[%s238 + $0x184] sm:$0xf] %v433
                %v435 = vld [vmem:[%s237 + $0x308] sm:$0xf]
                %436 = vst [vmem:[%s238 + $0x188] sm:$0xf] %v435
                %v437 = vld [vmem:[%s237 + $0x30c] sm:$0xf]
                %438 = vst [vmem:[%s238 + $0x18c] sm:$0xf] %v437
                %v439 = vld [vmem:[%s237 + $0x310] sm:$0xf]
                %440 = vst [vmem:[%s238 + $0x190] sm:$0xf] %v439
                %v441 = vld [vmem:[%s237 + $0x314] sm:$0xf]
                %442 = vst [vmem:[%s238 + $0x194] sm:$0xf] %v441
                %v443 = vld [vmem:[%s237 + $0x318] sm:$0xf]
                %444 = vst [vmem:[%s238 + $0x198] sm:$0xf] %v443
                %v445 = vld [vmem:[%s237 + $0x31c] sm:$0xf]
                %446 = vst [vmem:[%s238 + $0x19c] sm:$0xf] %v445
                %v447 = vld [vmem:[%s237 + $0x320] sm:$0xf]
                %448 = vst [vmem:[%s238 + $0x1a0] sm:$0xf] %v447
                %v449 = vld [vmem:[%s237 + $0x324] sm:$0xf]
                %450 = vst [vmem:[%s238 + $0x1a4] sm:$0xf] %v449
                %v451 = vld [vmem:[%s237 + $0x328] sm:$0xf]
                %452 = vst [vmem:[%s238 + $0x1a8] sm:$0xf] %v451
                %v453 = vld [vmem:[%s237 + $0x32c] sm:$0xf]
                %454 = vst [vmem:[%s238 + $0x1ac] sm:$0xf] %v453
                %v455 = vld [vmem:[%s237 + $0x330] sm:$0xf]
                %456 = vst [vmem:[%s238 + $0x1b0] sm:$0xf] %v455
                %v457 = vld [vmem:[%s237 + $0x334] sm:$0xf]
                %458 = vst [vmem:[%s238 + $0x1b4] sm:$0xf] %v457
                %v459 = vld [vmem:[%s237 + $0x338] sm:$0xf]
                %460 = vst [vmem:[%s238 + $0x1b8] sm:$0xf] %v459
                %v461 = vld [vmem:[%s237 + $0x33c] sm:$0xf]
                %462 = vst [vmem:[%s238 + $0x1bc] sm:$0xf] %v461
                %v463 = vld [vmem:[%s237 + $0x340] sm:$0xf]
                %464 = vst [vmem:[%s238 + $0x1c0] sm:$0xf] %v463
                %v465 = vld [vmem:[%s237 + $0x344] sm:$0xf]
                %466 = vst [vmem:[%s238 + $0x1c4] sm:$0xf] %v465
                %v467 = vld [vmem:[%s237 + $0x348] sm:$0xf]
                %468 = vst [vmem:[%s238 + $0x1c8] sm:$0xf] %v467
                %v469 = vld [vmem:[%s237 + $0x34c] sm:$0xf]
                %470 = vst [vmem:[%s238 + $0x1cc] sm:$0xf] %v469
                %v471 = vld [vmem:[%s237 + $0x350] sm:$0xf]
                %472 = vst [vmem:[%s238 + $0x1d0] sm:$0xf] %v471
                %v473 = vld [vmem:[%s237 + $0x354] sm:$0xf]
                %474 = vst [vmem:[%s238 + $0x1d4] sm:$0xf] %v473
                %v475 = vld [vmem:[%s237 + $0x358] sm:$0xf]
                %476 = vst [vmem:[%s238 + $0x1d8] sm:$0xf] %v475
                %v477 = vld [vmem:[%s237 + $0x35c] sm:$0xf]
                %478 = vst [vmem:[%s238 + $0x1dc] sm:$0xf] %v477
                %v479 = vld [vmem:[%s237 + $0x360] sm:$0xf]
                %480 = vst [vmem:[%s238 + $0x1e0] sm:$0xf] %v479
                %v481 = vld [vmem:[%s237 + $0x364] sm:$0xf]
                %482 = vst [vmem:[%s238 + $0x1e4] sm:$0xf] %v481
                %v483 = vld [vmem:[%s237 + $0x368] sm:$0xf]
                %484 = vst [vmem:[%s238 + $0x1e8] sm:$0xf] %v483
                %v485 = vld [vmem:[%s237 + $0x36c] sm:$0xf]
                %486 = vst [vmem:[%s238 + $0x1ec] sm:$0xf] %v485
                %v487 = vld [vmem:[%s237 + $0x370] sm:$0xf]
                %488 = vst [vmem:[%s238 + $0x1f0] sm:$0xf] %v487
                %v489 = vld [vmem:[%s237 + $0x374] sm:$0xf]
                %490 = vst [vmem:[%s238 + $0x1f4] sm:$0xf] %v489
                %v491 = vld [vmem:[%s237 + $0x378] sm:$0xf]
                %492 = vst [vmem:[%s238 + $0x1f8] sm:$0xf] %v491
                %v493 = vld [vmem:[%s237 + $0x37c] sm:$0xf]
                %494 = vst [vmem:[%s238 + $0x1fc] sm:$0xf] %v493
              $region57: #{spatial_pyramid_pooling.5} parent=51 // loop_footer
                %s236 = sadd.s32 1, %s232
              $region58: #{spatial_pyramid_pooling.5} parent=51 // loop_footer_branch
                %231 = sbr.rel target = $region54
              $region59: #{spatial_pyramid_pooling.5} parent=51 // loop_exit
                _
            $region52: #{spatial_pyramid_pooling.5} parent=43 // pred_fallthru
              _
          $region44: #{spatial_pyramid_pooling.5} parent=39 // pred_fallthru
            _
          %770 = vnop
        $region40: #{spatial_pyramid_pooling.5} parent=31 // pred_fallthru
          _
      $region32: #{spatial_pyramid_pooling.5} parent=5 // pred_fallthru
        _
      %p771 = scmp.le.s32.totalorder 1, %s12
      %p772 = scmp.lt.s32.totalorder %s12, 3
      %p773 = pnand %p771, %p772
      %p774 = pneg %p773
      // Predicated region
      $region78: #{spatial_pyramid_pooling.5} parent=5 // pred_check
        _
      $region79: #{spatial_pyramid_pooling.5} parent=5 // pred_check_branch
        %776 = sbr.rel (%p773) target = $region81
      $region80: #{spatial_pyramid_pooling.5} parent=5 // pred_region
        %s777 = ssub.s32 %s12, 1
        %s778 = sand.u32 %s51, 1
        %s779 = sand.u32 %s51, 1
        %s780 = smul.addr %s779, 512
        %s781 = scalar_lea.vmem [#allocation2], %s780
        // Predicated region
        $region82: #{spatial_pyramid_pooling.5} parent=80 // pred_check
          %p782 = pneg %p64
        $region83: #{spatial_pyramid_pooling.5} parent=80 // pred_check_branch
          %784 = sbr.rel (%p782) target = $region85
        $region84: #{spatial_pyramid_pooling.5} parent=80 // pred_region
          _
        $region85: #{spatial_pyramid_pooling.5} parent=80 // pred_fallthru
          _
        %s785 = smul.u32 32, %s17
        %p786 = scmp.lt.s32.totalorder %s785, 63
        %s787 = scalar_select %p786, %s785, 63
        %s788 = smul.addr %s787, 4
        %s789 = scalar_lea.vmem %s0, %s788
        %p790 = pneg %p38
        %p791 = pneg %p35
        %s792 = sand.u32 %s51, 1
        %s793 = sand.u32 %s51, 1
        %s794 = smul.addr %s793, 512
        %s795 = scalar_lea.vmem [#allocation2], %s794
        %p796 = pneg %p64
        %p797 = pneg %p61
        %p798 = pneg %p85
        %p799 = pneg %p82
        %p800 = pneg %p106
        %p801 = pneg %p103
        %p802 = pneg %p127
        %p803 = pneg %p124
        %p804 = pneg %p148
        %p805 = pneg %p145
        %p806 = pneg %p174
        %p807 = pneg %p171
        %s808 = smul.u32 32, %s17
        %p809 = scmp.lt.s32.totalorder %s808, 63
        %s810 = scalar_select %p809, %s808, 63
        %s811 = smul.addr %s810, 8
        %s812 = scalar_lea.vmem %s6, %s811
        %s813 = smul.u32 32, %s17
        %p814 = scmp.lt.s32.totalorder %s813, 63
        %s815 = scalar_select %p814, %s813, 63
        %s816 = smul.addr %s815, 4
        %s817 = scalar_lea.vmem %s0, %s816
        %s818 = smul.u32 32, %s17
        %s819 = smul.u32 32, %s17
        %s820 = smul.u32 32, %s17
        %p821 = scmp.lt.s32.totalorder %s820, 63
        %s822 = scalar_select %p821, %s820, 63
        %s823 = smul.addr %s822, 8
        %s824 = scalar_lea.vmem %s6, %s823
        %s825 = smul.u32 32, %s17
        %v827 = vld [vmem:[%s817] sm:$0xf]
        %v828 = vld [vmem:[%s817 + $0x4] sm:$0xf]
        %v829 = vld [vmem:[%s817 + $0x8] sm:$0xf]
        %v830 = vld [vmem:[%s817 + $0xc] sm:$0xf]
        %v831 = vld [vmem:[%s817 + $0x10] sm:$0xf]
        %v832 = vld [vmem:[%s817 + $0x14] sm:$0xf]
        %v833 = vld [vmem:[%s817 + $0x18] sm:$0xf]
        %v834 = vld [vmem:[%s817 + $0x1c] sm:$0xf]
        %v835 = vld [vmem:[%s817 + $0x20] sm:$0xf]
        %v836 = vld [vmem:[%s817 + $0x24] sm:$0xf]
        %v837 = vld [vmem:[%s817 + $0x28] sm:$0xf]
        %v838 = vld [vmem:[%s817 + $0x2c] sm:$0xf]
        %v839 = vld [vmem:[%s817 + $0x30] sm:$0xf]
        %v840 = vld [vmem:[%s817 + $0x34] sm:$0xf]
        %v841 = vld [vmem:[%s817 + $0x38] sm:$0xf]
        %v842 = vld [vmem:[%s817 + $0x3c] sm:$0xf]
        %v843 = vld [vmem:[%s817 + $0x40] sm:$0xf]
        %v844 = vld [vmem:[%s817 + $0x44] sm:$0xf]
        %v845 = vld [vmem:[%s817 + $0x48] sm:$0xf]
        %v846 = vld [vmem:[%s817 + $0x4c] sm:$0xf]
        %v847 = vld [vmem:[%s817 + $0x50] sm:$0xf]
        %v848 = vld [vmem:[%s817 + $0x54] sm:$0xf]
        %v849 = vld [vmem:[%s817 + $0x58] sm:$0xf]
        %v850 = vld [vmem:[%s817 + $0x5c] sm:$0xf]
        %v851 = vld [vmem:[%s817 + $0x60] sm:$0xf]
        %v852 = vld [vmem:[%s817 + $0x64] sm:$0xf]
        %v853 = vld [vmem:[%s817 + $0x68] sm:$0xf]
        %v854 = vld [vmem:[%s817 + $0x6c] sm:$0xf]
        %v855 = vld [vmem:[%s817 + $0x70] sm:$0xf]
        %v856 = vld [vmem:[%s817 + $0x74] sm:$0xf]
        %v857 = vld [vmem:[%s817 + $0x78] sm:$0xf]
        %v858 = vld [vmem:[%s817 + $0x7c] sm:$0xf]
        %v859 = vunpack.c.l.bf16 %v827
        %v860 = vunpack.c.l.bf16 %v828
        %v861 = vunpack.c.l.bf16 %v829
        %v862 = vunpack.c.l.bf16 %v830
        %v863 = vunpack.c.l.bf16 %v831
        %v864 = vunpack.c.l.bf16 %v832
        %v865 = vunpack.c.l.bf16 %v833
        %v866 = vunpack.c.l.bf16 %v834
        %v867 = vunpack.c.l.bf16 %v835
        %v868 = vunpack.c.l.bf16 %v836
        %v869 = vunpack.c.l.bf16 %v837
        %v870 = vunpack.c.l.bf16 %v838
        %v871 = vunpack.c.l.bf16 %v839
        %v872 = vunpack.c.l.bf16 %v840
        %v873 = vunpack.c.l.bf16 %v841
        %v874 = vunpack.c.l.bf16 %v842
        %v875 = vunpack.c.l.bf16 %v843
        %v876 = vunpack.c.l.bf16 %v844
        %v877 = vunpack.c.l.bf16 %v845
        %v878 = vunpack.c.l.bf16 %v846
        %v879 = vunpack.c.l.bf16 %v847
        %v880 = vunpack.c.l.bf16 %v848
        %v881 = vunpack.c.l.bf16 %v849
        %v882 = vunpack.c.l.bf16 %v850
        %v883 = vunpack.c.l.bf16 %v851
        %v884 = vunpack.c.l.bf16 %v852
        %v885 = vunpack.c.l.bf16 %v853
        %v886 = vunpack.c.l.bf16 %v854
        %v887 = vunpack.c.l.bf16 %v855
        %v888 = vunpack.c.l.bf16 %v856
        %v889 = vunpack.c.l.bf16 %v857
        %v890 = vunpack.c.l.bf16 %v858
        %v891 = vld [vmem:[%s2] sm:$0x3]
        %v892 = vlaneseq
        %v893 = vshrl.u32 %v892, 7
        %v894 = vsub.s32 0, %v893
        %v895 = vrot.slane %v891, %v894
        %v896 = vmul.f32 %v859, %v895
        %v897 = vmul.f32 %v860, %v895
        %v898 = vmul.f32 %v861, %v895
        %v899 = vmul.f32 %v862, %v895
        %v900 = vmul.f32 %v863, %v895
        %v901 = vmul.f32 %v864, %v895
        %v902 = vmul.f32 %v865, %v895
        %v903 = vmul.f32 %v866, %v895
        %v904 = vmul.f32 %v867, %v895
        %v905 = vmul.f32 %v868, %v895
        %v906 = vmul.f32 %v869, %v895
        %v907 = vmul.f32 %v870, %v895
        %v908 = vmul.f32 %v871, %v895
        %v909 = vmul.f32 %v872, %v895
        %v910 = vmul.f32 %v873, %v895
        %v911 = vmul.f32 %v874, %v895
        %v912 = vmul.f32 %v875, %v895
        %v913 = vmul.f32 %v876, %v895
        %v914 = vmul.f32 %v877, %v895
        %v915 = vmul.f32 %v878, %v895
        %v916 = vmul.f32 %v879, %v895
        %v917 = vmul.f32 %v880, %v895
        %v918 = vmul.f32 %v881, %v895
        %v919 = vmul.f32 %v882, %v895
        %v920 = vmul.f32 %v883, %v895
        %v921 = vmul.f32 %v884, %v895
        %v922 = vmul.f32 %v885, %v895
        %v923 = vmul.f32 %v886, %v895
        %v924 = vmul.f32 %v887, %v895
        %v925 = vmul.f32 %v888, %v895
        %v926 = vmul.f32 %v889, %v895
        %v927 = vmul.f32 %v890, %v895
        %v928 = vlaneseq
        %v929 = vshrl.u32 %v928, 7
        %v930 = vsub.s32 1, %v929
        %v931 = vrot.slane %v891, %v930
        %v932 = vadd.f32 %v896, %v931
        %v933 = vadd.f32 %v897, %v931
        %v934 = vadd.f32 %v898, %v931
        %v935 = vadd.f32 %v899, %v931
        %v936 = vadd.f32 %v900, %v931
        %v937 = vadd.f32 %v901, %v931
        %v938 = vadd.f32 %v902, %v931
        %v939 = vadd.f32 %v903, %v931
        %v940 = vadd.f32 %v904, %v931
        %v941 = vadd.f32 %v905, %v931
        %v942 = vadd.f32 %v906, %v931
        %v943 = vadd.f32 %v907, %v931
        %v944 = vadd.f32 %v908, %v931
        %v945 = vadd.f32 %v909, %v931
        %v946 = vadd.f32 %v910, %v931
        %v947 = vadd.f32 %v911, %v931
        %v948 = vadd.f32 %v912, %v931
        %v949 = vadd.f32 %v913, %v931
        %v950 = vadd.f32 %v914, %v931
        %v951 = vadd.f32 %v915, %v931
        %v952 = vadd.f32 %v916, %v931
        %v953 = vadd.f32 %v917, %v931
        %v954 = vadd.f32 %v918, %v931
        %v955 = vadd.f32 %v919, %v931
        %v956 = vadd.f32 %v920, %v931
        %v957 = vadd.f32 %v921, %v931
        %v958 = vadd.f32 %v922, %v931
        %v959 = vadd.f32 %v923, %v931
        %v960 = vadd.f32 %v924, %v931
        %v961 = vadd.f32 %v925, %v931
        %v962 = vadd.f32 %v926, %v931
        %v963 = vadd.f32 %v927, %v931
        %v964 = vmax.f32 %v932, 0.0
        %v965 = vmax.f32 %v933, 0.0
        %v966 = vmax.f32 %v934, 0.0
        %v967 = vmax.f32 %v935, 0.0
        %v968 = vmax.f32 %v936, 0.0
        %v969 = vmax.f32 %v937, 0.0
        %v970 = vmax.f32 %v938, 0.0
        %v971 = vmax.f32 %v939, 0.0
        %v972 = vmax.f32 %v940, 0.0
        %v973 = vmax.f32 %v941, 0.0
        %v974 = vmax.f32 %v942, 0.0
        %v975 = vmax.f32 %v943, 0.0
        %v976 = vmax.f32 %v944, 0.0
        %v977 = vmax.f32 %v945, 0.0
        %v978 = vmax.f32 %v946, 0.0
        %v979 = vmax.f32 %v947, 0.0
        %v980 = vmax.f32 %v948, 0.0
        %v981 = vmax.f32 %v949, 0.0
        %v982 = vmax.f32 %v950, 0.0
        %v983 = vmax.f32 %v951, 0.0
        %v984 = vmax.f32 %v952, 0.0
        %v985 = vmax.f32 %v953, 0.0
        %v986 = vmax.f32 %v954, 0.0
        %v987 = vmax.f32 %v955, 0.0
        %v988 = vmax.f32 %v956, 0.0
        %v989 = vmax.f32 %v957, 0.0
        %v990 = vmax.f32 %v958, 0.0
        %v991 = vmax.f32 %v959, 0.0
        %v992 = vmax.f32 %v960, 0.0
        %v993 = vmax.f32 %v961, 0.0
        %v994 = vmax.f32 %v962, 0.0
        %v995 = vmax.f32 %v963, 0.0
        %v996 = vpack.c.bf16 %v965, %v964
        %v997 = vpack.c.bf16 %v967, %v966
        %v998 = vpack.c.bf16 %v969, %v968
        %v999 = vpack.c.bf16 %v971, %v970
        %v1000 = vpack.c.bf16 %v973, %v972
        %v1001 = vpack.c.bf16 %v975, %v974
        %v1002 = vpack.c.bf16 %v977, %v976
        %v1003 = vpack.c.bf16 %v979, %v978
        %v1004 = vpack.c.bf16 %v981, %v980
        %v1005 = vpack.c.bf16 %v983, %v982
        %v1006 = vpack.c.bf16 %v985, %v984
        %v1007 = vpack.c.bf16 %v987, %v986
        %v1008 = vpack.c.bf16 %v989, %v988
        %v1009 = vpack.c.bf16 %v991, %v990
        %v1010 = vpack.c.bf16 %v993, %v992
        %v1011 = vpack.c.bf16 %v995, %v994
        %v1012 = vld [vmem:[%s4] sm:$0xf]
        %v1013 = vld [vmem:[%s4 + $0x4] sm:$0xf]
        %v1014 = vld [vmem:[%s4 + $0x8] sm:$0xf]
        %v1015 = vld [vmem:[%s4 + $0xc] sm:$0xf]
        %v1016 = vld [vmem:[%s781] sm:$0xf]
        %v1017 = vld [vmem:[%s781 + $0x4] sm:$0xf]
        %v1018 = vld [vmem:[%s781 + $0x8] sm:$0xf]
        %v1019 = vld [vmem:[%s781 + $0xc] sm:$0xf]
        %v1020 = vld [vmem:[%s781 + $0x10] sm:$0xf]
        %v1021 = vld [vmem:[%s781 + $0x14] sm:$0xf]
        %v1022 = vld [vmem:[%s781 + $0x18] sm:$0xf]
        %v1023 = vld [vmem:[%s781 + $0x1c] sm:$0xf]
        %v1024 = vld [vmem:[%s781 + $0x20] sm:$0xf]
        %v1025 = vld [vmem:[%s781 + $0x24] sm:$0xf]
        %v1026 = vld [vmem:[%s781 + $0x28] sm:$0xf]
        %v1027 = vld [vmem:[%s781 + $0x2c] sm:$0xf]
        %v1028 = vld [vmem:[%s781 + $0x30] sm:$0xf]
        %v1029 = vld [vmem:[%s781 + $0x34] sm:$0xf]
        %v1030 = vld [vmem:[%s781 + $0x38] sm:$0xf]
        %v1031 = vld [vmem:[%s781 + $0x3c] sm:$0xf]
        %v1032 = vld [vmem:[%s781 + $0x40] sm:$0xf]
        %v1033 = vld [vmem:[%s781 + $0x44] sm:$0xf]
        %v1034 = vld [vmem:[%s781 + $0x48] sm:$0xf]
        %v1035 = vld [vmem:[%s781 + $0x4c] sm:$0xf]
        %v1036 = vld [vmem:[%s781 + $0x50] sm:$0xf]
        %v1037 = vld [vmem:[%s781 + $0x54] sm:$0xf]
        %v1038 = vld [vmem:[%s781 + $0x58] sm:$0xf]
        %v1039 = vld [vmem:[%s781 + $0x5c] sm:$0xf]
        %v1040 = vld [vmem:[%s781 + $0x60] sm:$0xf]
        %v1041 = vld [vmem:[%s781 + $0x64] sm:$0xf]
        %v1042 = vld [vmem:[%s781 + $0x68] sm:$0xf]
        %v1043 = vld [vmem:[%s781 + $0x6c] sm:$0xf]
        %v1044 = vld [vmem:[%s781 + $0x70] sm:$0xf]
        %v1045 = vld [vmem:[%s781 + $0x74] sm:$0xf]
        %v1046 = vld [vmem:[%s781 + $0x78] sm:$0xf]
        %v1047 = vld [vmem:[%s781 + $0x7c] sm:$0xf]
        %v1048 = vunpack.c.l.bf16 %v1016
        %v1049 = vunpack.c.l.bf16 %v1017
        %v1050 = vunpack.c.l.bf16 %v1018
        %v1051 = vunpack.c.l.bf16 %v1019
        %v1052 = vunpack.c.l.bf16 %v1020
        %v1053 = vunpack.c.l.bf16 %v1021
        %v1054 = vunpack.c.l.bf16 %v1022
        %v1055 = vunpack.c.l.bf16 %v1023
        %v1056 = vunpack.c.l.bf16 %v1024
        %v1057 = vunpack.c.l.bf16 %v1025
        %v1058 = vunpack.c.l.bf16 %v1026
        %v1059 = vunpack.c.l.bf16 %v1027
        %v1060 = vunpack.c.l.bf16 %v1028
        %v1061 = vunpack.c.l.bf16 %v1029
        %v1062 = vunpack.c.l.bf16 %v1030
        %v1063 = vunpack.c.l.bf16 %v1031
        %v1064 = vunpack.c.l.bf16 %v1032
        %v1065 = vunpack.c.l.bf16 %v1033
        %v1066 = vunpack.c.l.bf16 %v1034
        %v1067 = vunpack.c.l.bf16 %v1035
        %v1068 = vunpack.c.l.bf16 %v1036
        %v1069 = vunpack.c.l.bf16 %v1037
        %v1070 = vunpack.c.l.bf16 %v1038
        %v1071 = vunpack.c.l.bf16 %v1039
        %v1072 = vunpack.c.l.bf16 %v1040
        %v1073 = vunpack.c.l.bf16 %v1041
        %v1074 = vunpack.c.l.bf16 %v1042
        %v1075 = vunpack.c.l.bf16 %v1043
        %v1076 = vunpack.c.l.bf16 %v1044
        %v1077 = vunpack.c.l.bf16 %v1045
        %v1078 = vunpack.c.l.bf16 %v1046
        %v1079 = vunpack.c.l.bf16 %v1047
        %v1080 = vld [vmem:[%s3] sm:$0x3]
        %v1081 = vlaneseq
        %v1082 = vshrl.u32 %v1081, 7
        %v1083 = vsub.s32 0, %v1082
        %v1084 = vrot.slane %v1080, %v1083
        %v1085 = vmul.f32 %v1048, %v1084
        %v1086 = vmul.f32 %v1049, %v1084
        %v1087 = vmul.f32 %v1050, %v1084
        %v1088 = vmul.f32 %v1051, %v1084
        %v1089 = vmul.f32 %v1052, %v1084
        %v1090 = vmul.f32 %v1053, %v1084
        %v1091 = vmul.f32 %v1054, %v1084
        %v1092 = vmul.f32 %v1055, %v1084
        %v1093 = vmul.f32 %v1056, %v1084
        %v1094 = vmul.f32 %v1057, %v1084
        %v1095 = vmul.f32 %v1058, %v1084
        %v1096 = vmul.f32 %v1059, %v1084
        %v1097 = vmul.f32 %v1060, %v1084
        %v1098 = vmul.f32 %v1061, %v1084
        %v1099 = vmul.f32 %v1062, %v1084
        %v1100 = vmul.f32 %v1063, %v1084
        %v1101 = vmul.f32 %v1064, %v1084
        %v1102 = vmul.f32 %v1065, %v1084
        %v1103 = vmul.f32 %v1066, %v1084
        %v1104 = vmul.f32 %v1067, %v1084
        %v1105 = vmul.f32 %v1068, %v1084
        %v1106 = vmul.f32 %v1069, %v1084
        %v1107 = vmul.f32 %v1070, %v1084
        %v1108 = vmul.f32 %v1071, %v1084
        %v1109 = vmul.f32 %v1072, %v1084
        %v1110 = vmul.f32 %v1073, %v1084
        %v1111 = vmul.f32 %v1074, %v1084
        %v1112 = vmul.f32 %v1075, %v1084
        %v1113 = vmul.f32 %v1076, %v1084
        %v1114 = vmul.f32 %v1077, %v1084
        %v1115 = vmul.f32 %v1078, %v1084
        %v1116 = vmul.f32 %v1079, %v1084
        %v1117 = vlaneseq
        %v1118 = vshrl.u32 %v1117, 7
        %v1119 = vsub.s32 1, %v1118
        %v1120 = vrot.slane %v1080, %v1119
        %v1121 = vadd.f32 %v1085, %v1120
        %v1122 = vadd.f32 %v1086, %v1120
        %v1123 = vadd.f32 %v1087, %v1120
        %v1124 = vadd.f32 %v1088, %v1120
        %v1125 = vadd.f32 %v1089, %v1120
        %v1126 = vadd.f32 %v1090, %v1120
        %v1127 = vadd.f32 %v1091, %v1120
        %v1128 = vadd.f32 %v1092, %v1120
        %v1129 = vadd.f32 %v1093, %v1120
        %v1130 = vadd.f32 %v1094, %v1120
        %v1131 = vadd.f32 %v1095, %v1120
        %v1132 = vadd.f32 %v1096, %v1120
        %v1133 = vadd.f32 %v1097, %v1120
        %v1134 = vadd.f32 %v1098, %v1120
        %v1135 = vadd.f32 %v1099, %v1120
        %v1136 = vadd.f32 %v1100, %v1120
        %v1137 = vadd.f32 %v1101, %v1120
        %v1138 = vadd.f32 %v1102, %v1120
        %v1139 = vadd.f32 %v1103, %v1120
        %v1140 = vadd.f32 %v1104, %v1120
        %v1141 = vadd.f32 %v1105, %v1120
        %v1142 = vadd.f32 %v1106, %v1120
        %v1143 = vadd.f32 %v1107, %v1120
        %v1144 = vadd.f32 %v1108, %v1120
        %v1145 = vadd.f32 %v1109, %v1120
        %v1146 = vadd.f32 %v1110, %v1120
        %v1147 = vadd.f32 %v1111, %v1120
        %v1148 = vadd.f32 %v1112, %v1120
        %v1149 = vadd.f32 %v1113, %v1120
        %v1150 = vadd.f32 %v1114, %v1120
        %v1151 = vadd.f32 %v1115, %v1120
        %v1152 = vadd.f32 %v1116, %v1120
        %v1153 = vmax.f32 %v1121, 0.0
        %v1154 = vmax.f32 %v1122, 0.0
        %v1155 = vmax.f32 %v1123, 0.0
        %v1156 = vmax.f32 %v1124, 0.0
        %v1157 = vmax.f32 %v1125, 0.0
        %v1158 = vmax.f32 %v1126, 0.0
        %v1159 = vmax.f32 %v1127, 0.0
        %v1160 = vmax.f32 %v1128, 0.0
        %v1161 = vmax.f32 %v1129, 0.0
        %v1162 = vmax.f32 %v1130, 0.0
        %v1163 = vmax.f32 %v1131, 0.0
        %v1164 = vmax.f32 %v1132, 0.0
        %v1165 = vmax.f32 %v1133, 0.0
        %v1166 = vmax.f32 %v1134, 0.0
        %v1167 = vmax.f32 %v1135, 0.0
        %v1168 = vmax.f32 %v1136, 0.0
        %v1169 = vmax.f32 %v1137, 0.0
        %v1170 = vmax.f32 %v1138, 0.0
        %v1171 = vmax.f32 %v1139, 0.0
        %v1172 = vmax.f32 %v1140, 0.0
        %v1173 = vmax.f32 %v1141, 0.0
        %v1174 = vmax.f32 %v1142, 0.0
        %v1175 = vmax.f32 %v1143, 0.0
        %v1176 = vmax.f32 %v1144, 0.0
        %v1177 = vmax.f32 %v1145, 0.0
        %v1178 = vmax.f32 %v1146, 0.0
        %v1179 = vmax.f32 %v1147, 0.0
        %v1180 = vmax.f32 %v1148, 0.0
        %v1181 = vmax.f32 %v1149, 0.0
        %v1182 = vmax.f32 %v1150, 0.0
        %v1183 = vmax.f32 %v1151, 0.0
        %v1184 = vmax.f32 %v1152, 0.0
        %v1185 = vpack.c.bf16 %v1154, %v1153
        %v1186 = vpack.c.bf16 %v1156, %v1155
        %v1187 = vpack.c.bf16 %v1158, %v1157
        %v1188 = vpack.c.bf16 %v1160, %v1159
        %v1189 = vpack.c.bf16 %v1162, %v1161
        %v1190 = vpack.c.bf16 %v1164, %v1163
        %v1191 = vpack.c.bf16 %v1166, %v1165
        %v1192 = vpack.c.bf16 %v1168, %v1167
        %v1193 = vpack.c.bf16 %v1170, %v1169
        %v1194 = vpack.c.bf16 %v1172, %v1171
        %v1195 = vpack.c.bf16 %v1174, %v1173
        %v1196 = vpack.c.bf16 %v1176, %v1175
        %v1197 = vpack.c.bf16 %v1178, %v1177
        %v1198 = vpack.c.bf16 %v1180, %v1179
        %v1199 = vpack.c.bf16 %v1182, %v1181
        %v1200 = vpack.c.bf16 %v1184, %v1183
        %v1201 = vld [vmem:[%s5] sm:$0xf]
        %v1202 = vld [vmem:[%s5 + $0x4] sm:$0xf]
        %v1205 = vunpack.c.l.b16 %v1201
        %v1206 = vunpack.c.l.b16 %v1202
        %v1207 = vpack.c.b16 %v1206, %v1205
        %vm1209 = vcmask 130048
        %v1211 = vsel %vm1209, %v1185, 0
        %v1214 = vsel %vm1209, %v1186, 0
        %v1217 = vsel %vm1209, %v1187, 0
        %v1220 = vsel %vm1209, %v1188, 0
        %v1223 = vsel %vm1209, %v1189, 0
        %v1226 = vsel %vm1209, %v1190, 0
        %v1229 = vsel %vm1209, %v1191, 0
        %v1232 = vsel %vm1209, %v1192, 0
        %v1235 = vsel %vm1209, %v1193, 0
        %v1238 = vsel %vm1209, %v1194, 0
        %v1241 = vsel %vm1209, %v1195, 0
        %v1244 = vsel %vm1209, %v1196, 0
        %v1247 = vsel %vm1209, %v1197, 0
        %v1250 = vsel %vm1209, %v1198, 0
        %v1253 = vsel %vm1209, %v1199, 0
        %v1256 = vsel %vm1209, %v1200, 0
        %1258 = vmatprep.subr.bf16.mxu0 0
        %1259 = vmatpush1.bf16.msra.mxu0 %v1207
        %1260 = vmatprep.subr.bf16.mxu0 0
        %1261 = vmatpush1.bf16.msra.mxu0 0
        %1262 = vmatprep.subr.bf16.mxu0 0
        %1263 = vmatpush1.bf16.msra.mxu0 0
        %1264 = vmatprep.subr.bf16.mxu0 0
        %1265 = vmatpush1.bf16.msra.mxu0 0
        %1266 = vmatprep.subr.bf16.mxu0 0
        %1267 = vmatpush1.bf16.msra.mxu0 0
        %1268 = vmatprep.subr.bf16.mxu0 0
        %1269 = vmatpush1.bf16.msra.mxu0 0
        %1270 = vmatprep.subr.bf16.mxu0 0
        %1271 = vmatpush1.bf16.msra.mxu0 0
        %1272 = vmatprep.subr.bf16.mxu0 0
        %1273 = vmatpush1.bf16.msra.mxu0 0
        %1274 = vmatprep.subr.bf16.mxu0 0
        %1275 = vmatpush1.bf16.msra.mxu0 0
        %1276 = vmatprep.subr.bf16.mxu0 0
        %1277 = vmatpush1.bf16.msra.mxu0 0
        %1278 = vmatprep.subr.bf16.mxu0 0
        %1279 = vmatpush1.bf16.msra.mxu0 0
        %1280 = vmatprep.subr.bf16.mxu0 0
        %1281 = vmatpush1.bf16.msra.mxu0 0
        %1282 = vmatprep.subr.bf16.mxu0 0
        %1283 = vmatpush1.bf16.msra.mxu0 0
        %1284 = vmatprep.subr.bf16.mxu0 0
        %1285 = vmatpush1.bf16.msra.mxu0 0
        %1286 = vmatprep.subr.bf16.mxu0 0
        %1287 = vmatpush1.bf16.msra.mxu0 0
        %1288 = vmatprep.subr.bf16.mxu0 0
        %1289 = vmatpush1.bf16.msra.mxu0 0
        %1290 = vmatprep.mubr.bf16.mxu0 0
        %1291 = vmatmul.mubr.bf16.gmra.mrb[0].mxu0 %v1211
        %v1292 = vpop.f32.mrb[0].mxu0
        %v1293 = vadd.f32 0.0, %v1292
        %v1294 = vpop.f32.mrb[0].mxu0
        %v1295 = vpop.f32.mrb[0].mxu0
        %v1296 = vadd.f32 0.0, %v1295
        %v1297 = vpop.f32.mrb[0].mxu0
        %1298 = vmatprep.mubr.bf16.mxu0 0
        %1299 = vmatmul.mubr.bf16.gmra.mrb[0].mxu0 %v1214
        %v1300 = vpop.f32.mrb[0].mxu0
        %v1301 = vadd.f32 0.0, %v1300
        %v1302 = vpop.f32.mrb[0].mxu0
        %v1303 = vpop.f32.mrb[0].mxu0
        %v1304 = vadd.f32 0.0, %v1303
        %v1305 = vpop.f32.mrb[0].mxu0
        %1306 = vmatprep.mubr.bf16.mxu0 0
        %1307 = vmatmul.mubr.bf16.gmra.mrb[0].mxu0 %v1217
        %v1308 = vpop.f32.mrb[0].mxu0
        %v1309 = vadd.f32 0.0, %v1308
        %v1310 = vpop.f32.mrb[0].mxu0
        %v1311 = vpop.f32.mrb[0].mxu0
        %v1312 = vadd.f32 0.0, %v1311
        %v1313 = vpop.f32.mrb[0].mxu0
        %1314 = vmatprep.mubr.bf16.mxu0 0
        %1315 = vmatmul.mubr.bf16.gmra.mrb[0].mxu0 %v1220
        %v1316 = vpop.f32.mrb[0].mxu0
        %v1317 = vadd.f32 0.0, %v1316
        %v1318 = vpop.f32.mrb[0].mxu0
        %v1319 = vpop.f32.mrb[0].mxu0
        %v1320 = vadd.f32 0.0, %v1319
        %v1321 = vpop.f32.mrb[0].mxu0
        %1322 = vmatprep.mubr.bf16.mxu0 0
        %1323 = vmatmul.mubr.bf16.gmra.mrb[0].mxu0 %v1223
        %v1324 = vpop.f32.mrb[0].mxu0
        %v1325 = vadd.f32 0.0, %v1324
        %v1326 = vpop.f32.mrb[0].mxu0
        %v1327 = vpop.f32.mrb[0].mxu0
        %v1328 = vadd.f32 0.0, %v1327
        %v1329 = vpop.f32.mrb[0].mxu0
        %1330 = vmatprep.mubr.bf16.mxu0 0
        %1331 = vmatmul.mubr.bf16.gmra.mrb[0].mxu0 %v1226
        %v1332 = vpop.f32.mrb[0].mxu0
        %v1333 = vadd.f32 0.0, %v1332
        %v1334 = vpop.f32.mrb[0].mxu0
        %v1335 = vpop.f32.mrb[0].mxu0
        %v1336 = vadd.f32 0.0, %v1335
        %v1337 = vpop.f32.mrb[0].mxu0
        %1338 = vmatprep.mubr.bf16.mxu0 0
        %1339 = vmatmul.mubr.bf16.gmra.mrb[0].mxu0 %v1229
        %v1340 = vpop.f32.mrb[0].mxu0
        %v1341 = vadd.f32 0.0, %v1340
        %v1342 = vpop.f32.mrb[0].mxu0
        %v1343 = vpop.f32.mrb[0].mxu0
        %v1344 = vadd.f32 0.0, %v1343
        %v1345 = vpop.f32.mrb[0].mxu0
        %1346 = vmatprep.mubr.bf16.mxu0 0
        %1347 = vmatmul.mubr.bf16.gmra.mrb[0].mxu0 %v1232
        %v1348 = vpop.f32.mrb[0].mxu0
        %v1349 = vadd.f32 0.0, %v1348
        %v1350 = vpop.f32.mrb[0].mxu0
        %v1351 = vpop.f32.mrb[0].mxu0
        %v1352 = vadd.f32 0.0, %v1351
        %v1353 = vpop.f32.mrb[0].mxu0
        %1354 = vmatprep.mubr.bf16.mxu0 0
        %1355 = vmatmul.mubr.bf16.gmra.mrb[0].mxu0 %v1235
        %v1356 = vpop.f32.mrb[0].mxu0
        %v1357 = vadd.f32 0.0, %v1356
        %v1358 = vpop.f32.mrb[0].mxu0
        %v1359 = vpop.f32.mrb[0].mxu0
        %v1360 = vadd.f32 0.0, %v1359
        %v1361 = vpop.f32.mrb[0].mxu0
        %1362 = vmatprep.mubr.bf16.mxu0 0
        %1363 = vmatmul.mubr.bf16.gmra.mrb[0].mxu0 %v1238
        %v1364 = vpop.f32.mrb[0].mxu0
        %v1365 = vadd.f32 0.0, %v1364
        %v1366 = vpop.f32.mrb[0].mxu0
        %v1367 = vpop.f32.mrb[0].mxu0
        %v1368 = vadd.f32 0.0, %v1367
        %v1369 = vpop.f32.mrb[0].mxu0
        %1370 = vmatprep.mubr.bf16.mxu0 0
        %1371 = vmatmul.mubr.bf16.gmra.mrb[0].mxu0 %v1241
        %v1372 = vpop.f32.mrb[0].mxu0
        %v1373 = vadd.f32 0.0, %v1372
        %v1374 = vpop.f32.mrb[0].mxu0
        %v1375 = vpop.f32.mrb[0].mxu0
        %v1376 = vadd.f32 0.0, %v1375
        %v1377 = vpop.f32.mrb[0].mxu0
        %1378 = vmatprep.mubr.bf16.mxu0 0
        %1379 = vmatmul.mubr.bf16.gmra.mrb[0].mxu0 %v1244
        %v1380 = vpop.f32.mrb[0].mxu0
        %v1381 = vadd.f32 0.0, %v1380
        %v1382 = vpop.f32.mrb[0].mxu0
        %v1383 = vpop.f32.mrb[0].mxu0
        %v1384 = vadd.f32 0.0, %v1383
        %v1385 = vpop.f32.mrb[0].mxu0
        %1386 = vmatprep.mubr.bf16.mxu0 0
        %1387 = vmatmul.mubr.bf16.gmra.mrb[0].mxu0 %v1247
        %v1388 = vpop.f32.mrb[0].mxu0
        %v1389 = vadd.f32 0.0, %v1388
        %v1390 = vpop.f32.mrb[0].mxu0
        %v1391 = vpop.f32.mrb[0].mxu0
        %v1392 = vadd.f32 0.0, %v1391
        %v1393 = vpop.f32.mrb[0].mxu0
        %1394 = vmatprep.mubr.bf16.mxu0 0
        %1395 = vmatmul.mubr.bf16.gmra.mrb[0].mxu0 %v1250
        %v1396 = vpop.f32.mrb[0].mxu0
        %v1397 = vadd.f32 0.0, %v1396
        %v1398 = vpop.f32.mrb[0].mxu0
        %v1399 = vpop.f32.mrb[0].mxu0
        %v1400 = vadd.f32 0.0, %v1399
        %v1401 = vpop.f32.mrb[0].mxu0
        %1402 = vmatprep.mubr.bf16.mxu0 0
        %1403 = vmatmul.mubr.bf16.gmra.mrb[0].mxu0 %v1253
        %v1404 = vpop.f32.mrb[0].mxu0
        %v1405 = vadd.f32 0.0, %v1404
        %v1406 = vpop.f32.mrb[0].mxu0
        %v1407 = vpop.f32.mrb[0].mxu0
        %v1408 = vadd.f32 0.0, %v1407
        %v1409 = vpop.f32.mrb[0].mxu0
        %1410 = vmatprep.mubr.bf16.mxu0 0
        %1411 = vmatmul.mubr.bf16.gmra.mrb[0].mxu0 %v1256
        %v1412 = vpop.f32.mrb[0].mxu0
        %v1413 = vadd.f32 0.0, %v1412
        %v1414 = vpop.f32.mrb[0].mxu0
        %v1415 = vpop.f32.mrb[0].mxu0
        %v1416 = vadd.f32 0.0, %v1415
        %v1417 = vpop.f32.mrb[0].mxu0
        %1418 = vdwg.mxu0
        %v1423 = vunpack.c.l.b16 %v1012
        %v1424 = vunpack.c.l.b16 %v1013
        %v1425 = vunpack.c.l.b16 %v1014
        %v1426 = vunpack.c.l.b16 %v1015
        %v1427 = vpack.c.b16 %v1424, %v1423
        %v1428 = vpack.c.b16 %v1426, %v1425
        %vm1431 = vcmask 261120
        %v1433 = vsel %vm1431, %v996, 0
        %v1436 = vsel %vm1431, %v997, 0
        %v1439 = vsel %vm1431, %v998, 0
        %v1442 = vsel %vm1431, %v999, 0
        %v1445 = vsel %vm1431, %v1000, 0
        %v1448 = vsel %vm1431, %v1001, 0
        %v1451 = vsel %vm1431, %v1002, 0
        %v1454 = vsel %vm1431, %v1003, 0
        %v1457 = vsel %vm1431, %v1004, 0
        %v1460 = vsel %vm1431, %v1005, 0
        %v1463 = vsel %vm1431, %v1006, 0
        %v1466 = vsel %vm1431, %v1007, 0
        %v1469 = vsel %vm1431, %v1008, 0
        %v1472 = vsel %vm1431, %v1009, 0
        %v1475 = vsel %vm1431, %v1010, 0
        %v1478 = vsel %vm1431, %v1011, 0
        %1480 = vmatprep.subr.bf16.mxu0 0
        %1481 = vmatpush1.bf16.msra.mxu0 %v1427
        %1482 = vmatprep.subr.bf16.mxu0 0
        %1483 = vmatpush1.bf16.msra.mxu0 %v1428
        %1484 = vmatprep.subr.bf16.mxu0 0
        %1485 = vmatpush1.bf16.msra.mxu0 0
        %1486 = vmatprep.subr.bf16.mxu0 0
        %1487 = vmatpush1.bf16.msra.mxu0 0
        %1488 = vmatprep.subr.bf16.mxu0 0
        %1489 = vmatpush1.bf16.msra.mxu0 0
        %1490 = vmatprep.subr.bf16.mxu0 0
        %1491 = vmatpush1.bf16.msra.mxu0 0
        %1492 = vmatprep.subr.bf16.mxu0 0
        %1493 = vmatpush1.bf16.msra.mxu0 0
        %1494 = vmatprep.subr.bf16.mxu0 0
        %1495 = vmatpush1.bf16.msra.mxu0 0
        %1496 = vmatprep.subr.bf16.mxu0 0
        %1497 = vmatpush1.bf16.msra.mxu0 0
        %1498 = vmatprep.subr.bf16.mxu0 0
        %1499 = vmatpush1.bf16.msra.mxu0 0
        %1500 = vmatprep.subr.bf16.mxu0 0
        %1501 = vmatpush1.bf16.msra.mxu0 0
        %1502 = vmatprep.subr.bf16.mxu0 0
        %1503 = vmatpush1.bf16.msra.mxu0 0
        %1504 = vmatprep.subr.bf16.mxu0 0
        %1505 = vmatpush1.bf16.msra.mxu0 0
        %1506 = vmatprep.subr.bf16.mxu0 0
        %1507 = vmatpush1.bf16.msra.mxu0 0
        %1508 = vmatprep.subr.bf16.mxu0 0
        %1509 = vmatpush1.bf16.msra.mxu0 0
        %1510 = vmatprep.subr.bf16.mxu0 0
        %1511 = vmatpush1.bf16.msra.mxu0 0
        %1512 = vmatprep.mubr.bf16.mxu0 0
        %1513 = vmatmul.mubr.bf16.gmra.mrb[0].mxu0 %v1433
        %v1514 = vpop.f32.mrb[0].mxu0
        %v1515 = vadd.f32 %v1293, %v1514
        %v1516 = vpop.f32.mrb[0].mxu0
        %v1517 = vpop.f32.mrb[0].mxu0
        %v1518 = vadd.f32 %v1296, %v1517
        %v1519 = vpop.f32.mrb[0].mxu0
        %1520 = vmatprep.mubr.bf16.mxu0 0
        %1521 = vmatmul.mubr.bf16.gmra.mrb[0].mxu0 %v1436
        %v1522 = vpop.f32.mrb[0].mxu0
        %v1523 = vadd.f32 %v1301, %v1522
        %v1524 = vpop.f32.mrb[0].mxu0
        %v1525 = vpop.f32.mrb[0].mxu0
        %v1526 = vadd.f32 %v1304, %v1525
        %v1527 = vpop.f32.mrb[0].mxu0
        %1528 = vmatprep.mubr.bf16.mxu0 0
        %1529 = vmatmul.mubr.bf16.gmra.mrb[0].mxu0 %v1439
        %v1530 = vpop.f32.mrb[0].mxu0
        %v1531 = vadd.f32 %v1309, %v1530
        %v1532 = vpop.f32.mrb[0].mxu0
        %v1533 = vpop.f32.mrb[0].mxu0
        %v1534 = vadd.f32 %v1312, %v1533
        %v1535 = vpop.f32.mrb[0].mxu0
        %1536 = vmatprep.mubr.bf16.mxu0 0
        %1537 = vmatmul.mubr.bf16.gmra.mrb[0].mxu0 %v1442
        %v1538 = vpop.f32.mrb[0].mxu0
        %v1539 = vadd.f32 %v1317, %v1538
        %v1540 = vpop.f32.mrb[0].mxu0
        %v1541 = vpop.f32.mrb[0].mxu0
        %v1542 = vadd.f32 %v1320, %v1541
        %v1543 = vpop.f32.mrb[0].mxu0
        %1544 = vmatprep.mubr.bf16.mxu0 0
        %1545 = vmatmul.mubr.bf16.gmra.mrb[0].mxu0 %v1445
        %v1546 = vpop.f32.mrb[0].mxu0
        %v1547 = vadd.f32 %v1325, %v1546
        %v1548 = vpop.f32.mrb[0].mxu0
        %v1549 = vpop.f32.mrb[0].mxu0
        %v1550 = vadd.f32 %v1328, %v1549
        %v1551 = vpop.f32.mrb[0].mxu0
        %1552 = vmatprep.mubr.bf16.mxu0 0
        %1553 = vmatmul.mubr.bf16.gmra.mrb[0].mxu0 %v1448
        %v1554 = vpop.f32.mrb[0].mxu0
        %v1555 = vadd.f32 %v1333, %v1554
        %v1556 = vpop.f32.mrb[0].mxu0
        %v1557 = vpop.f32.mrb[0].mxu0
        %v1558 = vadd.f32 %v1336, %v1557
        %v1559 = vpop.f32.mrb[0].mxu0
        %1560 = vmatprep.mubr.bf16.mxu0 0
        %1561 = vmatmul.mubr.bf16.gmra.mrb[0].mxu0 %v1451
        %v1562 = vpop.f32.mrb[0].mxu0
        %v1563 = vadd.f32 %v1341, %v1562
        %v1564 = vpop.f32.mrb[0].mxu0
        %v1565 = vpop.f32.mrb[0].mxu0
        %v1566 = vadd.f32 %v1344, %v1565
        %v1567 = vpop.f32.mrb[0].mxu0
        %1568 = vmatprep.mubr.bf16.mxu0 0
        %1569 = vmatmul.mubr.bf16.gmra.mrb[0].mxu0 %v1454
        %v1570 = vpop.f32.mrb[0].mxu0
        %v1571 = vadd.f32 %v1349, %v1570
        %v1572 = vpop.f32.mrb[0].mxu0
        %v1573 = vpop.f32.mrb[0].mxu0
        %v1574 = vadd.f32 %v1352, %v1573
        %v1575 = vpop.f32.mrb[0].mxu0
        %1576 = vmatprep.mubr.bf16.mxu0 0
        %1577 = vmatmul.mubr.bf16.gmra.mrb[0].mxu0 %v1457
        %v1578 = vpop.f32.mrb[0].mxu0
        %v1579 = vadd.f32 %v1357, %v1578
        %v1580 = vpop.f32.mrb[0].mxu0
        %v1581 = vpop.f32.mrb[0].mxu0
        %v1582 = vadd.f32 %v1360, %v1581
        %v1583 = vpop.f32.mrb[0].mxu0
        %1584 = vmatprep.mubr.bf16.mxu0 0
        %1585 = vmatmul.mubr.bf16.gmra.mrb[0].mxu0 %v1460
        %v1586 = vpop.f32.mrb[0].mxu0
        %v1587 = vadd.f32 %v1365, %v1586
        %v1588 = vpop.f32.mrb[0].mxu0
        %v1589 = vpop.f32.mrb[0].mxu0
        %v1590 = vadd.f32 %v1368, %v1589
        %v1591 = vpop.f32.mrb[0].mxu0
        %1592 = vmatprep.mubr.bf16.mxu0 0
        %1593 = vmatmul.mubr.bf16.gmra.mrb[0].mxu0 %v1463
        %v1594 = vpop.f32.mrb[0].mxu0
        %v1595 = vadd.f32 %v1373, %v1594
        %v1596 = vpop.f32.mrb[0].mxu0
        %v1597 = vpop.f32.mrb[0].mxu0
        %v1598 = vadd.f32 %v1376, %v1597
        %v1599 = vpop.f32.mrb[0].mxu0
        %1600 = vmatprep.mubr.bf16.mxu0 0
        %1601 = vmatmul.mubr.bf16.gmra.mrb[0].mxu0 %v1466
        %v1602 = vpop.f32.mrb[0].mxu0
        %v1603 = vadd.f32 %v1381, %v1602
        %v1604 = vpop.f32.mrb[0].mxu0
        %v1605 = vpop.f32.mrb[0].mxu0
        %v1606 = vadd.f32 %v1384, %v1605
        %v1607 = vpop.f32.mrb[0].mxu0
        %1608 = vmatprep.mubr.bf16.mxu0 0
        %1609 = vmatmul.mubr.bf16.gmra.mrb[0].mxu0 %v1469
        %v1610 = vpop.f32.mrb[0].mxu0
        %v1611 = vadd.f32 %v1389, %v1610
        %v1612 = vpop.f32.mrb[0].mxu0
        %v1613 = vpop.f32.mrb[0].mxu0
        %v1614 = vadd.f32 %v1392, %v1613
        %v1615 = vpop.f32.mrb[0].mxu0
        %1616 = vmatprep.mubr.bf16.mxu0 0
        %1617 = vmatmul.mubr.bf16.gmra.mrb[0].mxu0 %v1472
        %v1618 = vpop.f32.mrb[0].mxu0
        %v1619 = vadd.f32 %v1397, %v1618
        %v1620 = vpop.f32.mrb[0].mxu0
        %v1621 = vpop.f32.mrb[0].mxu0
        %v1622 = vadd.f32 %v1400, %v1621
        %v1623 = vpop.f32.mrb[0].mxu0
        %1624 = vmatprep.mubr.bf16.mxu0 0
        %1625 = vmatmul.mubr.bf16.gmra.mrb[0].mxu0 %v1475
        %v1626 = vpop.f32.mrb[0].mxu0
        %v1627 = vadd.f32 %v1405, %v1626
        %v1628 = vpop.f32.mrb[0].mxu0
        %v1629 = vpop.f32.mrb[0].mxu0
        %v1630 = vadd.f32 %v1408, %v1629
        %v1631 = vpop.f32.mrb[0].mxu0
        %1632 = vmatprep.mubr.bf16.mxu0 0
        %1633 = vmatmul.mubr.bf16.gmra.mrb[0].mxu0 %v1478
        %v1634 = vpop.f32.mrb[0].mxu0
        %v1635 = vadd.f32 %v1413, %v1634
        %v1636 = vpop.f32.mrb[0].mxu0
        %v1637 = vpop.f32.mrb[0].mxu0
        %v1638 = vadd.f32 %v1416, %v1637
        %v1639 = vpop.f32.mrb[0].mxu0
        %1640 = vdwg.mxu0
        %s1641 = scalar_lea.vmem %s781, 128 [#allocation2]
        %v1642 = vld [vmem:[%s1641] sm:$0xf]
        %v1643 = vld [vmem:[%s1641 + $0x4] sm:$0xf]
        %v1644 = vld [vmem:[%s1641 + $0x8] sm:$0xf]
        %v1645 = vld [vmem:[%s1641 + $0xc] sm:$0xf]
        %v1646 = vld [vmem:[%s1641 + $0x10] sm:$0xf]
        %v1647 = vld [vmem:[%s1641 + $0x14] sm:$0xf]
        %v1648 = vld [vmem:[%s1641 + $0x18] sm:$0xf]
        %v1649 = vld [vmem:[%s1641 + $0x1c] sm:$0xf]
        %v1650 = vld [vmem:[%s1641 + $0x20] sm:$0xf]
        %v1651 = vld [vmem:[%s1641 + $0x24] sm:$0xf]
        %v1652 = vld [vmem:[%s1641 + $0x28] sm:$0xf]
        %v1653 = vld [vmem:[%s1641 + $0x2c] sm:$0xf]
        %v1654 = vld [vmem:[%s1641 + $0x30] sm:$0xf]
        %v1655 = vld [vmem:[%s1641 + $0x34] sm:$0xf]
        %v1656 = vld [vmem:[%s1641 + $0x38] sm:$0xf]
        %v1657 = vld [vmem:[%s1641 + $0x3c] sm:$0xf]
        %v1658 = vld [vmem:[%s1641 + $0x40] sm:$0xf]
        %v1659 = vld [vmem:[%s1641 + $0x44] sm:$0xf]
        %v1660 = vld [vmem:[%s1641 + $0x48] sm:$0xf]
        %v1661 = vld [vmem:[%s1641 + $0x4c] sm:$0xf]
        %v1662 = vld [vmem:[%s1641 + $0x50] sm:$0xf]
        %v1663 = vld [vmem:[%s1641 + $0x54] sm:$0xf]
        %v1664 = vld [vmem:[%s1641 + $0x58] sm:$0xf]
        %v1665 = vld [vmem:[%s1641 + $0x5c] sm:$0xf]
        %v1666 = vld [vmem:[%s1641 + $0x60] sm:$0xf]
        %v1667 = vld [vmem:[%s1641 + $0x64] sm:$0xf]
        %v1668 = vld [vmem:[%s1641 + $0x68] sm:$0xf]
        %v1669 = vld [vmem:[%s1641 + $0x6c] sm:$0xf]
        %v1670 = vld [vmem:[%s1641 + $0x70] sm:$0xf]
        %v1671 = vld [vmem:[%s1641 + $0x74] sm:$0xf]
        %v1672 = vld [vmem:[%s1641 + $0x78] sm:$0xf]
        %v1673 = vld [vmem:[%s1641 + $0x7c] sm:$0xf]
        %v1674 = vunpack.c.l.bf16 %v1642
        %v1675 = vunpack.c.l.bf16 %v1643
        %v1676 = vunpack.c.l.bf16 %v1644
        %v1677 = vunpack.c.l.bf16 %v1645
        %v1678 = vunpack.c.l.bf16 %v1646
        %v1679 = vunpack.c.l.bf16 %v1647
        %v1680 = vunpack.c.l.bf16 %v1648
        %v1681 = vunpack.c.l.bf16 %v1649
        %v1682 = vunpack.c.l.bf16 %v1650
        %v1683 = vunpack.c.l.bf16 %v1651
        %v1684 = vunpack.c.l.bf16 %v1652
        %v1685 = vunpack.c.l.bf16 %v1653
        %v1686 = vunpack.c.l.bf16 %v1654
        %v1687 = vunpack.c.l.bf16 %v1655
        %v1688 = vunpack.c.l.bf16 %v1656
        %v1689 = vunpack.c.l.bf16 %v1657
        %v1690 = vunpack.c.l.bf16 %v1658
        %v1691 = vunpack.c.l.bf16 %v1659
        %v1692 = vunpack.c.l.bf16 %v1660
        %v1693 = vunpack.c.l.bf16 %v1661
        %v1694 = vunpack.c.l.bf16 %v1662
        %v1695 = vunpack.c.l.bf16 %v1663
        %v1696 = vunpack.c.l.bf16 %v1664
        %v1697 = vunpack.c.l.bf16 %v1665
        %v1698 = vunpack.c.l.bf16 %v1666
        %v1699 = vunpack.c.l.bf16 %v1667
        %v1700 = vunpack.c.l.bf16 %v1668
        %v1701 = vunpack.c.l.bf16 %v1669
        %v1702 = vunpack.c.l.bf16 %v1670
        %v1703 = vunpack.c.l.bf16 %v1671
        %v1704 = vunpack.c.l.bf16 %v1672
        %v1705 = vunpack.c.l.bf16 %v1673
        %s1706 = scalar_lea.vmem %s3, 2
        %v1707 = vld [vmem:[%s1706] sm:$0x3]
        %v1708 = vlaneseq
        %v1709 = vshrl.u32 %v1708, 7
        %v1710 = vsub.s32 0, %v1709
        %v1711 = vrot.slane %v1707, %v1710
        %v1712 = vmul.f32 %v1674, %v1711
        %v1713 = vmul.f32 %v1675, %v1711
        %v1714 = vmul.f32 %v1676, %v1711
        %v1715 = vmul.f32 %v1677, %v1711
        %v1716 = vmul.f32 %v1678, %v1711
        %v1717 = vmul.f32 %v1679, %v1711
        %v1718 = vmul.f32 %v1680, %v1711
        %v1719 = vmul.f32 %v1681, %v1711
        %v1720 = vmul.f32 %v1682, %v1711
        %v1721 = vmul.f32 %v1683, %v1711
        %v1722 = vmul.f32 %v1684, %v1711
        %v1723 = vmul.f32 %v1685, %v1711
        %v1724 = vmul.f32 %v1686, %v1711
        %v1725 = vmul.f32 %v1687, %v1711
        %v1726 = vmul.f32 %v1688, %v1711
        %v1727 = vmul.f32 %v1689, %v1711
        %v1728 = vmul.f32 %v1690, %v1711
        %v1729 = vmul.f32 %v1691, %v1711
        %v1730 = vmul.f32 %v1692, %v1711
        %v1731 = vmul.f32 %v1693, %v1711
        %v1732 = vmul.f32 %v1694, %v1711
        %v1733 = vmul.f32 %v1695, %v1711
        %v1734 = vmul.f32 %v1696, %v1711
        %v1735 = vmul.f32 %v1697, %v1711
        %v1736 = vmul.f32 %v1698, %v1711
        %v1737 = vmul.f32 %v1699, %v1711
        %v1738 = vmul.f32 %v1700, %v1711
        %v1739 = vmul.f32 %v1701, %v1711
        %v1740 = vmul.f32 %v1702, %v1711
        %v1741 = vmul.f32 %v1703, %v1711
        %v1742 = vmul.f32 %v1704, %v1711
        %v1743 = vmul.f32 %v1705, %v1711
        %v1744 = vlaneseq
        %v1745 = vshrl.u32 %v1744, 7
        %v1746 = vsub.s32 1, %v1745
        %v1747 = vrot.slane %v1707, %v1746
        %v1748 = vadd.f32 %v1712, %v1747
        %v1749 = vadd.f32 %v1713, %v1747
        %v1750 = vadd.f32 %v1714, %v1747
        %v1751 = vadd.f32 %v1715, %v1747
        %v1752 = vadd.f32 %v1716, %v1747
        %v1753 = vadd.f32 %v1717, %v1747
        %v1754 = vadd.f32 %v1718, %v1747
        %v1755 = vadd.f32 %v1719, %v1747
        %v1756 = vadd.f32 %v1720, %v1747
        %v1757 = vadd.f32 %v1721, %v1747
        %v1758 = vadd.f32 %v1722, %v1747
        %v1759 = vadd.f32 %v1723, %v1747
        %v1760 = vadd.f32 %v1724, %v1747
        %v1761 = vadd.f32 %v1725, %v1747
        %v1762 = vadd.f32 %v1726, %v1747
        %v1763 = vadd.f32 %v1727, %v1747
        %v1764 = vadd.f32 %v1728, %v1747
        %v1765 = vadd.f32 %v1729, %v1747
        %v1766 = vadd.f32 %v1730, %v1747
        %v1767 = vadd.f32 %v1731, %v1747
        %v1768 = vadd.f32 %v1732, %v1747
        %v1769 = vadd.f32 %v1733, %v1747
        %v1770 = vadd.f32 %v1734, %v1747
        %v1771 = vadd.f32 %v1735, %v1747
        %v1772 = vadd.f32 %v1736, %v1747
        %v1773 = vadd.f32 %v1737, %v1747
        %v1774 = vadd.f32 %v1738, %v1747
        %v1775 = vadd.f32 %v1739, %v1747
        %v1776 = vadd.f32 %v1740, %v1747
        %v1777 = vadd.f32 %v1741, %v1747
        %v1778 = vadd.f32 %v1742, %v1747
        %v1779 = vadd.f32 %v1743, %v1747
        %v1780 = vmax.f32 %v1748, 0.0
        %v1781 = vmax.f32 %v1749, 0.0
        %v1782 = vmax.f32 %v1750, 0.0
        %v1783 = vmax.f32 %v1751, 0.0
        %v1784 = vmax.f32 %v1752, 0.0
        %v1785 = vmax.f32 %v1753, 0.0
        %v1786 = vmax.f32 %v1754, 0.0
        %v1787 = vmax.f32 %v1755, 0.0
        %v1788 = vmax.f32 %v1756, 0.0
        %v1789 = vmax.f32 %v1757, 0.0
        %v1790 = vmax.f32 %v1758, 0.0
        %v1791 = vmax.f32 %v1759, 0.0
        %v1792 = vmax.f32 %v1760, 0.0
        %v1793 = vmax.f32 %v1761, 0.0
        %v1794 = vmax.f32 %v1762, 0.0
        %v1795 = vmax.f32 %v1763, 0.0
        %v1796 = vmax.f32 %v1764, 0.0
        %v1797 = vmax.f32 %v1765, 0.0
        %v1798 = vmax.f32 %v1766, 0.0
        %v1799 = vmax.f32 %v1767, 0.0
        %v1800 = vmax.f32 %v1768, 0.0
        %v1801 = vmax.f32 %v1769, 0.0
        %v1802 = vmax.f32 %v1770, 0.0
        %v1803 = vmax.f32 %v1771, 0.0
        %v1804 = vmax.f32 %v1772, 0.0
        %v1805 = vmax.f32 %v1773, 0.0
        %v1806 = vmax.f32 %v1774, 0.0
        %v1807 = vmax.f32 %v1775, 0.0
        %v1808 = vmax.f32 %v1776, 0.0
        %v1809 = vmax.f32 %v1777, 0.0
        %v1810 = vmax.f32 %v1778, 0.0
        %v1811 = vmax.f32 %v1779, 0.0
        %v1812 = vpack.c.bf16 %v1781, %v1780
        %v1813 = vpack.c.bf16 %v1783, %v1782
        %v1814 = vpack.c.bf16 %v1785, %v1784
        %v1815 = vpack.c.bf16 %v1787, %v1786
        %v1816 = vpack.c.bf16 %v1789, %v1788
        %v1817 = vpack.c.bf16 %v1791, %v1790
        %v1818 = vpack.c.bf16 %v1793, %v1792
        %v1819 = vpack.c.bf16 %v1795, %v1794
        %v1820 = vpack.c.bf16 %v1797, %v1796
        %v1821 = vpack.c.bf16 %v1799, %v1798
        %v1822 = vpack.c.bf16 %v1801, %v1800
        %v1823 = vpack.c.bf16 %v1803, %v1802
        %v1824 = vpack.c.bf16 %v1805, %v1804
        %v1825 = vpack.c.bf16 %v1807, %v1806
        %v1826 = vpack.c.bf16 %v1809, %v1808
        %v1827 = vpack.c.bf16 %v1811, %v1810
        %s1828 = scalar_lea.vmem %s5, 8
        %v1829 = vld [vmem:[%s1828] sm:$0xf]
        %v1830 = vld [vmem:[%s1828 + $0x4] sm:$0xf]
        %v1833 = vunpack.c.l.b16 %v1829
        %v1834 = vunpack.c.l.b16 %v1830
        %v1835 = vpack.c.b16 %v1834, %v1833
        %v1838 = vsel %vm1209, %v1812, 0
        %v1841 = vsel %vm1209, %v1813, 0
        %v1844 = vsel %vm1209, %v1814, 0
        %v1847 = vsel %vm1209, %v1815, 0
        %v1850 = vsel %vm1209, %v1816, 0
        %v1853 = vsel %vm1209, %v1817, 0
        %v1856 = vsel %vm1209, %v1818, 0
        %v1859 = vsel %vm1209, %v1819, 0
        %v1862 = vsel %vm1209, %v1820, 0
        %v1865 = vsel %vm1209, %v1821, 0
        %v1868 = vsel %vm1209, %v1822, 0
        %v1871 = vsel %vm1209, %v1823, 0
        %v1874 = vsel %vm1209, %v1824, 0
        %v1877 = vsel %vm1209, %v1825, 0
        %v1880 = vsel %vm1209, %v1826, 0
        %v1883 = vsel %vm1209, %v1827, 0
        %1885 = vmatprep.subr.bf16.mxu0 0
        %1886 = vmatpush1.bf16.msra.mxu0 %v1835
        %1887 = vmatprep.subr.bf16.mxu0 0
        %1888 = vmatpush1.bf16.msra.mxu0 0
        %1889 = vmatprep.subr.bf16.mxu0 0
        %1890 = vmatpush1.bf16.msra.mxu0 0
        %1891 = vmatprep.subr.bf16.mxu0 0
        %1892 = vmatpush1.bf16.msra.mxu0 0
        %1893 = vmatprep.subr.bf16.mxu0 0
        %1894 = vmatpush1.bf16.msra.mxu0 0
        %1895 = vmatprep.subr.bf16.mxu0 0
        %1896 = vmatpush1.bf16.msra.mxu0 0
        %1897 = vmatprep.subr.bf16.mxu0 0
        %1898 = vmatpush1.bf16.msra.mxu0 0
        %1899 = vmatprep.subr.bf16.mxu0 0
        %1900 = vmatpush1.bf16.msra.mxu0 0
        %1901 = vmatprep.subr.bf16.mxu0 0
        %1902 = vmatpush1.bf16.msra.mxu0 0
        %1903 = vmatprep.subr.bf16.mxu0 0
        %1904 = vmatpush1.bf16.msra.mxu0 0
        %1905 = vmatprep.subr.bf16.mxu0 0
        %1906 = vmatpush1.bf16.msra.mxu0 0
        %1907 = vmatprep.subr.bf16.mxu0 0
        %1908 = vmatpush1.bf16.msra.mxu0 0
        %1909 = vmatprep.subr.bf16.mxu0 0
        %1910 = vmatpush1.bf16.msra.mxu0 0
        %1911 = vmatprep.subr.bf16.mxu0 0
        %1912 = vmatpush1.bf16.msra.mxu0 0
        %1913 = vmatprep.subr.bf16.mxu0 0
        %1914 = vmatpush1.bf16.msra.mxu0 0
        %1915 = vmatprep.subr.bf16.mxu0 0
        %1916 = vmatpush1.bf16.msra.mxu0 0
        %1917 = vmatprep.mubr.bf16.mxu0 0
        %1918 = vmatmul.mubr.bf16.gmra.mrb[0].mxu0 %v1838
        %v1919 = vpop.f32.mrb[0].mxu0
        %v1920 = vadd.f32 0.0, %v1919
        %v1921 = vpop.f32.mrb[0].mxu0
        %v1922 = vpop.f32.mrb[0].mxu0
        %v1923 = vadd.f32 0.0, %v1922
        %v1924 = vpop.f32.mrb[0].mxu0
        %1925 = vmatprep.mubr.bf16.mxu0 0
        %1926 = vmatmul.mubr.bf16.gmra.mrb[0].mxu0 %v1841
        %v1927 = vpop.f32.mrb[0].mxu0
        %v1928 = vadd.f32 0.0, %v1927
        %v1929 = vpop.f32.mrb[0].mxu0
        %v1930 = vpop.f32.mrb[0].mxu0
        %v1931 = vadd.f32 0.0, %v1930
        %v1932 = vpop.f32.mrb[0].mxu0
        %1933 = vmatprep.mubr.bf16.mxu0 0
        %1934 = vmatmul.mubr.bf16.gmra.mrb[0].mxu0 %v1844
        %v1935 = vpop.f32.mrb[0].mxu0
        %v1936 = vadd.f32 0.0, %v1935
        %v1937 = vpop.f32.mrb[0].mxu0
        %v1938 = vpop.f32.mrb[0].mxu0
        %v1939 = vadd.f32 0.0, %v1938
        %v1940 = vpop.f32.mrb[0].mxu0
        %1941 = vmatprep.mubr.bf16.mxu0 0
        %1942 = vmatmul.mubr.bf16.gmra.mrb[0].mxu0 %v1847
        %v1943 = vpop.f32.mrb[0].mxu0
        %v1944 = vadd.f32 0.0, %v1943
        %v1945 = vpop.f32.mrb[0].mxu0
        %v1946 = vpop.f32.mrb[0].mxu0
        %v1947 = vadd.f32 0.0, %v1946
        %v1948 = vpop.f32.mrb[0].mxu0
        %1949 = vmatprep.mubr.bf16.mxu0 0
        %1950 = vmatmul.mubr.bf16.gmra.mrb[0].mxu0 %v1850
        %v1951 = vpop.f32.mrb[0].mxu0
        %v1952 = vadd.f32 0.0, %v1951
        %v1953 = vpop.f32.mrb[0].mxu0
        %v1954 = vpop.f32.mrb[0].mxu0
        %v1955 = vadd.f32 0.0, %v1954
        %v1956 = vpop.f32.mrb[0].mxu0
        %1957 = vmatprep.mubr.bf16.mxu0 0
        %1958 = vmatmul.mubr.bf16.gmra.mrb[0].mxu0 %v1853
        %v1959 = vpop.f32.mrb[0].mxu0
        %v1960 = vadd.f32 0.0, %v1959
        %v1961 = vpop.f32.mrb[0].mxu0
        %v1962 = vpop.f32.mrb[0].mxu0
        %v1963 = vadd.f32 0.0, %v1962
        %v1964 = vpop.f32.mrb[0].mxu0
        %1965 = vmatprep.mubr.bf16.mxu0 0
        %1966 = vmatmul.mubr.bf16.gmra.mrb[0].mxu0 %v1856
        %v1967 = vpop.f32.mrb[0].mxu0
        %v1968 = vadd.f32 0.0, %v1967
        %v1969 = vpop.f32.mrb[0].mxu0
        %v1970 = vpop.f32.mrb[0].mxu0
        %v1971 = vadd.f32 0.0, %v1970
        %v1972 = vpop.f32.mrb[0].mxu0
        %1973 = vmatprep.mubr.bf16.mxu0 0
        %1974 = vmatmul.mubr.bf16.gmra.mrb[0].mxu0 %v1859
        %v1975 = vpop.f32.mrb[0].mxu0
        %v1976 = vadd.f32 0.0, %v1975
        %v1977 = vpop.f32.mrb[0].mxu0
        %v1978 = vpop.f32.mrb[0].mxu0
        %v1979 = vadd.f32 0.0, %v1978
        %v1980 = vpop.f32.mrb[0].mxu0
        %1981 = vmatprep.mubr.bf16.mxu0 0
        %1982 = vmatmul.mubr.bf16.gmra.mrb[0].mxu0 %v1862
        %v1983 = vpop.f32.mrb[0].mxu0
        %v1984 = vadd.f32 0.0, %v1983
        %v1985 = vpop.f32.mrb[0].mxu0
        %v1986 = vpop.f32.mrb[0].mxu0
        %v1987 = vadd.f32 0.0, %v1986
        %v1988 = vpop.f32.mrb[0].mxu0
        %1989 = vmatprep.mubr.bf16.mxu0 0
        %1990 = vmatmul.mubr.bf16.gmra.mrb[0].mxu0 %v1865
        %v1991 = vpop.f32.mrb[0].mxu0
        %v1992 = vadd.f32 0.0, %v1991
        %v1993 = vpop.f32.mrb[0].mxu0
        %v1994 = vpop.f32.mrb[0].mxu0
        %v1995 = vadd.f32 0.0, %v1994
        %v1996 = vpop.f32.mrb[0].mxu0
        %1997 = vmatprep.mubr.bf16.mxu0 0
        %1998 = vmatmul.mubr.bf16.gmra.mrb[0].mxu0 %v1868
        %v1999 = vpop.f32.mrb[0].mxu0
        %v2000 = vadd.f32 0.0, %v1999
        %v2001 = vpop.f32.mrb[0].mxu0
        %v2002 = vpop.f32.mrb[0].mxu0
        %v2003 = vadd.f32 0.0, %v2002
        %v2004 = vpop.f32.mrb[0].mxu0
        %2005 = vmatprep.mubr.bf16.mxu0 0
        %2006 = vmatmul.mubr.bf16.gmra.mrb[0].mxu0 %v1871
        %v2007 = vpop.f32.mrb[0].mxu0
        %v2008 = vadd.f32 0.0, %v2007
        %v2009 = vpop.f32.mrb[0].mxu0
        %v2010 = vpop.f32.mrb[0].mxu0
        %v2011 = vadd.f32 0.0, %v2010
        %v2012 = vpop.f32.mrb[0].mxu0
        %2013 = vmatprep.mubr.bf16.mxu0 0
        %2014 = vmatmul.mubr.bf16.gmra.mrb[0].mxu0 %v1874
        %v2015 = vpop.f32.mrb[0].mxu0
        %v2016 = vadd.f32 0.0, %v2015
        %v2017 = vpop.f32.mrb[0].mxu0
        %v2018 = vpop.f32.mrb[0].mxu0
        %v2019 = vadd.f32 0.0, %v2018
        %v2020 = vpop.f32.mrb[0].mxu0
        %2021 = vmatprep.mubr.bf16.mxu0 0
        %2022 = vmatmul.mubr.bf16.gmra.mrb[0].mxu0 %v1877
        %v2023 = vpop.f32.mrb[0].mxu0
        %v2024 = vadd.f32 0.0, %v2023
        %v2025 = vpop.f32.mrb[0].mxu0
        %v2026 = vpop.f32.mrb[0].mxu0
        %v2027 = vadd.f32 0.0, %v2026
        %v2028 = vpop.f32.mrb[0].mxu0
        %2029 = vmatprep.mubr.bf16.mxu0 0
        %2030 = vmatmul.mubr.bf16.gmra.mrb[0].mxu0 %v1880
        %v2031 = vpop.f32.mrb[0].mxu0
        %v2032 = vadd.f32 0.0, %v2031
        %v2033 = vpop.f32.mrb[0].mxu0
        %v2034 = vpop.f32.mrb[0].mxu0
        %v2035 = vadd.f32 0.0, %v2034
        %v2036 = vpop.f32.mrb[0].mxu0
        %2037 = vmatprep.mubr.bf16.mxu0 0
        %2038 = vmatmul.mubr.bf16.gmra.mrb[0].mxu0 %v1883
        %v2039 = vpop.f32.mrb[0].mxu0
        %v2040 = vadd.f32 0.0, %v2039
        %v2041 = vpop.f32.mrb[0].mxu0
        %v2042 = vpop.f32.mrb[0].mxu0
        %v2043 = vadd.f32 0.0, %v2042
        %v2044 = vpop.f32.mrb[0].mxu0
        %2045 = vdwg.mxu0
        %v2046 = vadd.f32 %v1515, %v1920
        %v2047 = vadd.f32 %v1518, %v1923
        %v2048 = vadd.f32 %v1523, %v1928
        %v2049 = vadd.f32 %v1526, %v1931
        %v2050 = vadd.f32 %v1531, %v1936
        %v2051 = vadd.f32 %v1534, %v1939
        %v2052 = vadd.f32 %v1539, %v1944
        %v2053 = vadd.f32 %v1542, %v1947
        %v2054 = vadd.f32 %v1547, %v1952
        %v2055 = vadd.f32 %v1550, %v1955
        %v2056 = vadd.f32 %v1555, %v1960
        %v2057 = vadd.f32 %v1558, %v1963
        %v2058 = vadd.f32 %v1563, %v1968
        %v2059 = vadd.f32 %v1566, %v1971
        %v2060 = vadd.f32 %v1571, %v1976
        %v2061 = vadd.f32 %v1574, %v1979
        %v2062 = vadd.f32 %v1579, %v1984
        %v2063 = vadd.f32 %v1582, %v1987
        %v2064 = vadd.f32 %v1587, %v1992
        %v2065 = vadd.f32 %v1590, %v1995
        %v2066 = vadd.f32 %v1595, %v2000
        %v2067 = vadd.f32 %v1598, %v2003
        %v2068 = vadd.f32 %v1603, %v2008
        %v2069 = vadd.f32 %v1606, %v2011
        %v2070 = vadd.f32 %v1611, %v2016
        %v2071 = vadd.f32 %v1614, %v2019
        %v2072 = vadd.f32 %v1619, %v2024
        %v2073 = vadd.f32 %v1622, %v2027
        %v2074 = vadd.f32 %v1627, %v2032
        %v2075 = vadd.f32 %v1630, %v2035
        %v2076 = vadd.f32 %v1635, %v2040
        %v2077 = vadd.f32 %v1638, %v2043
        %s2078 = scalar_lea.vmem %s781, 256 [#allocation2]
        %v2079 = vld [vmem:[%s2078] sm:$0xf]
        %v2080 = vld [vmem:[%s2078 + $0x4] sm:$0xf]
        %v2081 = vld [vmem:[%s2078 + $0x8] sm:$0xf]
        %v2082 = vld [vmem:[%s2078 + $0xc] sm:$0xf]
        %v2083 = vld [vmem:[%s2078 + $0x10] sm:$0xf]
        %v2084 = vld [vmem:[%s2078 + $0x14] sm:$0xf]
        %v2085 = vld [vmem:[%s2078 + $0x18] sm:$0xf]
        %v2086 = vld [vmem:[%s2078 + $0x1c] sm:$0xf]
        %v2087 = vld [vmem:[%s2078 + $0x20] sm:$0xf]
        %v2088 = vld [vmem:[%s2078 + $0x24] sm:$0xf]
        %v2089 = vld [vmem:[%s2078 + $0x28] sm:$0xf]
        %v2090 = vld [vmem:[%s2078 + $0x2c] sm:$0xf]
        %v2091 = vld [vmem:[%s2078 + $0x30] sm:$0xf]
        %v2092 = vld [vmem:[%s2078 + $0x34] sm:$0xf]
        %v2093 = vld [vmem:[%s2078 + $0x38] sm:$0xf]
        %v2094 = vld [vmem:[%s2078 + $0x3c] sm:$0xf]
        %v2095 = vld [vmem:[%s2078 + $0x40] sm:$0xf]
        %v2096 = vld [vmem:[%s2078 + $0x44] sm:$0xf]
        %v2097 = vld [vmem:[%s2078 + $0x48] sm:$0xf]
        %v2098 = vld [vmem:[%s2078 + $0x4c] sm:$0xf]
        %v2099 = vld [vmem:[%s2078 + $0x50] sm:$0xf]
        %v2100 = vld [vmem:[%s2078 + $0x54] sm:$0xf]
        %v2101 = vld [vmem:[%s2078 + $0x58] sm:$0xf]
        %v2102 = vld [vmem:[%s2078 + $0x5c] sm:$0xf]
        %v2103 = vld [vmem:[%s2078 + $0x60] sm:$0xf]
        %v2104 = vld [vmem:[%s2078 + $0x64] sm:$0xf]
        %v2105 = vld [vmem:[%s2078 + $0x68] sm:$0xf]
        %v2106 = vld [vmem:[%s2078 + $0x6c] sm:$0xf]
        %v2107 = vld [vmem:[%s2078 + $0x70] sm:$0xf]
        %v2108 = vld [vmem:[%s2078 + $0x74] sm:$0xf]
        %v2109 = vld [vmem:[%s2078 + $0x78] sm:$0xf]
        %v2110 = vld [vmem:[%s2078 + $0x7c] sm:$0xf]
        %v2111 = vunpack.c.l.bf16 %v2079
        %v2112 = vunpack.c.l.bf16 %v2080
        %v2113 = vunpack.c.l.bf16 %v2081
        %v2114 = vunpack.c.l.bf16 %v2082
        %v2115 = vunpack.c.l.bf16 %v2083
        %v2116 = vunpack.c.l.bf16 %v2084
        %v2117 = vunpack.c.l.bf16 %v2085
        %v2118 = vunpack.c.l.bf16 %v2086
        %v2119 = vunpack.c.l.bf16 %v2087
        %v2120 = vunpack.c.l.bf16 %v2088
        %v2121 = vunpack.c.l.bf16 %v2089
        %v2122 = vunpack.c.l.bf16 %v2090
        %v2123 = vunpack.c.l.bf16 %v2091
        %v2124 = vunpack.c.l.bf16 %v2092
        %v2125 = vunpack.c.l.bf16 %v2093
        %v2126 = vunpack.c.l.bf16 %v2094
        %v2127 = vunpack.c.l.bf16 %v2095
        %v2128 = vunpack.c.l.bf16 %v2096
        %v2129 = vunpack.c.l.bf16 %v2097
        %v2130 = vunpack.c.l.bf16 %v2098
        %v2131 = vunpack.c.l.bf16 %v2099
        %v2132 = vunpack.c.l.bf16 %v2100
        %v2133 = vunpack.c.l.bf16 %v2101
        %v2134 = vunpack.c.l.bf16 %v2102
        %v2135 = vunpack.c.l.bf16 %v2103
        %v2136 = vunpack.c.l.bf16 %v2104
        %v2137 = vunpack.c.l.bf16 %v2105
        %v2138 = vunpack.c.l.bf16 %v2106
        %v2139 = vunpack.c.l.bf16 %v2107
        %v2140 = vunpack.c.l.bf16 %v2108
        %v2141 = vunpack.c.l.bf16 %v2109
        %v2142 = vunpack.c.l.bf16 %v2110
        %s2143 = scalar_lea.vmem %s3, 4
        %v2144 = vld [vmem:[%s2143] sm:$0x3]
        %v2145 = vlaneseq
        %v2146 = vshrl.u32 %v2145, 7
        %v2147 = vsub.s32 0, %v2146
        %v2148 = vrot.slane %v2144, %v2147
        %v2149 = vmul.f32 %v2111, %v2148
        %v2150 = vmul.f32 %v2112, %v2148
        %v2151 = vmul.f32 %v2113, %v2148
        %v2152 = vmul.f32 %v2114, %v2148
        %v2153 = vmul.f32 %v2115, %v2148
        %v2154 = vmul.f32 %v2116, %v2148
        %v2155 = vmul.f32 %v2117, %v2148
        %v2156 = vmul.f32 %v2118, %v2148
        %v2157 = vmul.f32 %v2119, %v2148
        %v2158 = vmul.f32 %v2120, %v2148
        %v2159 = vmul.f32 %v2121, %v2148
        %v2160 = vmul.f32 %v2122, %v2148
        %v2161 = vmul.f32 %v2123, %v2148
        %v2162 = vmul.f32 %v2124, %v2148
        %v2163 = vmul.f32 %v2125, %v2148
        %v2164 = vmul.f32 %v2126, %v2148
        %v2165 = vmul.f32 %v2127, %v2148
        %v2166 = vmul.f32 %v2128, %v2148
        %v2167 = vmul.f32 %v2129, %v2148
        %v2168 = vmul.f32 %v2130, %v2148
        %v2169 = vmul.f32 %v2131, %v2148
        %v2170 = vmul.f32 %v2132, %v2148
        %v2171 = vmul.f32 %v2133, %v2148
        %v2172 = vmul.f32 %v2134, %v2148
        %v2173 = vmul.f32 %v2135, %v2148
        %v2174 = vmul.f32 %v2136, %v2148
        %v2175 = vmul.f32 %v2137, %v2148
        %v2176 = vmul.f32 %v2138, %v2148
        %v2177 = vmul.f32 %v2139, %v2148
        %v2178 = vmul.f32 %v2140, %v2148
        %v2179 = vmul.f32 %v2141, %v2148
        %v2180 = vmul.f32 %v2142, %v2148
        %v2181 = vlaneseq
        %v2182 = vshrl.u32 %v2181, 7
        %v2183 = vsub.s32 1, %v2182
        %v2184 = vrot.slane %v2144, %v2183
        %v2185 = vadd.f32 %v2149, %v2184
        %v2186 = vadd.f32 %v2150, %v2184
        %v2187 = vadd.f32 %v2151, %v2184
        %v2188 = vadd.f32 %v2152, %v2184
        %v2189 = vadd.f32 %v2153, %v2184
        %v2190 = vadd.f32 %v2154, %v2184
        %v2191 = vadd.f32 %v2155, %v2184
        %v2192 = vadd.f32 %v2156, %v2184
        %v2193 = vadd.f32 %v2157, %v2184
        %v2194 = vadd.f32 %v2158, %v2184
        %v2195 = vadd.f32 %v2159, %v2184
        %v2196 = vadd.f32 %v2160, %v2184
        %v2197 = vadd.f32 %v2161, %v2184
        %v2198 = vadd.f32 %v2162, %v2184
        %v2199 = vadd.f32 %v2163, %v2184
        %v2200 = vadd.f32 %v2164, %v2184
        %v2201 = vadd.f32 %v2165, %v2184
        %v2202 = vadd.f32 %v2166, %v2184
        %v2203 = vadd.f32 %v2167, %v2184
        %v2204 = vadd.f32 %v2168, %v2184
        %v2205 = vadd.f32 %v2169, %v2184
        %v2206 = vadd.f32 %v2170, %v2184
        %v2207 = vadd.f32 %v2171, %v2184
        %v2208 = vadd.f32 %v2172, %v2184
        %v2209 = vadd.f32 %v2173, %v2184
        %v2210 = vadd.f32 %v2174, %v2184
        %v2211 = vadd.f32 %v2175, %v2184
        %v2212 = vadd.f32 %v2176, %v2184
        %v2213 = vadd.f32 %v2177, %v2184
        %v2214 = vadd.f32 %v2178, %v2184
        %v2215 = vadd.f32 %v2179, %v2184
        %v2216 = vadd.f32 %v2180, %v2184
        %v2217 = vmax.f32 %v2185, 0.0
        %v2218 = vmax.f32 %v2186, 0.0
        %v2219 = vmax.f32 %v2187, 0.0
        %v2220 = vmax.f32 %v2188, 0.0
        %v2221 = vmax.f32 %v2189, 0.0
        %v2222 = vmax.f32 %v2190, 0.0
        %v2223 = vmax.f32 %v2191, 0.0
        %v2224 = vmax.f32 %v2192, 0.0
        %v2225 = vmax.f32 %v2193, 0.0
        %v2226 = vmax.f32 %v2194, 0.0
        %v2227 = vmax.f32 %v2195, 0.0
        %v2228 = vmax.f32 %v2196, 0.0
        %v2229 = vmax.f32 %v2197, 0.0
        %v2230 = vmax.f32 %v2198, 0.0
        %v2231 = vmax.f32 %v2199, 0.0
        %v2232 = vmax.f32 %v2200, 0.0
        %v2233 = vmax.f32 %v2201, 0.0
        %v2234 = vmax.f32 %v2202, 0.0
        %v2235 = vmax.f32 %v2203, 0.0
        %v2236 = vmax.f32 %v2204, 0.0
        %v2237 = vmax.f32 %v2205, 0.0
        %v2238 = vmax.f32 %v2206, 0.0
        %v2239 = vmax.f32 %v2207, 0.0
        %v2240 = vmax.f32 %v2208, 0.0
        %v2241 = vmax.f32 %v2209, 0.0
        %v2242 = vmax.f32 %v2210, 0.0
        %v2243 = vmax.f32 %v2211, 0.0
        %v2244 = vmax.f32 %v2212, 0.0
        %v2245 = vmax.f32 %v2213, 0.0
        %v2246 = vmax.f32 %v2214, 0.0
        %v2247 = vmax.f32 %v2215, 0.0
        %v2248 = vmax.f32 %v2216, 0.0
        %v2249 = vpack.c.bf16 %v2218, %v2217
        %v2250 = vpack.c.bf16 %v2220, %v2219
        %v2251 = vpack.c.bf16 %v2222, %v2221
        %v2252 = vpack.c.bf16 %v2224, %v2223
        %v2253 = vpack.c.bf16 %v2226, %v2225
        %v2254 = vpack.c.bf16 %v2228, %v2227
        %v2255 = vpack.c.bf16 %v2230, %v2229
        %v2256 = vpack.c.bf16 %v2232, %v2231
        %v2257 = vpack.c.bf16 %v2234, %v2233
        %v2258 = vpack.c.bf16 %v2236, %v2235
        %v2259 = vpack.c.bf16 %v2238, %v2237
        %v2260 = vpack.c.bf16 %v2240, %v2239
        %v2261 = vpack.c.bf16 %v2242, %v2241
        %v2262 = vpack.c.bf16 %v2244, %v2243
        %v2263 = vpack.c.bf16 %v2246, %v2245
        %v2264 = vpack.c.bf16 %v2248, %v2247
        %s2265 = scalar_lea.vmem %s5, 16
        %v2266 = vld [vmem:[%s2265] sm:$0xf]
        %v2267 = vld [vmem:[%s2265 + $0x4] sm:$0xf]
        %v2270 = vunpack.c.l.b16 %v2266
        %v2271 = vunpack.c.l.b16 %v2267
        %v2272 = vpack.c.b16 %v2271, %v2270
        %v2275 = vsel %vm1209, %v2249, 0
        %v2278 = vsel %vm1209, %v2250, 0
        %v2281 = vsel %vm1209, %v2251, 0
        %v2284 = vsel %vm1209, %v2252, 0
        %v2287 = vsel %vm1209, %v2253, 0
        %v2290 = vsel %vm1209, %v2254, 0
        %v2293 = vsel %vm1209, %v2255, 0
        %v2296 = vsel %vm1209, %v2256, 0
        %v2299 = vsel %vm1209, %v2257, 0
        %v2302 = vsel %vm1209, %v2258, 0
        %v2305 = vsel %vm1209, %v2259, 0
        %v2308 = vsel %vm1209, %v2260, 0
        %v2311 = vsel %vm1209, %v2261, 0
        %v2314 = vsel %vm1209, %v2262, 0
        %v2317 = vsel %vm1209, %v2263, 0
        %v2320 = vsel %vm1209, %v2264, 0
        %2322 = vmatprep.subr.bf16.mxu0 0
        %2323 = vmatpush1.bf16.msra.mxu0 %v2272
        %2324 = vmatprep.subr.bf16.mxu0 0
        %2325 = vmatpush1.bf16.msra.mxu0 0
        %2326 = vmatprep.subr.bf16.mxu0 0
        %2327 = vmatpush1.bf16.msra.mxu0 0
        %2328 = vmatprep.subr.bf16.mxu0 0
        %2329 = vmatpush1.bf16.msra.mxu0 0
        %2330 = vmatprep.subr.bf16.mxu0 0
        %2331 = vmatpush1.bf16.msra.mxu0 0
        %2332 = vmatprep.subr.bf16.mxu0 0
        %2333 = vmatpush1.bf16.msra.mxu0 0
        %2334 = vmatprep.subr.bf16.mxu0 0
        %2335 = vmatpush1.bf16.msra.mxu0 0
        %2336 = vmatprep.subr.bf16.mxu0 0
        %2337 = vmatpush1.bf16.msra.mxu0 0
        %2338 = vmatprep.subr.bf16.mxu0 0
        %2339 = vmatpush1.bf16.msra.mxu0 0
        %2340 = vmatprep.subr.bf16.mxu0 0
        %2341 = vmatpush1.bf16.msra.mxu0 0
        %2342 = vmatprep.subr.bf16.mxu0 0
        %2343 = vmatpush1.bf16.msra.mxu0 0
        %2344 = vmatprep.subr.bf16.mxu0 0
        %2345 = vmatpush1.bf16.msra.mxu0 0
        %2346 = vmatprep.subr.bf16.mxu0 0
        %2347 = vmatpush1.bf16.msra.mxu0 0
        %2348 = vmatprep.subr.bf16.mxu0 0
        %2349 = vmatpush1.bf16.msra.mxu0 0
        %2350 = vmatprep.subr.bf16.mxu0 0
        %2351 = vmatpush1.bf16.msra.mxu0 0
        %2352 = vmatprep.subr.bf16.mxu0 0
        %2353 = vmatpush1.bf16.msra.mxu0 0
        %2354 = vmatprep.mubr.bf16.mxu0 0
        %2355 = vmatmul.mubr.bf16.gmra.mrb[0].mxu0 %v2275
        %v2356 = vpop.f32.mrb[0].mxu0
        %v2357 = vadd.f32 0.0, %v2356
        %v2358 = vpop.f32.mrb[0].mxu0
        %v2359 = vpop.f32.mrb[0].mxu0
        %v2360 = vadd.f32 0.0, %v2359
        %v2361 = vpop.f32.mrb[0].mxu0
        %2362 = vmatprep.mubr.bf16.mxu0 0
        %2363 = vmatmul.mubr.bf16.gmra.mrb[0].mxu0 %v2278
        %v2364 = vpop.f32.mrb[0].mxu0
        %v2365 = vadd.f32 0.0, %v2364
        %v2366 = vpop.f32.mrb[0].mxu0
        %v2367 = vpop.f32.mrb[0].mxu0
        %v2368 = vadd.f32 0.0, %v2367
        %v2369 = vpop.f32.mrb[0].mxu0
        %2370 = vmatprep.mubr.bf16.mxu0 0
        %2371 = vmatmul.mubr.bf16.gmra.mrb[0].mxu0 %v2281
        %v2372 = vpop.f32.mrb[0].mxu0
        %v2373 = vadd.f32 0.0, %v2372
        %v2374 = vpop.f32.mrb[0].mxu0
        %v2375 = vpop.f32.mrb[0].mxu0
        %v2376 = vadd.f32 0.0, %v2375
        %v2377 = vpop.f32.mrb[0].mxu0
        %2378 = vmatprep.mubr.bf16.mxu0 0
        %2379 = vmatmul.mubr.bf16.gmra.mrb[0].mxu0 %v2284
        %v2380 = vpop.f32.mrb[0].mxu0
        %v2381 = vadd.f32 0.0, %v2380
        %v2382 = vpop.f32.mrb[0].mxu0
        %v2383 = vpop.f32.mrb[0].mxu0
        %v2384 = vadd.f32 0.0, %v2383
        %v2385 = vpop.f32.mrb[0].mxu0
        %2386 = vmatprep.mubr.bf16.mxu0 0
        %2387 = vmatmul.mubr.bf16.gmra.mrb[0].mxu0 %v2287
        %v2388 = vpop.f32.mrb[0].mxu0
        %v2389 = vadd.f32 0.0, %v2388
        %v2390 = vpop.f32.mrb[0].mxu0
        %v2391 = vpop.f32.mrb[0].mxu0
        %v2392 = vadd.f32 0.0, %v2391
        %v2393 = vpop.f32.mrb[0].mxu0
        %2394 = vmatprep.mubr.bf16.mxu0 0
        %2395 = vmatmul.mubr.bf16.gmra.mrb[0].mxu0 %v2290
        %v2396 = vpop.f32.mrb[0].mxu0
        %v2397 = vadd.f32 0.0, %v2396
        %v2398 = vpop.f32.mrb[0].mxu0
        %v2399 = vpop.f32.mrb[0].mxu0
        %v2400 = vadd.f32 0.0, %v2399
        %v2401 = vpop.f32.mrb[0].mxu0
        %2402 = vmatprep.mubr.bf16.mxu0 0
        %2403 = vmatmul.mubr.bf16.gmra.mrb[0].mxu0 %v2293
        %v2404 = vpop.f32.mrb[0].mxu0
        %v2405 = vadd.f32 0.0, %v2404
        %v2406 = vpop.f32.mrb[0].mxu0
        %v2407 = vpop.f32.mrb[0].mxu0
        %v2408 = vadd.f32 0.0, %v2407
        %v2409 = vpop.f32.mrb[0].mxu0
        %2410 = vmatprep.mubr.bf16.mxu0 0
        %2411 = vmatmul.mubr.bf16.gmra.mrb[0].mxu0 %v2296
        %v2412 = vpop.f32.mrb[0].mxu0
        %v2413 = vadd.f32 0.0, %v2412
        %v2414 = vpop.f32.mrb[0].mxu0
        %v2415 = vpop.f32.mrb[0].mxu0
        %v2416 = vadd.f32 0.0, %v2415
        %v2417 = vpop.f32.mrb[0].mxu0
        %2418 = vmatprep.mubr.bf16.mxu0 0
        %2419 = vmatmul.mubr.bf16.gmra.mrb[0].mxu0 %v2299
        %v2420 = vpop.f32.mrb[0].mxu0
        %v2421 = vadd.f32 0.0, %v2420
        %v2422 = vpop.f32.mrb[0].mxu0
        %v2423 = vpop.f32.mrb[0].mxu0
        %v2424 = vadd.f32 0.0, %v2423
        %v2425 = vpop.f32.mrb[0].mxu0
        %2426 = vmatprep.mubr.bf16.mxu0 0
        %2427 = vmatmul.mubr.bf16.gmra.mrb[0].mxu0 %v2302
        %v2428 = vpop.f32.mrb[0].mxu0
        %v2429 = vadd.f32 0.0, %v2428
        %v2430 = vpop.f32.mrb[0].mxu0
        %v2431 = vpop.f32.mrb[0].mxu0
        %v2432 = vadd.f32 0.0, %v2431
        %v2433 = vpop.f32.mrb[0].mxu0
        %2434 = vmatprep.mubr.bf16.mxu0 0
        %2435 = vmatmul.mubr.bf16.gmra.mrb[0].mxu0 %v2305
        %v2436 = vpop.f32.mrb[0].mxu0
        %v2437 = vadd.f32 0.0, %v2436
        %v2438 = vpop.f32.mrb[0].mxu0
        %v2439 = vpop.f32.mrb[0].mxu0
        %v2440 = vadd.f32 0.0, %v2439
        %v2441 = vpop.f32.mrb[0].mxu0
        %2442 = vmatprep.mubr.bf16.mxu0 0
        %2443 = vmatmul.mubr.bf16.gmra.mrb[0].mxu0 %v2308
        %v2444 = vpop.f32.mrb[0].mxu0
        %v2445 = vadd.f32 0.0, %v2444
        %v2446 = vpop.f32.mrb[0].mxu0
        %v2447 = vpop.f32.mrb[0].mxu0
        %v2448 = vadd.f32 0.0, %v2447
        %v2449 = vpop.f32.mrb[0].mxu0
        %2450 = vmatprep.mubr.bf16.mxu0 0
        %2451 = vmatmul.mubr.bf16.gmra.mrb[0].mxu0 %v2311
        %v2452 = vpop.f32.mrb[0].mxu0
        %v2453 = vadd.f32 0.0, %v2452
        %v2454 = vpop.f32.mrb[0].mxu0
        %v2455 = vpop.f32.mrb[0].mxu0
        %v2456 = vadd.f32 0.0, %v2455
        %v2457 = vpop.f32.mrb[0].mxu0
        %2458 = vmatprep.mubr.bf16.mxu0 0
        %2459 = vmatmul.mubr.bf16.gmra.mrb[0].mxu0 %v2314
        %v2460 = vpop.f32.mrb[0].mxu0
        %v2461 = vadd.f32 0.0, %v2460
        %v2462 = vpop.f32.mrb[0].mxu0
        %v2463 = vpop.f32.mrb[0].mxu0
        %v2464 = vadd.f32 0.0, %v2463
        %v2465 = vpop.f32.mrb[0].mxu0
        %2466 = vmatprep.mubr.bf16.mxu0 0
        %2467 = vmatmul.mubr.bf16.gmra.mrb[0].mxu0 %v2317
        %v2468 = vpop.f32.mrb[0].mxu0
        %v2469 = vadd.f32 0.0, %v2468
        %v2470 = vpop.f32.mrb[0].mxu0
        %v2471 = vpop.f32.mrb[0].mxu0
        %v2472 = vadd.f32 0.0, %v2471
        %v2473 = vpop.f32.mrb[0].mxu0
        %2474 = vmatprep.mubr.bf16.mxu0 0
        %2475 = vmatmul.mubr.bf16.gmra.mrb[0].mxu0 %v2320
        %v2476 = vpop.f32.mrb[0].mxu0
        %v2477 = vadd.f32 0.0, %v2476
        %v2478 = vpop.f32.mrb[0].mxu0
        %v2479 = vpop.f32.mrb[0].mxu0
        %v2480 = vadd.f32 0.0, %v2479
        %v2481 = vpop.f32.mrb[0].mxu0
        %2482 = vdwg.mxu0
        %v2483 = vadd.f32 %v2046, %v2357
        %v2484 = vadd.f32 %v2047, %v2360
        %v2485 = vadd.f32 %v2048, %v2365
        %v2486 = vadd.f32 %v2049, %v2368
        %v2487 = vadd.f32 %v2050, %v2373
        %v2488 = vadd.f32 %v2051, %v2376
        %v2489 = vadd.f32 %v2052, %v2381
        %v2490 = vadd.f32 %v2053, %v2384
        %v2491 = vadd.f32 %v2054, %v2389
        %v2492 = vadd.f32 %v2055, %v2392
        %v2493 = vadd.f32 %v2056, %v2397
        %v2494 = vadd.f32 %v2057, %v2400
        %v2495 = vadd.f32 %v2058, %v2405
        %v2496 = vadd.f32 %v2059, %v2408
        %v2497 = vadd.f32 %v2060, %v2413
        %v2498 = vadd.f32 %v2061, %v2416
        %v2499 = vadd.f32 %v2062, %v2421
        %v2500 = vadd.f32 %v2063, %v2424
        %v2501 = vadd.f32 %v2064, %v2429
        %v2502 = vadd.f32 %v2065, %v2432
        %v2503 = vadd.f32 %v2066, %v2437
        %v2504 = vadd.f32 %v2067, %v2440
        %v2505 = vadd.f32 %v2068, %v2445
        %v2506 = vadd.f32 %v2069, %v2448
        %v2507 = vadd.f32 %v2070, %v2453
        %v2508 = vadd.f32 %v2071, %v2456
        %v2509 = vadd.f32 %v2072, %v2461
        %v2510 = vadd.f32 %v2073, %v2464
        %v2511 = vadd.f32 %v2074, %v2469
        %v2512 = vadd.f32 %v2075, %v2472
        %v2513 = vadd.f32 %v2076, %v2477
        %v2514 = vadd.f32 %v2077, %v2480
        %s2515 = scalar_lea.vmem %s781, 384 [#allocation2]
        %v2516 = vld [vmem:[%s2515] sm:$0xf]
        %v2517 = vld [vmem:[%s2515 + $0x4] sm:$0xf]
        %v2518 = vld [vmem:[%s2515 + $0x8] sm:$0xf]
        %v2519 = vld [vmem:[%s2515 + $0xc] sm:$0xf]
        %v2520 = vld [vmem:[%s2515 + $0x10] sm:$0xf]
        %v2521 = vld [vmem:[%s2515 + $0x14] sm:$0xf]
        %v2522 = vld [vmem:[%s2515 + $0x18] sm:$0xf]
        %v2523 = vld [vmem:[%s2515 + $0x1c] sm:$0xf]
        %v2524 = vld [vmem:[%s2515 + $0x20] sm:$0xf]
        %v2525 = vld [vmem:[%s2515 + $0x24] sm:$0xf]
        %v2526 = vld [vmem:[%s2515 + $0x28] sm:$0xf]
        %v2527 = vld [vmem:[%s2515 + $0x2c] sm:$0xf]
        %v2528 = vld [vmem:[%s2515 + $0x30] sm:$0xf]
        %v2529 = vld [vmem:[%s2515 + $0x34] sm:$0xf]
        %v2530 = vld [vmem:[%s2515 + $0x38] sm:$0xf]
        %v2531 = vld [vmem:[%s2515 + $0x3c] sm:$0xf]
        %v2532 = vld [vmem:[%s2515 + $0x40] sm:$0xf]
        %v2533 = vld [vmem:[%s2515 + $0x44] sm:$0xf]
        %v2534 = vld [vmem:[%s2515 + $0x48] sm:$0xf]
        %v2535 = vld [vmem:[%s2515 + $0x4c] sm:$0xf]
        %v2536 = vld [vmem:[%s2515 + $0x50] sm:$0xf]
        %v2537 = vld [vmem:[%s2515 + $0x54] sm:$0xf]
        %v2538 = vld [vmem:[%s2515 + $0x58] sm:$0xf]
        %v2539 = vld [vmem:[%s2515 + $0x5c] sm:$0xf]
        %v2540 = vld [vmem:[%s2515 + $0x60] sm:$0xf]
        %v2541 = vld [vmem:[%s2515 + $0x64] sm:$0xf]
        %v2542 = vld [vmem:[%s2515 + $0x68] sm:$0xf]
        %v2543 = vld [vmem:[%s2515 + $0x6c] sm:$0xf]
        %v2544 = vld [vmem:[%s2515 + $0x70] sm:$0xf]
        %v2545 = vld [vmem:[%s2515 + $0x74] sm:$0xf]
        %v2546 = vld [vmem:[%s2515 + $0x78] sm:$0xf]
        %v2547 = vld [vmem:[%s2515 + $0x7c] sm:$0xf]
        %v2548 = vunpack.c.l.bf16 %v2516
        %v2549 = vunpack.c.l.bf16 %v2517
        %v2550 = vunpack.c.l.bf16 %v2518
        %v2551 = vunpack.c.l.bf16 %v2519
        %v2552 = vunpack.c.l.bf16 %v2520
        %v2553 = vunpack.c.l.bf16 %v2521
        %v2554 = vunpack.c.l.bf16 %v2522
        %v2555 = vunpack.c.l.bf16 %v2523
        %v2556 = vunpack.c.l.bf16 %v2524
        %v2557 = vunpack.c.l.bf16 %v2525
        %v2558 = vunpack.c.l.bf16 %v2526
        %v2559 = vunpack.c.l.bf16 %v2527
        %v2560 = vunpack.c.l.bf16 %v2528
        %v2561 = vunpack.c.l.bf16 %v2529
        %v2562 = vunpack.c.l.bf16 %v2530
        %v2563 = vunpack.c.l.bf16 %v2531
        %v2564 = vunpack.c.l.bf16 %v2532
        %v2565 = vunpack.c.l.bf16 %v2533
        %v2566 = vunpack.c.l.bf16 %v2534
        %v2567 = vunpack.c.l.bf16 %v2535
        %v2568 = vunpack.c.l.bf16 %v2536
        %v2569 = vunpack.c.l.bf16 %v2537
        %v2570 = vunpack.c.l.bf16 %v2538
        %v2571 = vunpack.c.l.bf16 %v2539
        %v2572 = vunpack.c.l.bf16 %v2540
        %v2573 = vunpack.c.l.bf16 %v2541
        %v2574 = vunpack.c.l.bf16 %v2542
        %v2575 = vunpack.c.l.bf16 %v2543
        %v2576 = vunpack.c.l.bf16 %v2544
        %v2577 = vunpack.c.l.bf16 %v2545
        %v2578 = vunpack.c.l.bf16 %v2546
        %v2579 = vunpack.c.l.bf16 %v2547
        %s2580 = scalar_lea.vmem %s3, 6
        %v2581 = vld [vmem:[%s2580] sm:$0x3]
        %v2582 = vlaneseq
        %v2583 = vshrl.u32 %v2582, 7
        %v2584 = vsub.s32 0, %v2583
        %v2585 = vrot.slane %v2581, %v2584
        %v2586 = vmul.f32 %v2548, %v2585
        %v2587 = vmul.f32 %v2549, %v2585
        %v2588 = vmul.f32 %v2550, %v2585
        %v2589 = vmul.f32 %v2551, %v2585
        %v2590 = vmul.f32 %v2552, %v2585
        %v2591 = vmul.f32 %v2553, %v2585
        %v2592 = vmul.f32 %v2554, %v2585
        %v2593 = vmul.f32 %v2555, %v2585
        %v2594 = vmul.f32 %v2556, %v2585
        %v2595 = vmul.f32 %v2557, %v2585
        %v2596 = vmul.f32 %v2558, %v2585
        %v2597 = vmul.f32 %v2559, %v2585
        %v2598 = vmul.f32 %v2560, %v2585
        %v2599 = vmul.f32 %v2561, %v2585
        %v2600 = vmul.f32 %v2562, %v2585
        %v2601 = vmul.f32 %v2563, %v2585
        %v2602 = vmul.f32 %v2564, %v2585
        %v2603 = vmul.f32 %v2565, %v2585
        %v2604 = vmul.f32 %v2566, %v2585
        %v2605 = vmul.f32 %v2567, %v2585
        %v2606 = vmul.f32 %v2568, %v2585
        %v2607 = vmul.f32 %v2569, %v2585
        %v2608 = vmul.f32 %v2570, %v2585
        %v2609 = vmul.f32 %v2571, %v2585
        %v2610 = vmul.f32 %v2572, %v2585
        %v2611 = vmul.f32 %v2573, %v2585
        %v2612 = vmul.f32 %v2574, %v2585
        %v2613 = vmul.f32 %v2575, %v2585
        %v2614 = vmul.f32 %v2576, %v2585
        %v2615 = vmul.f32 %v2577, %v2585
        %v2616 = vmul.f32 %v2578, %v2585
        %v2617 = vmul.f32 %v2579, %v2585
        %v2618 = vlaneseq
        %v2619 = vshrl.u32 %v2618, 7
        %v2620 = vsub.s32 1, %v2619
        %v2621 = vrot.slane %v2581, %v2620
        %v2622 = vadd.f32 %v2586, %v2621
        %v2623 = vadd.f32 %v2587, %v2621
        %v2624 = vadd.f32 %v2588, %v2621
        %v2625 = vadd.f32 %v2589, %v2621
        %v2626 = vadd.f32 %v2590, %v2621
        %v2627 = vadd.f32 %v2591, %v2621
        %v2628 = vadd.f32 %v2592, %v2621
        %v2629 = vadd.f32 %v2593, %v2621
        %v2630 = vadd.f32 %v2594, %v2621
        %v2631 = vadd.f32 %v2595, %v2621
        %v2632 = vadd.f32 %v2596, %v2621
        %v2633 = vadd.f32 %v2597, %v2621
        %v2634 = vadd.f32 %v2598, %v2621
        %v2635 = vadd.f32 %v2599, %v2621
        %v2636 = vadd.f32 %v2600, %v2621
        %v2637 = vadd.f32 %v2601, %v2621
        %v2638 = vadd.f32 %v2602, %v2621
        %v2639 = vadd.f32 %v2603, %v2621
        %v2640 = vadd.f32 %v2604, %v2621
        %v2641 = vadd.f32 %v2605, %v2621
        %v2642 = vadd.f32 %v2606, %v2621
        %v2643 = vadd.f32 %v2607, %v2621
        %v2644 = vadd.f32 %v2608, %v2621
        %v2645 = vadd.f32 %v2609, %v2621
        %v2646 = vadd.f32 %v2610, %v2621
        %v2647 = vadd.f32 %v2611, %v2621
        %v2648 = vadd.f32 %v2612, %v2621
        %v2649 = vadd.f32 %v2613, %v2621
        %v2650 = vadd.f32 %v2614, %v2621
        %v2651 = vadd.f32 %v2615, %v2621
        %v2652 = vadd.f32 %v2616, %v2621
        %v2653 = vadd.f32 %v2617, %v2621
        %v2654 = vmax.f32 %v2622, 0.0
        %v2655 = vmax.f32 %v2623, 0.0
        %v2656 = vmax.f32 %v2624, 0.0
        %v2657 = vmax.f32 %v2625, 0.0
        %v2658 = vmax.f32 %v2626, 0.0
        %v2659 = vmax.f32 %v2627, 0.0
        %v2660 = vmax.f32 %v2628, 0.0
        %v2661 = vmax.f32 %v2629, 0.0
        %v2662 = vmax.f32 %v2630, 0.0
        %v2663 = vmax.f32 %v2631, 0.0
        %v2664 = vmax.f32 %v2632, 0.0
        %v2665 = vmax.f32 %v2633, 0.0
        %v2666 = vmax.f32 %v2634, 0.0
        %v2667 = vmax.f32 %v2635, 0.0
        %v2668 = vmax.f32 %v2636, 0.0
        %v2669 = vmax.f32 %v2637, 0.0
        %v2670 = vmax.f32 %v2638, 0.0
        %v2671 = vmax.f32 %v2639, 0.0
        %v2672 = vmax.f32 %v2640, 0.0
        %v2673 = vmax.f32 %v2641, 0.0
        %v2674 = vmax.f32 %v2642, 0.0
        %v2675 = vmax.f32 %v2643, 0.0
        %v2676 = vmax.f32 %v2644, 0.0
        %v2677 = vmax.f32 %v2645, 0.0
        %v2678 = vmax.f32 %v2646, 0.0
        %v2679 = vmax.f32 %v2647, 0.0
        %v2680 = vmax.f32 %v2648, 0.0
        %v2681 = vmax.f32 %v2649, 0.0
        %v2682 = vmax.f32 %v2650, 0.0
        %v2683 = vmax.f32 %v2651, 0.0
        %v2684 = vmax.f32 %v2652, 0.0
        %v2685 = vmax.f32 %v2653, 0.0
        %v2686 = vpack.c.bf16 %v2655, %v2654
        %v2687 = vpack.c.bf16 %v2657, %v2656
        %v2688 = vpack.c.bf16 %v2659, %v2658
        %v2689 = vpack.c.bf16 %v2661, %v2660
        %v2690 = vpack.c.bf16 %v2663, %v2662
        %v2691 = vpack.c.bf16 %v2665, %v2664
        %v2692 = vpack.c.bf16 %v2667, %v2666
        %v2693 = vpack.c.bf16 %v2669, %v2668
        %v2694 = vpack.c.bf16 %v2671, %v2670
        %v2695 = vpack.c.bf16 %v2673, %v2672
        %v2696 = vpack.c.bf16 %v2675, %v2674
        %v2697 = vpack.c.bf16 %v2677, %v2676
        %v2698 = vpack.c.bf16 %v2679, %v2678
        %v2699 = vpack.c.bf16 %v2681, %v2680
        %v2700 = vpack.c.bf16 %v2683, %v2682
        %v2701 = vpack.c.bf16 %v2685, %v2684
        %s2702 = scalar_lea.vmem %s5, 24
        %v2703 = vld [vmem:[%s2702] sm:$0xf]
        %v2704 = vld [vmem:[%s2702 + $0x4] sm:$0xf]
        %v2707 = vunpack.c.l.b16 %v2703
        %v2708 = vunpack.c.l.b16 %v2704
        %v2709 = vpack.c.b16 %v2708, %v2707
        %v2712 = vsel %vm1209, %v2686, 0
        %v2715 = vsel %vm1209, %v2687, 0
        %v2718 = vsel %vm1209, %v2688, 0
        %v2721 = vsel %vm1209, %v2689, 0
        %v2724 = vsel %vm1209, %v2690, 0
        %v2727 = vsel %vm1209, %v2691, 0
        %v2730 = vsel %vm1209, %v2692, 0
        %v2733 = vsel %vm1209, %v2693, 0
        %v2736 = vsel %vm1209, %v2694, 0
        %v2739 = vsel %vm1209, %v2695, 0
        %v2742 = vsel %vm1209, %v2696, 0
        %v2745 = vsel %vm1209, %v2697, 0
        %v2748 = vsel %vm1209, %v2698, 0
        %v2751 = vsel %vm1209, %v2699, 0
        %v2754 = vsel %vm1209, %v2700, 0
        %v2757 = vsel %vm1209, %v2701, 0
        %2759 = vmatprep.subr.bf16.mxu0 0
        %2760 = vmatpush1.bf16.msra.mxu0 %v2709
        %2761 = vmatprep.subr.bf16.mxu0 0
        %2762 = vmatpush1.bf16.msra.mxu0 0
        %2763 = vmatprep.subr.bf16.mxu0 0
        %2764 = vmatpush1.bf16.msra.mxu0 0
        %2765 = vmatprep.subr.bf16.mxu0 0
        %2766 = vmatpush1.bf16.msra.mxu0 0
        %2767 = vmatprep.subr.bf16.mxu0 0
        %2768 = vmatpush1.bf16.msra.mxu0 0
        %2769 = vmatprep.subr.bf16.mxu0 0
        %2770 = vmatpush1.bf16.msra.mxu0 0
        %2771 = vmatprep.subr.bf16.mxu0 0
        %2772 = vmatpush1.bf16.msra.mxu0 0
        %2773 = vmatprep.subr.bf16.mxu0 0
        %2774 = vmatpush1.bf16.msra.mxu0 0
        %2775 = vmatprep.subr.bf16.mxu0 0
        %2776 = vmatpush1.bf16.msra.mxu0 0
        %2777 = vmatprep.subr.bf16.mxu0 0
        %2778 = vmatpush1.bf16.msra.mxu0 0
        %2779 = vmatprep.subr.bf16.mxu0 0
        %2780 = vmatpush1.bf16.msra.mxu0 0
        %2781 = vmatprep.subr.bf16.mxu0 0
        %2782 = vmatpush1.bf16.msra.mxu0 0
        %2783 = vmatprep.subr.bf16.mxu0 0
        %2784 = vmatpush1.bf16.msra.mxu0 0
        %2785 = vmatprep.subr.bf16.mxu0 0
        %2786 = vmatpush1.bf16.msra.mxu0 0
        %2787 = vmatprep.subr.bf16.mxu0 0
        %2788 = vmatpush1.bf16.msra.mxu0 0
        %2789 = vmatprep.subr.bf16.mxu0 0
        %2790 = vmatpush1.bf16.msra.mxu0 0
        %2791 = vmatprep.mubr.bf16.mxu0 0
        %2792 = vmatmul.mubr.bf16.gmra.mrb[0].mxu0 %v2712
        %v2793 = vpop.f32.mrb[0].mxu0
        %v2794 = vadd.f32 0.0, %v2793
        %v2795 = vpop.f32.mrb[0].mxu0
        %v2796 = vpop.f32.mrb[0].mxu0
        %v2797 = vadd.f32 0.0, %v2796
        %v2798 = vpop.f32.mrb[0].mxu0
        %2799 = vmatprep.mubr.bf16.mxu0 0
        %2800 = vmatmul.mubr.bf16.gmra.mrb[0].mxu0 %v2715
        %v2801 = vpop.f32.mrb[0].mxu0
        %v2802 = vadd.f32 0.0, %v2801
        %v2803 = vpop.f32.mrb[0].mxu0
        %v2804 = vpop.f32.mrb[0].mxu0
        %v2805 = vadd.f32 0.0, %v2804
        %v2806 = vpop.f32.mrb[0].mxu0
        %2807 = vmatprep.mubr.bf16.mxu0 0
        %2808 = vmatmul.mubr.bf16.gmra.mrb[0].mxu0 %v2718
        %v2809 = vpop.f32.mrb[0].mxu0
        %v2810 = vadd.f32 0.0, %v2809
        %v2811 = vpop.f32.mrb[0].mxu0
        %v2812 = vpop.f32.mrb[0].mxu0
        %v2813 = vadd.f32 0.0, %v2812
        %v2814 = vpop.f32.mrb[0].mxu0
        %2815 = vmatprep.mubr.bf16.mxu0 0
        %2816 = vmatmul.mubr.bf16.gmra.mrb[0].mxu0 %v2721
        %v2817 = vpop.f32.mrb[0].mxu0
        %v2818 = vadd.f32 0.0, %v2817
        %v2819 = vpop.f32.mrb[0].mxu0
        %v2820 = vpop.f32.mrb[0].mxu0
        %v2821 = vadd.f32 0.0, %v2820
        %v2822 = vpop.f32.mrb[0].mxu0
        %2823 = vmatprep.mubr.bf16.mxu0 0
        %2824 = vmatmul.mubr.bf16.gmra.mrb[0].mxu0 %v2724
        %v2825 = vpop.f32.mrb[0].mxu0
        %v2826 = vadd.f32 0.0, %v2825
        %v2827 = vpop.f32.mrb[0].mxu0
        %v2828 = vpop.f32.mrb[0].mxu0
        %v2829 = vadd.f32 0.0, %v2828
        %v2830 = vpop.f32.mrb[0].mxu0
        %2831 = vmatprep.mubr.bf16.mxu0 0
        %2832 = vmatmul.mubr.bf16.gmra.mrb[0].mxu0 %v2727
        %v2833 = vpop.f32.mrb[0].mxu0
        %v2834 = vadd.f32 0.0, %v2833
        %v2835 = vpop.f32.mrb[0].mxu0
        %v2836 = vpop.f32.mrb[0].mxu0
        %v2837 = vadd.f32 0.0, %v2836
        %v2838 = vpop.f32.mrb[0].mxu0
        %2839 = vmatprep.mubr.bf16.mxu0 0
        %2840 = vmatmul.mubr.bf16.gmra.mrb[0].mxu0 %v2730
        %v2841 = vpop.f32.mrb[0].mxu0
        %v2842 = vadd.f32 0.0, %v2841
        %v2843 = vpop.f32.mrb[0].mxu0
        %v2844 = vpop.f32.mrb[0].mxu0
        %v2845 = vadd.f32 0.0, %v2844
        %v2846 = vpop.f32.mrb[0].mxu0
        %2847 = vmatprep.mubr.bf16.mxu0 0
        %2848 = vmatmul.mubr.bf16.gmra.mrb[0].mxu0 %v2733
        %v2849 = vpop.f32.mrb[0].mxu0
        %v2850 = vadd.f32 0.0, %v2849
        %v2851 = vpop.f32.mrb[0].mxu0
        %v2852 = vpop.f32.mrb[0].mxu0
        %v2853 = vadd.f32 0.0, %v2852
        %v2854 = vpop.f32.mrb[0].mxu0
        %2855 = vmatprep.mubr.bf16.mxu0 0
        %2856 = vmatmul.mubr.bf16.gmra.mrb[0].mxu0 %v2736
        %v2857 = vpop.f32.mrb[0].mxu0
        %v2858 = vadd.f32 0.0, %v2857
        %v2859 = vpop.f32.mrb[0].mxu0
        %v2860 = vpop.f32.mrb[0].mxu0
        %v2861 = vadd.f32 0.0, %v2860
        %v2862 = vpop.f32.mrb[0].mxu0
        %2863 = vmatprep.mubr.bf16.mxu0 0
        %2864 = vmatmul.mubr.bf16.gmra.mrb[0].mxu0 %v2739
        %v2865 = vpop.f32.mrb[0].mxu0
        %v2866 = vadd.f32 0.0, %v2865
        %v2867 = vpop.f32.mrb[0].mxu0
        %v2868 = vpop.f32.mrb[0].mxu0
        %v2869 = vadd.f32 0.0, %v2868
        %v2870 = vpop.f32.mrb[0].mxu0
        %2871 = vmatprep.mubr.bf16.mxu0 0
        %2872 = vmatmul.mubr.bf16.gmra.mrb[0].mxu0 %v2742
        %v2873 = vpop.f32.mrb[0].mxu0
        %v2874 = vadd.f32 0.0, %v2873
        %v2875 = vpop.f32.mrb[0].mxu0
        %v2876 = vpop.f32.mrb[0].mxu0
        %v2877 = vadd.f32 0.0, %v2876
        %v2878 = vpop.f32.mrb[0].mxu0
        %2879 = vmatprep.mubr.bf16.mxu0 0
        %2880 = vmatmul.mubr.bf16.gmra.mrb[0].mxu0 %v2745
        %v2881 = vpop.f32.mrb[0].mxu0
        %v2882 = vadd.f32 0.0, %v2881
        %v2883 = vpop.f32.mrb[0].mxu0
        %v2884 = vpop.f32.mrb[0].mxu0
        %v2885 = vadd.f32 0.0, %v2884
        %v2886 = vpop.f32.mrb[0].mxu0
        %2887 = vmatprep.mubr.bf16.mxu0 0
        %2888 = vmatmul.mubr.bf16.gmra.mrb[0].mxu0 %v2748
        %v2889 = vpop.f32.mrb[0].mxu0
        %v2890 = vadd.f32 0.0, %v2889
        %v2891 = vpop.f32.mrb[0].mxu0
        %v2892 = vpop.f32.mrb[0].mxu0
        %v2893 = vadd.f32 0.0, %v2892
        %v2894 = vpop.f32.mrb[0].mxu0
        %2895 = vmatprep.mubr.bf16.mxu0 0
        %2896 = vmatmul.mubr.bf16.gmra.mrb[0].mxu0 %v2751
        %v2897 = vpop.f32.mrb[0].mxu0
        %v2898 = vadd.f32 0.0, %v2897
        %v2899 = vpop.f32.mrb[0].mxu0
        %v2900 = vpop.f32.mrb[0].mxu0
        %v2901 = vadd.f32 0.0, %v2900
        %v2902 = vpop.f32.mrb[0].mxu0
        %2903 = vmatprep.mubr.bf16.mxu0 0
        %2904 = vmatmul.mubr.bf16.gmra.mrb[0].mxu0 %v2754
        %v2905 = vpop.f32.mrb[0].mxu0
        %v2906 = vadd.f32 0.0, %v2905
        %v2907 = vpop.f32.mrb[0].mxu0
        %v2908 = vpop.f32.mrb[0].mxu0
        %v2909 = vadd.f32 0.0, %v2908
        %v2910 = vpop.f32.mrb[0].mxu0
        %2911 = vmatprep.mubr.bf16.mxu0 0
        %2912 = vmatmul.mubr.bf16.gmra.mrb[0].mxu0 %v2757
        %v2913 = vpop.f32.mrb[0].mxu0
        %v2914 = vadd.f32 0.0, %v2913
        %v2915 = vpop.f32.mrb[0].mxu0
        %v2916 = vpop.f32.mrb[0].mxu0
        %v2917 = vadd.f32 0.0, %v2916
        %v2918 = vpop.f32.mrb[0].mxu0
        %2919 = vdwg.mxu0
        %v2920 = vadd.f32 %v2483, %v2794
        %v2921 = vadd.f32 %v2484, %v2797
        %v2922 = vadd.f32 %v2485, %v2802
        %v2923 = vadd.f32 %v2486, %v2805
        %v2924 = vadd.f32 %v2487, %v2810
        %v2925 = vadd.f32 %v2488, %v2813
        %v2926 = vadd.f32 %v2489, %v2818
        %v2927 = vadd.f32 %v2490, %v2821
        %v2928 = vadd.f32 %v2491, %v2826
        %v2929 = vadd.f32 %v2492, %v2829
        %v2930 = vadd.f32 %v2493, %v2834
        %v2931 = vadd.f32 %v2494, %v2837
        %v2932 = vadd.f32 %v2495, %v2842
        %v2933 = vadd.f32 %v2496, %v2845
        %v2934 = vadd.f32 %v2497, %v2850
        %v2935 = vadd.f32 %v2498, %v2853
        %v2936 = vadd.f32 %v2499, %v2858
        %v2937 = vadd.f32 %v2500, %v2861
        %v2938 = vadd.f32 %v2501, %v2866
        %v2939 = vadd.f32 %v2502, %v2869
        %v2940 = vadd.f32 %v2503, %v2874
        %v2941 = vadd.f32 %v2504, %v2877
        %v2942 = vadd.f32 %v2505, %v2882
        %v2943 = vadd.f32 %v2506, %v2885
        %v2944 = vadd.f32 %v2507, %v2890
        %v2945 = vadd.f32 %v2508, %v2893
        %v2946 = vadd.f32 %v2509, %v2898
        %v2947 = vadd.f32 %v2510, %v2901
        %v2948 = vadd.f32 %v2511, %v2906
        %v2949 = vadd.f32 %v2512, %v2909
        %v2950 = vadd.f32 %v2513, %v2914
        %v2951 = vadd.f32 %v2514, %v2917
        %2952 = vst.msk [vmem:[%s824] sm:$0xff] %vm1209, %v2920
        %2953 = vst.msk [vmem:[%s824 + $0x8] sm:$0xff] %vm1209, %v2921
        %2954 = vst.msk [vmem:[%s824 + $0x10] sm:$0xff] %vm1209, %v2922
        %2955 = vst.msk [vmem:[%s824 + $0x18] sm:$0xff] %vm1209, %v2923
        %2956 = vst.msk [vmem:[%s824 + $0x20] sm:$0xff] %vm1209, %v2924
        %2957 = vst.msk [vmem:[%s824 + $0x28] sm:$0xff] %vm1209, %v2925
        %2958 = vst.msk [vmem:[%s824 + $0x30] sm:$0xff] %vm1209, %v2926
        %2959 = vst.msk [vmem:[%s824 + $0x38] sm:$0xff] %vm1209, %v2927
        %2960 = vst.msk [vmem:[%s824 + $0x40] sm:$0xff] %vm1209, %v2928
        %2961 = vst.msk [vmem:[%s824 + $0x48] sm:$0xff] %vm1209, %v2929
        %2962 = vst.msk [vmem:[%s824 + $0x50] sm:$0xff] %vm1209, %v2930
        %2963 = vst.msk [vmem:[%s824 + $0x58] sm:$0xff] %vm1209, %v2931
        %2964 = vst.msk [vmem:[%s824 + $0x60] sm:$0xff] %vm1209, %v2932
        %2965 = vst.msk [vmem:[%s824 + $0x68] sm:$0xff] %vm1209, %v2933
        %2966 = vst.msk [vmem:[%s824 + $0x70] sm:$0xff] %vm1209, %v2934
        %2967 = vst.msk [vmem:[%s824 + $0x78] sm:$0xff] %vm1209, %v2935
        %2968 = vst.msk [vmem:[%s824 + $0x80] sm:$0xff] %vm1209, %v2936
        %2969 = vst.msk [vmem:[%s824 + $0x88] sm:$0xff] %vm1209, %v2937
        %2970 = vst.msk [vmem:[%s824 + $0x90] sm:$0xff] %vm1209, %v2938
        %2971 = vst.msk [vmem:[%s824 + $0x98] sm:$0xff] %vm1209, %v2939
        %2972 = vst.msk [vmem:[%s824 + $0xa0] sm:$0xff] %vm1209, %v2940
        %2973 = vst.msk [vmem:[%s824 + $0xa8] sm:$0xff] %vm1209, %v2941
        %2974 = vst.msk [vmem:[%s824 + $0xb0] sm:$0xff] %vm1209, %v2942
        %2975 = vst.msk [vmem:[%s824 + $0xb8] sm:$0xff] %vm1209, %v2943
        %2976 = vst.msk [vmem:[%s824 + $0xc0] sm:$0xff] %vm1209, %v2944
        %2977 = vst.msk [vmem:[%s824 + $0xc8] sm:$0xff] %vm1209, %v2945
        %2978 = vst.msk [vmem:[%s824 + $0xd0] sm:$0xff] %vm1209, %v2946
        %2979 = vst.msk [vmem:[%s824 + $0xd8] sm:$0xff] %vm1209, %v2947
        %2980 = vst.msk [vmem:[%s824 + $0xe0] sm:$0xff] %vm1209, %v2948
        %2981 = vst.msk [vmem:[%s824 + $0xe8] sm:$0xff] %vm1209, %v2949
        %2982 = vst.msk [vmem:[%s824 + $0xf0] sm:$0xff] %vm1209, %v2950
        %2983 = vst.msk [vmem:[%s824 + $0xf8] sm:$0xff] %vm1209, %v2951
        %s2984 = smul.u32 32, %s17
        %p2985 = scmp.lt.s32.totalorder %s2984, 63
        %s2986 = scalar_select %p2985, %s2984, 63
        %s2987 = smul.addr %s2986, 8
        %s2988 = scalar_lea.vmem %s6, %s2987
        // Predicated region
        $region86: #{spatial_pyramid_pooling.5} parent=80 // pred_check
          %p2989 = pneg %p171
        $region87: #{spatial_pyramid_pooling.5} parent=80 // pred_check_branch
          %2991 = sbr.rel (%p2989) target = $region89
        $region88: #{spatial_pyramid_pooling.5} parent=80 // pred_region
          %s2992 = smul.u32 32, %s17
        $region89: #{spatial_pyramid_pooling.5} parent=80 // pred_fallthru
          _
      $region81: #{spatial_pyramid_pooling.5} parent=5 // pred_fallthru
        _
      %p2993 = scmp.le.s32.totalorder 2, %s12
      // Predicated region
      $region90: #{spatial_pyramid_pooling.5} parent=5 // pred_check
        %p2994 = pneg %p2993
      $region91: #{spatial_pyramid_pooling.5} parent=5 // pred_check_branch
        %2996 = sbr.rel (%p2994) target = $region93
      $region92: #{spatial_pyramid_pooling.5} parent=5 // pred_region
        %s2997 = ssub.s32 %s12, 2
        // Predicated region
        $region94: #{spatial_pyramid_pooling.5} parent=92 // pred_check
          %p2998 = pneg %p177
        $region95: #{spatial_pyramid_pooling.5} parent=92 // pred_check_branch
          %3000 = sbr.rel (%p2998) target = $region97
        $region96: #{spatial_pyramid_pooling.5} parent=92 // pred_region
          %s3001 = smul.u32 32, %s18
          %p3002 = scmp.lt.s32.totalorder %s3001, 63
          %s3003 = scalar_select %p3002, %s3001, 63
          %s3004 = smul.addr %s3003, 8
          %s3005 = scalar_lea.vmem %s6, %s3004
        $region97: #{spatial_pyramid_pooling.5} parent=92 // pred_fallthru
          _
      $region93: #{spatial_pyramid_pooling.5} parent=5 // pred_fallthru
        _
    $region6: #{spatial_pyramid_pooling.5} parent=1 // loop_footer
      %s16 = sadd.s32 1, %s12
    $region7: #{spatial_pyramid_pooling.5} parent=1 // loop_footer_branch
      %11 = sbr.rel target = $region3
    $region8: #{spatial_pyramid_pooling.5} parent=1 // loop_exit
      _

</llo_original>
